<compile_context>
chip_gen: v6e
topology: v6e:2x2x1
jax: 0.10.0
libtpu: 0.0.40
codegen_flags: <defaults>
</compile_context>

<pallas_src>
import functools

import jax
import jax.numpy as jnp
from jax import lax
from jax.experimental import pallas as pl
from jax.experimental.pallas import tpu as pltpu

# Small config consistent with the module (reference: n_embd=512, 8 heads, T=256).
N_EMBD = 128
N_HEADS = 4
SEQ_LEN = 64
LN_EPS = 1e-5


# ----------------------------- fused Block kernel -----------------------------
def _block_kernel(x_ref, mask_ref, ln1_g_ref, ln1_b_ref, wqkv_ref,
                  proj_w_ref, proj_b_ref, ln2_g_ref, ln2_b_ref,
                  fc1_w_ref, fc1_b_ref, fc2_w_ref, fc2_b_ref,
                  o_ref, *, n_heads, seq_len, scale):
    x0 = x_ref[...].astype(jnp.float32)            # (bb*T, D) residual-stream rows
    R, D = x0.shape
    T = seq_len
    bb = R // T                                    # batch elements folded per step
    hs = D // n_heads

    def layer_norm(v, g_ref, b_ref):
        mu = jnp.mean(v, axis=-1, keepdims=True)
        vc = v - mu
        var = jnp.mean(vc * vc, axis=-1, keepdims=True)
        return vc * lax.rsqrt(var + LN_EPS) * g_ref[...] + b_ref[...]

    # ---- attention sub-layer: x + proj(MHA(LN1(x))) ----
    h = layer_norm(x0, ln1_g_ref, ln1_b_ref)
    # single fused QKV matmul: (R, D) @ (D, 3D), bf16 operands -> f32 accum
    qkv = jnp.dot(h.astype(jnp.bfloat16), wqkv_ref[...],
                  preferred_element_type=jnp.float32)
    q = (qkv[:, :D] * scale).astype(jnp.bfloat16)   # scale applied once, to q only
    k = qkv[:, D:2 * D].astype(jnp.bfloat16)
    v = qkv[:, 2 * D:].astype(jnp.bfloat16)

    mask_bias = mask_ref[...]                       # (T, T) additive causal bias

    # Fuse the output projection into the head loop:
    #   att_h @ Wp[h]  ==  p @ (v_h @ Wp[h])
    # -> every second matmul has a 128-lane-dense (.., D) output and no concat.
    # v_h @ Wp[h] is computed over ALL folded batch rows at once (MXU occupancy).
    pw = proj_w_ref[...]                            # (D, D) bf16, resident
    vproj = [jnp.dot(v[:, hd * hs:(hd + 1) * hs],
                     pw[hd * hs:(hd + 1) * hs, :],
                     preferred_element_type=jnp.float32).astype(jnp.bfloat16)
             for hd in range(n_heads)]              # n_heads x (R, D)

    dim_nums = (((1,), (1,)), ((), ()))             # contract last dims: no kh.T
    sa_rows = []
    for b in range(bb):                             # static unrolled batch loop
        rows = slice(b * T, (b + 1) * T)
        acc = jnp.zeros((T, D), jnp.float32)
        for hd in range(n_heads):                   # static unrolled head loop
            cols = slice(hd * hs, (hd + 1) * hs)
            s = lax.dot_general(q[rows, cols], k[rows, cols], dim_nums,
                                preferred_element_type=jnp.float32) + mask_bias
            m = jnp.max(s, axis=-1, keepdims=True)
            p = jnp.exp(s - m)
            p = p * pl.reciprocal(jnp.sum(p, axis=-1, keepdims=True), approx=True)
            acc = acc + jnp.dot(p.astype(jnp.bfloat16), vproj[hd][rows, :],
                                preferred_element_type=jnp.float32)
        sa_rows.append(acc)
    sa = sa_rows[0] if bb == 1 else jnp.concatenate(sa_rows, axis=0)   # (R, D)

    x1 = x0 + sa + proj_b_ref[...]

    # ---- feed-forward sub-layer: x + fc2(GELU(fc1(LN2(x)))) ----
    h2 = layer_norm(x1, ln2_g_ref, ln2_b_ref)
    f = jnp.dot(h2.astype(jnp.bfloat16), fc1_w_ref[...],
                preferred_element_type=jnp.float32) + fc1_b_ref[...]
    f = 0.5 * f * (1.0 + lax.erf(f * jnp.float32(0.7071067811865476)))  # exact GELU
    x2 = x1 + jnp.dot(f.astype(jnp.bfloat16), fc2_w_ref[...],
                      preferred_element_type=jnp.float32) + fc2_b_ref[...]

    # single full-width lane-dense store
    o_ref[...] = x2.astype(o_ref.dtype)


# ------------------------------- host wrapper ----------------------------------
def _num_batch_blocks(batch):
    """Grid steps: 1 on single-TC chips (fold whole batch); 2 on v7x (2 TCs)."""
    try:
        kind = jax.devices()[0].device_kind.lower()
        if "v7" in kind and batch >= 2 and batch % 2 == 0:
            return 2
    except Exception:
        pass
    return 1


def prepare_params(p):
    """Kernel-ready params: matmul weights in bf16, biases / LN params in f32."""
    q = dict(p)
    for name in ("wqkv", "proj_w", "fc1_w", "fc2_w"):
        q[name] = p[name].astype(jnp.bfloat16)
    return q


def block_forward(x, p, *, n_heads=N_HEADS):
    """Fused transformer Block forward: (B, T, D) -> (B, T, D)."""
    B, T, D = x.shape
    scale = float(D) ** -0.5           # matches reference: C ** (-0.5), C = n_embd
    nb = _num_batch_blocks(B)          # grid steps
    bb = B // nb                       # batch elements folded into each step

    # causal mask as an additive bias, built once outside the kernel
    row = jnp.arange(T, dtype=jnp.int32)[:, None]
    col = jnp.arange(T, dtype=jnp.int32)[None, :]
    mask_bias = jnp.where(col <= row, 0.0, -1e30).astype(jnp.float32)

    x2d = x.reshape(B * T, D)          # fold batch into matmul rows
    rep = lambda i: (0, 0)             # resident blocks: same index every step
    kernel = functools.partial(_block_kernel, n_heads=n_heads, seq_len=T, scale=scale)
    out = pl.pallas_call(
        kernel,
        out_shape=jax.ShapeDtypeStruct((B * T, D), x.dtype),
        grid=(nb,),
        in_specs=[
            pl.BlockSpec((bb * T, D), lambda i: (i, 0)),      # residual stream rows
            pl.BlockSpec((T, T), rep),                        # causal additive bias
            pl.BlockSpec((1, D), rep),                        # ln1 gamma
            pl.BlockSpec((1, D), rep),                        # ln1 beta
            pl.BlockSpec((D, 3 * D), rep),                    # fused Wq|Wk|Wv (bf16)
            pl.BlockSpec((D, D), rep),                        # proj W (bf16)
            pl.BlockSpec((1, D), rep),                        # proj b
            pl.BlockSpec((1, D), rep),                        # ln2 gamma
            pl.BlockSpec((1, D), rep),                        # ln2 beta
            pl.BlockSpec((D, 4 * D), rep),                    # fc1 W (bf16)
            pl.BlockSpec((1, 4 * D), rep),                    # fc1 b
            pl.BlockSpec((4 * D, D), rep),                    # fc2 W (bf16)
            pl.BlockSpec((1, D), rep),                        # fc2 b
        ],
        out_specs=pl.BlockSpec((bb * T, D), lambda i: (i, 0)),
        input_output_aliases={0: 0},   # residual stream updated in place
        compiler_params=pltpu.CompilerParams(
            dimension_semantics=("parallel",),
            vmem_limit_bytes=32 * 1024 * 1024),
    )(x2d, mask_bias, p["ln1_g"], p["ln1_b"], p["wqkv"], p["proj_w"], p["proj_b"],
      p["ln2_g"], p["ln2_b"], p["fc1_w"], p["fc1_b"], p["fc2_w"], p["fc2_b"])
    return out.reshape(B, T, D)


# ------------------------------ pure-JAX reference -----------------------------
def block_ref(x, p, *, n_heads=N_HEADS):
    B, T, D = x.shape
    hs = D // n_heads
    scale = float(D) ** -0.5
    f32 = lambda w: w.astype(jnp.float32)

    def ln(v, g, b):
        mu = jnp.mean(v, axis=-1, keepdims=True)
        var = jnp.mean((v - mu) ** 2, axis=-1, keepdims=True)
        return (v - mu) * lax.rsqrt(var + LN_EPS) * g + b

    h = ln(x, p["ln1_g"], p["ln1_b"])
    qkv = h @ f32(p["wqkv"])
    q, k, v = qkv[..., :D], qkv[..., D:2 * D], qkv[..., 2 * D:]
    q = q.reshape(B, T, n_heads, hs).transpose(0, 2, 1, 3)
    k = k.reshape(B, T, n_heads, hs).transpose(0, 2, 1, 3)
    v = v.reshape(B, T, n_heads, hs).transpose(0, 2, 1, 3)
    s = jnp.einsum("bhqd,bhkd->bhqk", q, k) * scale
    mask = jnp.tril(jnp.ones((T, T), bool))
    s = jnp.where(mask, s, -jnp.inf)
    a = jax.nn.softmax(s, axis=-1)
    att = jnp.einsum("bhqk,bhkd->bhqd", a, v).transpose(0, 2, 1, 3).reshape(B, T, D)
    x = x + att @ f32(p["proj_w"]) + p["proj_b"]
    h2 = ln(x, p["ln2_g"], p["ln2_b"])
    f = h2 @ f32(p["fc1_w"]) + p["fc1_b"]
    f = 0.5 * f * (1.0 + lax.erf(f * jnp.float32(0.7071067811865476)))
    return x + f @ f32(p["fc2_w"]) + p["fc2_b"]


# -------------------------------- param init -----------------------------------
def init_block_params(key, d=N_EMBD):
    h4 = 4 * d
    ks = jax.random.split(key, 4)
    w = lambda k, shape: jax.random.normal(k, shape, jnp.float32) * 0.02
    return {
        "ln1_g": jnp.ones((1, d), jnp.float32),
        "ln1_b": jnp.zeros((1, d), jnp.float32),
        # per-head K/Q/V Linear(d, head_size, bias=False) weights concatenated:
        # columns ordered [q heads | k heads | v heads], head-major within each.
        "wqkv": w(ks[0], (d, 3 * d)),
        "proj_w": w(ks[1], (d, d)),
        "proj_b": jnp.zeros((1, d), jnp.float32),
        "ln2_g": jnp.ones((1, d), jnp.float32),
        "ln2_b": jnp.zeros((1, d), jnp.float32),
        "fc1_w": w(ks[2], (d, h4)),
        "fc1_b": jnp.zeros((1, h4), jnp.float32),
        "fc2_w": w(ks[3], (h4, d)),
        "fc2_b": jnp.zeros((1, d), jnp.float32),
    }


# ------------------------------------ main --------------------------------------
if __name__ == "__main__":
    key = jax.random.PRNGKey(0)
    pkey, xkey = jax.random.split(key)
    params = init_block_params(pkey)
    kparams = prepare_params(params)   # bf16 matmul weights for the kernel
    # Reference evaluates in f32 at the SAME (bf16-rounded) weight values, so
    # the comparison isolates kernel error from weight quantization.

    B, T, D = 2, SEQ_LEN, N_EMBD
    x = jax.random.normal(xkey, (B, T, D), jnp.float32)

    y_ref = block_ref(x, kparams)                    # pure-JAX reference

    block_fn = jax.jit(block_forward)
    y = jax.block_until_ready(block_fn(x, kparams))

    assert y.shape == (B, T, D)
    assert bool(jnp.all(jnp.isfinite(y)))
    assert bool(jnp.allclose(y, y_ref, atol=1e-2, rtol=1e-2))
    print("KERNEL_OK")
</pallas_src>

<mosaic_0001>
module attributes {stable_mosaic.version = 11 : i64} {
  func.func @_block_kernel(%arg0: i32, %arg1: memref<128x128xf32, #tpu.memory_space<vmem>>, %arg2: memref<64x64xf32, #tpu.memory_space<vmem>>, %arg3: memref<1x128xf32, #tpu.memory_space<vmem>>, %arg4: memref<1x128xf32, #tpu.memory_space<vmem>>, %arg5: memref<128x384xbf16, #tpu.memory_space<vmem>>, %arg6: memref<128x128xbf16, #tpu.memory_space<vmem>>, %arg7: memref<1x128xf32, #tpu.memory_space<vmem>>, %arg8: memref<1x128xf32, #tpu.memory_space<vmem>>, %arg9: memref<1x128xf32, #tpu.memory_space<vmem>>, %arg10: memref<128x512xbf16, #tpu.memory_space<vmem>>, %arg11: memref<1x512xf32, #tpu.memory_space<vmem>>, %arg12: memref<512x128xbf16, #tpu.memory_space<vmem>>, %arg13: memref<1x128xf32, #tpu.memory_space<vmem>>, %arg14: memref<128x128xf32, #tpu.memory_space<vmem>>) attributes {dimension_semantics = [#tpu.dimension_semantics<parallel>], iteration_bounds = array<i64: 1>, scalar_prefetch = 0 : i64, scratch_operands = 0 : i64, tpu.core_type = #tpu.core_type<tc>, window_params = [{transform_indices = @transform_0, window_bounds = array<i64: 128, 128>}, {pipeline_mode = #tpu.pipeline_mode<synchronous>, transform_indices = @transform_1, window_bounds = array<i64: 64, 64>}, {pipeline_mode = #tpu.pipeline_mode<synchronous>, transform_indices = @transform_2, window_bounds = array<i64: 1, 128>}, {pipeline_mode = #tpu.pipeline_mode<synchronous>, transform_indices = @transform_3, window_bounds = array<i64: 1, 128>}, {pipeline_mode = #tpu.pipeline_mode<synchronous>, transform_indices = @transform_4, window_bounds = array<i64: 128, 384>}, {pipeline_mode = #tpu.pipeline_mode<synchronous>, transform_indices = @transform_5, window_bounds = array<i64: 128, 128>}, {pipeline_mode = #tpu.pipeline_mode<synchronous>, transform_indices = @transform_6, window_bounds = array<i64: 1, 128>}, {pipeline_mode = #tpu.pipeline_mode<synchronous>, transform_indices = @transform_7, window_bounds = array<i64: 1, 128>}, {pipeline_mode = #tpu.pipeline_mode<synchronous>, transform_indices = @transform_8, window_bounds = array<i64: 1, 128>}, {pipeline_mode = #tpu.pipeline_mode<synchronous>, transform_indices = @transform_9, window_bounds = array<i64: 128, 512>}, {pipeline_mode = #tpu.pipeline_mode<synchronous>, transform_indices = @transform_10, window_bounds = array<i64: 1, 512>}, {pipeline_mode = #tpu.pipeline_mode<synchronous>, transform_indices = @transform_11, window_bounds = array<i64: 512, 128>}, {pipeline_mode = #tpu.pipeline_mode<synchronous>, transform_indices = @transform_12, window_bounds = array<i64: 1, 128>}, {transform_indices = @transform_13, window_bounds = array<i64: 128, 128>}]} {
    %c0 = arith.constant 0 : index
    %c0_0 = arith.constant 0 : index
    %0 = vector.load %arg1[%c0, %c0_0] : memref<128x128xf32, #tpu.memory_space<vmem>>, vector<128x128xf32>
    %cst = arith.constant dense<0.000000e+00> : vector<128xf32>
    %1 = vector.multi_reduction <add>, %0, %cst [1] : vector<128x128xf32> to vector<128xf32>
    %2 = vector.shape_cast %1 : vector<128xf32> to vector<128x1xf32>
    %cst_1 = arith.constant 1.280000e+02 : f32
    %3 = vector.broadcast %cst_1 : f32 to vector<128x1xf32>
    %4 = arith.divf %2, %3 : vector<128x1xf32>
    %5 = vector.broadcast %4 : vector<128x1xf32> to vector<128x128xf32>
    %6 = arith.subf %0, %5 : vector<128x128xf32>
    %7 = arith.mulf %6, %6 : vector<128x128xf32>
    %cst_2 = arith.constant dense<0.000000e+00> : vector<128xf32>
    %8 = vector.multi_reduction <add>, %7, %cst_2 [1] : vector<128x128xf32> to vector<128xf32>
    %9 = vector.shape_cast %8 : vector<128xf32> to vector<128x1xf32>
    %cst_3 = arith.constant 1.280000e+02 : f32
    %10 = vector.broadcast %cst_3 : f32 to vector<128x1xf32>
    %11 = arith.divf %9, %10 : vector<128x1xf32>
    %cst_4 = arith.constant 9.99999974E-6 : f32
    %12 = vector.broadcast %cst_4 : f32 to vector<128x1xf32>
    %13 = arith.addf %11, %12 : vector<128x1xf32>
    %14 = math.rsqrt %13 : vector<128x1xf32>
    %15 = vector.broadcast %14 : vector<128x1xf32> to vector<128x128xf32>
    %16 = arith.mulf %6, %15 : vector<128x128xf32>
    %c0_5 = arith.constant 0 : index
    %c0_6 = arith.constant 0 : index
    %17 = vector.load %arg3[%c0_5, %c0_6] : memref<1x128xf32, #tpu.memory_space<vmem>>, vector<1x128xf32>
    %18 = vector.broadcast %17 : vector<1x128xf32> to vector<128x128xf32>
    %19 = arith.mulf %16, %18 : vector<128x128xf32>
    %c0_7 = arith.constant 0 : index
    %c0_8 = arith.constant 0 : index
    %20 = vector.load %arg4[%c0_7, %c0_8] : memref<1x128xf32, #tpu.memory_space<vmem>>, vector<1x128xf32>
    %21 = vector.broadcast %20 : vector<1x128xf32> to vector<128x128xf32>
    %22 = arith.addf %19, %21 : vector<128x128xf32>
    %23 = arith.truncf %22 : vector<128x128xf32> to vector<128x128xbf16>
    %c0_9 = arith.constant 0 : index
    %c0_10 = arith.constant 0 : index
    %24 = vector.load %arg5[%c0_9, %c0_10] : memref<128x384xbf16, #tpu.memory_space<vmem>>, vector<128x384xbf16>
    %cst_11 = arith.constant dense<0.000000e+00> : vector<128x384xf32>
    %25 = tpu.matmul %23, %24, %cst_11 {dimension_numbers = #tpu.dot_dimension_numbers<[1], [0], [0], [1], [0, 0, 1, 1], [], []>} : vector<128x128xbf16>, vector<128x384xbf16>, vector<128x384xf32> -> vector<128x384xf32>
    %26 = vector.extract_strided_slice %25 {offsets = [0, 0], sizes = [128, 128], strides = [1, 1]} : vector<128x384xf32> to vector<128x128xf32>
    %cst_12 = arith.constant 0.0883883461 : f32
    %27 = vector.broadcast %cst_12 : f32 to vector<128x128xf32>
    %28 = arith.mulf %26, %27 : vector<128x128xf32>
    %29 = arith.truncf %28 : vector<128x128xf32> to vector<128x128xbf16>
    %30 = vector.extract_strided_slice %25 {offsets = [0, 128], sizes = [128, 128], strides = [1, 1]} : vector<128x384xf32> to vector<128x128xf32>
    %31 = arith.truncf %30 : vector<128x128xf32> to vector<128x128xbf16>
    %32 = vector.extract_strided_slice %25 {offsets = [0, 256], sizes = [128, 128], strides = [1, 1]} : vector<128x384xf32> to vector<128x128xf32>
    %33 = arith.truncf %32 : vector<128x128xf32> to vector<128x128xbf16>
    %c0_13 = arith.constant 0 : index
    %c0_14 = arith.constant 0 : index
    %34 = vector.load %arg2[%c0_13, %c0_14] : memref<64x64xf32, #tpu.memory_space<vmem>>, vector<64x64xf32>
    %c0_15 = arith.constant 0 : index
    %c0_16 = arith.constant 0 : index
    %35 = vector.load %arg6[%c0_15, %c0_16] : memref<128x128xbf16, #tpu.memory_space<vmem>>, vector<128x128xbf16>
    %36 = vector.extract_strided_slice %33 {offsets = [0, 0], sizes = [128, 32], strides = [1, 1]} : vector<128x128xbf16> to vector<128x32xbf16>
    %37 = vector.extract_strided_slice %35 {offsets = [0, 0], sizes = [32, 128], strides = [1, 1]} : vector<128x128xbf16> to vector<32x128xbf16>
    %cst_17 = arith.constant dense<0.000000e+00> : vector<128x128xf32>
    %38 = tpu.matmul %36, %37, %cst_17 {dimension_numbers = #tpu.dot_dimension_numbers<[1], [0], [0], [1], [0, 0, 1, 1], [], []>} : vector<128x32xbf16>, vector<32x128xbf16>, vector<128x128xf32> -> vector<128x128xf32>
    %39 = arith.truncf %38 : vector<128x128xf32> to vector<128x128xbf16>
    %40 = vector.extract_strided_slice %33 {offsets = [0, 32], sizes = [128, 32], strides = [1, 1]} : vector<128x128xbf16> to vector<128x32xbf16>
    %41 = vector.extract_strided_slice %35 {offsets = [32, 0], sizes = [32, 128], strides = [1, 1]} : vector<128x128xbf16> to vector<32x128xbf16>
    %cst_18 = arith.constant dense<0.000000e+00> : vector<128x128xf32>
    %42 = tpu.matmul %40, %41, %cst_18 {dimension_numbers = #tpu.dot_dimension_numbers<[1], [0], [0], [1], [0, 0, 1, 1], [], []>} : vector<128x32xbf16>, vector<32x128xbf16>, vector<128x128xf32> -> vector<128x128xf32>
    %43 = arith.truncf %42 : vector<128x128xf32> to vector<128x128xbf16>
    %44 = vector.extract_strided_slice %33 {offsets = [0, 64], sizes = [128, 32], strides = [1, 1]} : vector<128x128xbf16> to vector<128x32xbf16>
    %45 = vector.extract_strided_slice %35 {offsets = [64, 0], sizes = [32, 128], strides = [1, 1]} : vector<128x128xbf16> to vector<32x128xbf16>
    %cst_19 = arith.constant dense<0.000000e+00> : vector<128x128xf32>
    %46 = tpu.matmul %44, %45, %cst_19 {dimension_numbers = #tpu.dot_dimension_numbers<[1], [0], [0], [1], [0, 0, 1, 1], [], []>} : vector<128x32xbf16>, vector<32x128xbf16>, vector<128x128xf32> -> vector<128x128xf32>
    %47 = arith.truncf %46 : vector<128x128xf32> to vector<128x128xbf16>
    %48 = vector.extract_strided_slice %33 {offsets = [0, 96], sizes = [128, 32], strides = [1, 1]} : vector<128x128xbf16> to vector<128x32xbf16>
    %49 = vector.extract_strided_slice %35 {offsets = [96, 0], sizes = [32, 128], strides = [1, 1]} : vector<128x128xbf16> to vector<32x128xbf16>
    %cst_20 = arith.constant dense<0.000000e+00> : vector<128x128xf32>
    %50 = tpu.matmul %48, %49, %cst_20 {dimension_numbers = #tpu.dot_dimension_numbers<[1], [0], [0], [1], [0, 0, 1, 1], [], []>} : vector<128x32xbf16>, vector<32x128xbf16>, vector<128x128xf32> -> vector<128x128xf32>
    %51 = arith.truncf %50 : vector<128x128xf32> to vector<128x128xbf16>
    %cst_21 = arith.constant 0.000000e+00 : f32
    %52 = vector.broadcast %cst_21 : f32 to vector<64x128xf32>
    %53 = vector.extract_strided_slice %29 {offsets = [0, 0], sizes = [64, 32], strides = [1, 1]} : vector<128x128xbf16> to vector<64x32xbf16>
    %54 = vector.extract_strided_slice %31 {offsets = [0, 0], sizes = [64, 32], strides = [1, 1]} : vector<128x128xbf16> to vector<64x32xbf16>
    %cst_22 = arith.constant dense<0.000000e+00> : vector<64x64xf32>
    %55 = tpu.matmul %53, %54, %cst_22 {dimension_numbers = #tpu.dot_dimension_numbers<[1], [1], [0], [0], [0, 0, 1, 0], [], []>} : vector<64x32xbf16>, vector<64x32xbf16>, vector<64x64xf32> -> vector<64x64xf32>
    %56 = arith.addf %55, %34 : vector<64x64xf32>
    %cst_23 = arith.constant dense<0xFF800000> : vector<64xf32>
    %57 = vector.multi_reduction <maximumf>, %56, %cst_23 [1] : vector<64x64xf32> to vector<64xf32>
    %58 = vector.shape_cast %57 : vector<64xf32> to vector<64x1xf32>
    %59 = vector.broadcast %58 : vector<64x1xf32> to vector<64x64xf32>
    %60 = arith.subf %56, %59 : vector<64x64xf32>
    %61 = math.exp %60 : vector<64x64xf32>
    %cst_24 = arith.constant dense<0.000000e+00> : vector<64xf32>
    %62 = vector.multi_reduction <add>, %61, %cst_24 [1] : vector<64x64xf32> to vector<64xf32>
    %63 = vector.shape_cast %62 : vector<64xf32> to vector<64x1xf32>
    %64 = tpu.reciprocal %63 {approx = true} : vector<64x1xf32> -> vector<64x1xf32>
    %65 = vector.broadcast %64 : vector<64x1xf32> to vector<64x64xf32>
    %66 = arith.mulf %61, %65 : vector<64x64xf32>
    %67 = arith.truncf %66 : vector<64x64xf32> to vector<64x64xbf16>
    %68 = vector.extract_strided_slice %39 {offsets = [0, 0], sizes = [64, 128], strides = [1, 1]} : vector<128x128xbf16> to vector<64x128xbf16>
    %cst_25 = arith.constant dense<0.000000e+00> : vector<64x128xf32>
    %69 = tpu.matmul %67, %68, %cst_25 {dimension_numbers = #tpu.dot_dimension_numbers<[1], [0], [0], [1], [0, 0, 1, 1], [], []>} : vector<64x64xbf16>, vector<64x128xbf16>, vector<64x128xf32> -> vector<64x128xf32>
    %70 = arith.addf %52, %69 : vector<64x128xf32>
    %71 = vector.extract_strided_slice %29 {offsets = [0, 32], sizes = [64, 32], strides = [1, 1]} : vector<128x128xbf16> to vector<64x32xbf16>
    %72 = vector.extract_strided_slice %31 {offsets = [0, 32], sizes = [64, 32], strides = [1, 1]} : vector<128x128xbf16> to vector<64x32xbf16>
    %cst_26 = arith.constant dense<0.000000e+00> : vector<64x64xf32>
    %73 = tpu.matmul %71, %72, %cst_26 {dimension_numbers = #tpu.dot_dimension_numbers<[1], [1], [0], [0], [0, 0, 1, 0], [], []>} : vector<64x32xbf16>, vector<64x32xbf16>, vector<64x64xf32> -> vector<64x64xf32>
    %74 = arith.addf %73, %34 : vector<64x64xf32>
    %cst_27 = arith.constant dense<0xFF800000> : vector<64xf32>
    %75 = vector.multi_reduction <maximumf>, %74, %cst_27 [1] : vector<64x64xf32> to vector<64xf32>
    %76 = vector.shape_cast %75 : vector<64xf32> to vector<64x1xf32>
    %77 = vector.broadcast %76 : vector<64x1xf32> to vector<64x64xf32>
    %78 = arith.subf %74, %77 : vector<64x64xf32>
    %79 = math.exp %78 : vector<64x64xf32>
    %cst_28 = arith.constant dense<0.000000e+00> : vector<64xf32>
    %80 = vector.multi_reduction <add>, %79, %cst_28 [1] : vector<64x64xf32> to vector<64xf32>
    %81 = vector.shape_cast %80 : vector<64xf32> to vector<64x1xf32>
    %82 = tpu.reciprocal %81 {approx = true} : vector<64x1xf32> -> vector<64x1xf32>
    %83 = vector.broadcast %82 : vector<64x1xf32> to vector<64x64xf32>
    %84 = arith.mulf %79, %83 : vector<64x64xf32>
    %85 = arith.truncf %84 : vector<64x64xf32> to vector<64x64xbf16>
    %86 = vector.extract_strided_slice %43 {offsets = [0, 0], sizes = [64, 128], strides = [1, 1]} : vector<128x128xbf16> to vector<64x128xbf16>
    %cst_29 = arith.constant dense<0.000000e+00> : vector<64x128xf32>
    %87 = tpu.matmul %85, %86, %cst_29 {dimension_numbers = #tpu.dot_dimension_numbers<[1], [0], [0], [1], [0, 0, 1, 1], [], []>} : vector<64x64xbf16>, vector<64x128xbf16>, vector<64x128xf32> -> vector<64x128xf32>
    %88 = arith.addf %70, %87 : vector<64x128xf32>
    %89 = vector.extract_strided_slice %29 {offsets = [0, 64], sizes = [64, 32], strides = [1, 1]} : vector<128x128xbf16> to vector<64x32xbf16>
    %90 = vector.extract_strided_slice %31 {offsets = [0, 64], sizes = [64, 32], strides = [1, 1]} : vector<128x128xbf16> to vector<64x32xbf16>
    %cst_30 = arith.constant dense<0.000000e+00> : vector<64x64xf32>
    %91 = tpu.matmul %89, %90, %cst_30 {dimension_numbers = #tpu.dot_dimension_numbers<[1], [1], [0], [0], [0, 0, 1, 0], [], []>} : vector<64x32xbf16>, vector<64x32xbf16>, vector<64x64xf32> -> vector<64x64xf32>
    %92 = arith.addf %91, %34 : vector<64x64xf32>
    %cst_31 = arith.constant dense<0xFF800000> : vector<64xf32>
    %93 = vector.multi_reduction <maximumf>, %92, %cst_31 [1] : vector<64x64xf32> to vector<64xf32>
    %94 = vector.shape_cast %93 : vector<64xf32> to vector<64x1xf32>
    %95 = vector.broadcast %94 : vector<64x1xf32> to vector<64x64xf32>
    %96 = arith.subf %92, %95 : vector<64x64xf32>
    %97 = math.exp %96 : vector<64x64xf32>
    %cst_32 = arith.constant dense<0.000000e+00> : vector<64xf32>
    %98 = vector.multi_reduction <add>, %97, %cst_32 [1] : vector<64x64xf32> to vector<64xf32>
    %99 = vector.shape_cast %98 : vector<64xf32> to vector<64x1xf32>
    %100 = tpu.reciprocal %99 {approx = true} : vector<64x1xf32> -> vector<64x1xf32>
    %101 = vector.broadcast %100 : vector<64x1xf32> to vector<64x64xf32>
    %102 = arith.mulf %97, %101 : vector<64x64xf32>
    %103 = arith.truncf %102 : vector<64x64xf32> to vector<64x64xbf16>
    %104 = vector.extract_strided_slice %47 {offsets = [0, 0], sizes = [64, 128], strides = [1, 1]} : vector<128x128xbf16> to vector<64x128xbf16>
    %cst_33 = arith.constant dense<0.000000e+00> : vector<64x128xf32>
    %105 = tpu.matmul %103, %104, %cst_33 {dimension_numbers = #tpu.dot_dimension_numbers<[1], [0], [0], [1], [0, 0, 1, 1], [], []>} : vector<64x64xbf16>, vector<64x128xbf16>, vector<64x128xf32> -> vector<64x128xf32>
    %106 = arith.addf %88, %105 : vector<64x128xf32>
    %107 = vector.extract_strided_slice %29 {offsets = [0, 96], sizes = [64, 32], strides = [1, 1]} : vector<128x128xbf16> to vector<64x32xbf16>
    %108 = vector.extract_strided_slice %31 {offsets = [0, 96], sizes = [64, 32], strides = [1, 1]} : vector<128x128xbf16> to vector<64x32xbf16>
    %cst_34 = arith.constant dense<0.000000e+00> : vector<64x64xf32>
    %109 = tpu.matmul %107, %108, %cst_34 {dimension_numbers = #tpu.dot_dimension_numbers<[1], [1], [0], [0], [0, 0, 1, 0], [], []>} : vector<64x32xbf16>, vector<64x32xbf16>, vector<64x64xf32> -> vector<64x64xf32>
    %110 = arith.addf %109, %34 : vector<64x64xf32>
    %cst_35 = arith.constant dense<0xFF800000> : vector<64xf32>
    %111 = vector.multi_reduction <maximumf>, %110, %cst_35 [1] : vector<64x64xf32> to vector<64xf32>
    %112 = vector.shape_cast %111 : vector<64xf32> to vector<64x1xf32>
    %113 = vector.broadcast %112 : vector<64x1xf32> to vector<64x64xf32>
    %114 = arith.subf %110, %113 : vector<64x64xf32>
    %115 = math.exp %114 : vector<64x64xf32>
    %cst_36 = arith.constant dense<0.000000e+00> : vector<64xf32>
    %116 = vector.multi_reduction <add>, %115, %cst_36 [1] : vector<64x64xf32> to vector<64xf32>
    %117 = vector.shape_cast %116 : vector<64xf32> to vector<64x1xf32>
    %118 = tpu.reciprocal %117 {approx = true} : vector<64x1xf32> -> vector<64x1xf32>
    %119 = vector.broadcast %118 : vector<64x1xf32> to vector<64x64xf32>
    %120 = arith.mulf %115, %119 : vector<64x64xf32>
    %121 = arith.truncf %120 : vector<64x64xf32> to vector<64x64xbf16>
    %122 = vector.extract_strided_slice %51 {offsets = [0, 0], sizes = [64, 128], strides = [1, 1]} : vector<128x128xbf16> to vector<64x128xbf16>
    %cst_37 = arith.constant dense<0.000000e+00> : vector<64x128xf32>
    %123 = tpu.matmul %121, %122, %cst_37 {dimension_numbers = #tpu.dot_dimension_numbers<[1], [0], [0], [1], [0, 0, 1, 1], [], []>} : vector<64x64xbf16>, vector<64x128xbf16>, vector<64x128xf32> -> vector<64x128xf32>
    %124 = arith.addf %106, %123 : vector<64x128xf32>
    %cst_38 = arith.constant 0.000000e+00 : f32
    %125 = vector.broadcast %cst_38 : f32 to vector<64x128xf32>
    %126 = vector.extract_strided_slice %29 {offsets = [64, 0], sizes = [64, 32], strides = [1, 1]} : vector<128x128xbf16> to vector<64x32xbf16>
    %127 = vector.extract_strided_slice %31 {offsets = [64, 0], sizes = [64, 32], strides = [1, 1]} : vector<128x128xbf16> to vector<64x32xbf16>
    %cst_39 = arith.constant dense<0.000000e+00> : vector<64x64xf32>
    %128 = tpu.matmul %126, %127, %cst_39 {dimension_numbers = #tpu.dot_dimension_numbers<[1], [1], [0], [0], [0, 0, 1, 0], [], []>} : vector<64x32xbf16>, vector<64x32xbf16>, vector<64x64xf32> -> vector<64x64xf32>
    %129 = arith.addf %128, %34 : vector<64x64xf32>
    %cst_40 = arith.constant dense<0xFF800000> : vector<64xf32>
    %130 = vector.multi_reduction <maximumf>, %129, %cst_40 [1] : vector<64x64xf32> to vector<64xf32>
    %131 = vector.shape_cast %130 : vector<64xf32> to vector<64x1xf32>
    %132 = vector.broadcast %131 : vector<64x1xf32> to vector<64x64xf32>
    %133 = arith.subf %129, %132 : vector<64x64xf32>
    %134 = math.exp %133 : vector<64x64xf32>
    %cst_41 = arith.constant dense<0.000000e+00> : vector<64xf32>
    %135 = vector.multi_reduction <add>, %134, %cst_41 [1] : vector<64x64xf32> to vector<64xf32>
    %136 = vector.shape_cast %135 : vector<64xf32> to vector<64x1xf32>
    %137 = tpu.reciprocal %136 {approx = true} : vector<64x1xf32> -> vector<64x1xf32>
    %138 = vector.broadcast %137 : vector<64x1xf32> to vector<64x64xf32>
    %139 = arith.mulf %134, %138 : vector<64x64xf32>
    %140 = arith.truncf %139 : vector<64x64xf32> to vector<64x64xbf16>
    %141 = vector.extract_strided_slice %39 {offsets = [64, 0], sizes = [64, 128], strides = [1, 1]} : vector<128x128xbf16> to vector<64x128xbf16>
    %cst_42 = arith.constant dense<0.000000e+00> : vector<64x128xf32>
    %142 = tpu.matmul %140, %141, %cst_42 {dimension_numbers = #tpu.dot_dimension_numbers<[1], [0], [0], [1], [0, 0, 1, 1], [], []>} : vector<64x64xbf16>, vector<64x128xbf16>, vector<64x128xf32> -> vector<64x128xf32>
    %143 = arith.addf %125, %142 : vector<64x128xf32>
    %144 = vector.extract_strided_slice %29 {offsets = [64, 32], sizes = [64, 32], strides = [1, 1]} : vector<128x128xbf16> to vector<64x32xbf16>
    %145 = vector.extract_strided_slice %31 {offsets = [64, 32], sizes = [64, 32], strides = [1, 1]} : vector<128x128xbf16> to vector<64x32xbf16>
    %cst_43 = arith.constant dense<0.000000e+00> : vector<64x64xf32>
    %146 = tpu.matmul %144, %145, %cst_43 {dimension_numbers = #tpu.dot_dimension_numbers<[1], [1], [0], [0], [0, 0, 1, 0], [], []>} : vector<64x32xbf16>, vector<64x32xbf16>, vector<64x64xf32> -> vector<64x64xf32>
    %147 = arith.addf %146, %34 : vector<64x64xf32>
    %cst_44 = arith.constant dense<0xFF800000> : vector<64xf32>
    %148 = vector.multi_reduction <maximumf>, %147, %cst_44 [1] : vector<64x64xf32> to vector<64xf32>
    %149 = vector.shape_cast %148 : vector<64xf32> to vector<64x1xf32>
    %150 = vector.broadcast %149 : vector<64x1xf32> to vector<64x64xf32>
    %151 = arith.subf %147, %150 : vector<64x64xf32>
    %152 = math.exp %151 : vector<64x64xf32>
    %cst_45 = arith.constant dense<0.000000e+00> : vector<64xf32>
    %153 = vector.multi_reduction <add>, %152, %cst_45 [1] : vector<64x64xf32> to vector<64xf32>
    %154 = vector.shape_cast %153 : vector<64xf32> to vector<64x1xf32>
    %155 = tpu.reciprocal %154 {approx = true} : vector<64x1xf32> -> vector<64x1xf32>
    %156 = vector.broadcast %155 : vector<64x1xf32> to vector<64x64xf32>
    %157 = arith.mulf %152, %156 : vector<64x64xf32>
    %158 = arith.truncf %157 : vector<64x64xf32> to vector<64x64xbf16>
    %159 = vector.extract_strided_slice %43 {offsets = [64, 0], sizes = [64, 128], strides = [1, 1]} : vector<128x128xbf16> to vector<64x128xbf16>
    %cst_46 = arith.constant dense<0.000000e+00> : vector<64x128xf32>
    %160 = tpu.matmul %158, %159, %cst_46 {dimension_numbers = #tpu.dot_dimension_numbers<[1], [0], [0], [1], [0, 0, 1, 1], [], []>} : vector<64x64xbf16>, vector<64x128xbf16>, vector<64x128xf32> -> vector<64x128xf32>
    %161 = arith.addf %143, %160 : vector<64x128xf32>
    %162 = vector.extract_strided_slice %29 {offsets = [64, 64], sizes = [64, 32], strides = [1, 1]} : vector<128x128xbf16> to vector<64x32xbf16>
    %163 = vector.extract_strided_slice %31 {offsets = [64, 64], sizes = [64, 32], strides = [1, 1]} : vector<128x128xbf16> to vector<64x32xbf16>
    %cst_47 = arith.constant dense<0.000000e+00> : vector<64x64xf32>
    %164 = tpu.matmul %162, %163, %cst_47 {dimension_numbers = #tpu.dot_dimension_numbers<[1], [1], [0], [0], [0, 0, 1, 0], [], []>} : vector<64x32xbf16>, vector<64x32xbf16>, vector<64x64xf32> -> vector<64x64xf32>
    %165 = arith.addf %164, %34 : vector<64x64xf32>
    %cst_48 = arith.constant dense<0xFF800000> : vector<64xf32>
    %166 = vector.multi_reduction <maximumf>, %165, %cst_48 [1] : vector<64x64xf32> to vector<64xf32>
    %167 = vector.shape_cast %166 : vector<64xf32> to vector<64x1xf32>
    %168 = vector.broadcast %167 : vector<64x1xf32> to vector<64x64xf32>
    %169 = arith.subf %165, %168 : vector<64x64xf32>
    %170 = math.exp %169 : vector<64x64xf32>
    %cst_49 = arith.constant dense<0.000000e+00> : vector<64xf32>
    %171 = vector.multi_reduction <add>, %170, %cst_49 [1] : vector<64x64xf32> to vector<64xf32>
    %172 = vector.shape_cast %171 : vector<64xf32> to vector<64x1xf32>
    %173 = tpu.reciprocal %172 {approx = true} : vector<64x1xf32> -> vector<64x1xf32>
    %174 = vector.broadcast %173 : vector<64x1xf32> to vector<64x64xf32>
    %175 = arith.mulf %170, %174 : vector<64x64xf32>
    %176 = arith.truncf %175 : vector<64x64xf32> to vector<64x64xbf16>
    %177 = vector.extract_strided_slice %47 {offsets = [64, 0], sizes = [64, 128], strides = [1, 1]} : vector<128x128xbf16> to vector<64x128xbf16>
    %cst_50 = arith.constant dense<0.000000e+00> : vector<64x128xf32>
    %178 = tpu.matmul %176, %177, %cst_50 {dimension_numbers = #tpu.dot_dimension_numbers<[1], [0], [0], [1], [0, 0, 1, 1], [], []>} : vector<64x64xbf16>, vector<64x128xbf16>, vector<64x128xf32> -> vector<64x128xf32>
    %179 = arith.addf %161, %178 : vector<64x128xf32>
    %180 = vector.extract_strided_slice %29 {offsets = [64, 96], sizes = [64, 32], strides = [1, 1]} : vector<128x128xbf16> to vector<64x32xbf16>
    %181 = vector.extract_strided_slice %31 {offsets = [64, 96], sizes = [64, 32], strides = [1, 1]} : vector<128x128xbf16> to vector<64x32xbf16>
    %cst_51 = arith.constant dense<0.000000e+00> : vector<64x64xf32>
    %182 = tpu.matmul %180, %181, %cst_51 {dimension_numbers = #tpu.dot_dimension_numbers<[1], [1], [0], [0], [0, 0, 1, 0], [], []>} : vector<64x32xbf16>, vector<64x32xbf16>, vector<64x64xf32> -> vector<64x64xf32>
    %183 = arith.addf %182, %34 : vector<64x64xf32>
    %cst_52 = arith.constant dense<0xFF800000> : vector<64xf32>
    %184 = vector.multi_reduction <maximumf>, %183, %cst_52 [1] : vector<64x64xf32> to vector<64xf32>
    %185 = vector.shape_cast %184 : vector<64xf32> to vector<64x1xf32>
    %186 = vector.broadcast %185 : vector<64x1xf32> to vector<64x64xf32>
    %187 = arith.subf %183, %186 : vector<64x64xf32>
    %188 = math.exp %187 : vector<64x64xf32>
    %cst_53 = arith.constant dense<0.000000e+00> : vector<64xf32>
    %189 = vector.multi_reduction <add>, %188, %cst_53 [1] : vector<64x64xf32> to vector<64xf32>
    %190 = vector.shape_cast %189 : vector<64xf32> to vector<64x1xf32>
    %191 = tpu.reciprocal %190 {approx = true} : vector<64x1xf32> -> vector<64x1xf32>
    %192 = vector.broadcast %191 : vector<64x1xf32> to vector<64x64xf32>
    %193 = arith.mulf %188, %192 : vector<64x64xf32>
    %194 = arith.truncf %193 : vector<64x64xf32> to vector<64x64xbf16>
    %195 = vector.extract_strided_slice %51 {offsets = [64, 0], sizes = [64, 128], strides = [1, 1]} : vector<128x128xbf16> to vector<64x128xbf16>
    %cst_54 = arith.constant dense<0.000000e+00> : vector<64x128xf32>
    %196 = tpu.matmul %194, %195, %cst_54 {dimension_numbers = #tpu.dot_dimension_numbers<[1], [0], [0], [1], [0, 0, 1, 1], [], []>} : vector<64x64xbf16>, vector<64x128xbf16>, vector<64x128xf32> -> vector<64x128xf32>
    %197 = arith.addf %179, %196 : vector<64x128xf32>
    %198 = tpu.concatenate %124, %197 in 0 : vector<64x128xf32>, vector<64x128xf32> -> vector<128x128xf32>
    %199 = arith.addf %0, %198 : vector<128x128xf32>
    %c0_55 = arith.constant 0 : index
    %c0_56 = arith.constant 0 : index
    %200 = vector.load %arg7[%c0_55, %c0_56] : memref<1x128xf32, #tpu.memory_space<vmem>>, vector<1x128xf32>
    %201 = vector.broadcast %200 : vector<1x128xf32> to vector<128x128xf32>
    %202 = arith.addf %199, %201 : vector<128x128xf32>
    %cst_57 = arith.constant dense<0.000000e+00> : vector<128xf32>
    %203 = vector.multi_reduction <add>, %202, %cst_57 [1] : vector<128x128xf32> to vector<128xf32>
    %204 = vector.shape_cast %203 : vector<128xf32> to vector<128x1xf32>
    %cst_58 = arith.constant 1.280000e+02 : f32
    %205 = vector.broadcast %cst_58 : f32 to vector<128x1xf32>
    %206 = arith.divf %204, %205 : vector<128x1xf32>
    %207 = vector.broadcast %206 : vector<128x1xf32> to vector<128x128xf32>
    %208 = arith.subf %202, %207 : vector<128x128xf32>
    %209 = arith.mulf %208, %208 : vector<128x128xf32>
    %cst_59 = arith.constant dense<0.000000e+00> : vector<128xf32>
    %210 = vector.multi_reduction <add>, %209, %cst_59 [1] : vector<128x128xf32> to vector<128xf32>
    %211 = vector.shape_cast %210 : vector<128xf32> to vector<128x1xf32>
    %cst_60 = arith.constant 1.280000e+02 : f32
    %212 = vector.broadcast %cst_60 : f32 to vector<128x1xf32>
    %213 = arith.divf %211, %212 : vector<128x1xf32>
    %cst_61 = arith.constant 9.99999974E-6 : f32
    %214 = vector.broadcast %cst_61 : f32 to vector<128x1xf32>
    %215 = arith.addf %213, %214 : vector<128x1xf32>
    %216 = math.rsqrt %215 : vector<128x1xf32>
    %217 = vector.broadcast %216 : vector<128x1xf32> to vector<128x128xf32>
    %218 = arith.mulf %208, %217 : vector<128x128xf32>
    %c0_62 = arith.constant 0 : index
    %c0_63 = arith.constant 0 : index
    %219 = vector.load %arg8[%c0_62, %c0_63] : memref<1x128xf32, #tpu.memory_space<vmem>>, vector<1x128xf32>
    %220 = vector.broadcast %219 : vector<1x128xf32> to vector<128x128xf32>
    %221 = arith.mulf %218, %220 : vector<128x128xf32>
    %c0_64 = arith.constant 0 : index
    %c0_65 = arith.constant 0 : index
    %222 = vector.load %arg9[%c0_64, %c0_65] : memref<1x128xf32, #tpu.memory_space<vmem>>, vector<1x128xf32>
    %223 = vector.broadcast %222 : vector<1x128xf32> to vector<128x128xf32>
    %224 = arith.addf %221, %223 : vector<128x128xf32>
    %225 = arith.truncf %224 : vector<128x128xf32> to vector<128x128xbf16>
    %c0_66 = arith.constant 0 : index
    %c0_67 = arith.constant 0 : index
    %226 = vector.load %arg10[%c0_66, %c0_67] : memref<128x512xbf16, #tpu.memory_space<vmem>>, vector<128x512xbf16>
    %cst_68 = arith.constant dense<0.000000e+00> : vector<128x512xf32>
    %227 = tpu.matmul %225, %226, %cst_68 {dimension_numbers = #tpu.dot_dimension_numbers<[1], [0], [0], [1], [0, 0, 1, 1], [], []>} : vector<128x128xbf16>, vector<128x512xbf16>, vector<128x512xf32> -> vector<128x512xf32>
    %c0_69 = arith.constant 0 : index
    %c0_70 = arith.constant 0 : index
    %228 = vector.load %arg11[%c0_69, %c0_70] : memref<1x512xf32, #tpu.memory_space<vmem>>, vector<1x512xf32>
    %229 = vector.broadcast %228 : vector<1x512xf32> to vector<128x512xf32>
    %230 = arith.addf %227, %229 : vector<128x512xf32>
    %cst_71 = arith.constant 5.000000e-01 : f32
    %231 = vector.broadcast %cst_71 : f32 to vector<128x512xf32>
    %232 = arith.mulf %231, %230 : vector<128x512xf32>
    %cst_72 = arith.constant 0.707106769 : f32
    %233 = vector.broadcast %cst_72 : f32 to vector<128x512xf32>
    %234 = arith.mulf %230, %233 : vector<128x512xf32>
    %235 = math.erf %234 : vector<128x512xf32>
    %cst_73 = arith.constant 1.000000e+00 : f32
    %236 = vector.broadcast %cst_73 : f32 to vector<128x512xf32>
    %237 = arith.addf %236, %235 : vector<128x512xf32>
    %238 = arith.mulf %232, %237 : vector<128x512xf32>
    %239 = arith.truncf %238 : vector<128x512xf32> to vector<128x512xbf16>
    %c0_74 = arith.constant 0 : index
    %c0_75 = arith.constant 0 : index
    %240 = vector.load %arg12[%c0_74, %c0_75] : memref<512x128xbf16, #tpu.memory_space<vmem>>, vector<512x128xbf16>
    %cst_76 = arith.constant dense<0.000000e+00> : vector<128x128xf32>
    %241 = tpu.matmul %239, %240, %cst_76 {dimension_numbers = #tpu.dot_dimension_numbers<[1], [0], [0], [1], [0, 0, 1, 1], [], []>} : vector<128x512xbf16>, vector<512x128xbf16>, vector<128x128xf32> -> vector<128x128xf32>
    %242 = arith.addf %202, %241 : vector<128x128xf32>
    %c0_77 = arith.constant 0 : index
    %c0_78 = arith.constant 0 : index
    %243 = vector.load %arg13[%c0_77, %c0_78] : memref<1x128xf32, #tpu.memory_space<vmem>>, vector<1x128xf32>
    %244 = vector.broadcast %243 : vector<1x128xf32> to vector<128x128xf32>
    %245 = arith.addf %242, %244 : vector<128x128xf32>
    %c0_79 = arith.constant 0 : index
    %c0_80 = arith.constant 0 : index
    %246 = vector.load %arg14[%c0_79, %c0_80] : memref<128x128xf32, #tpu.memory_space<vmem>>, vector<128x128xf32>
    tpu.vector_store %arg14[%c0_79, %c0_80], %245 {strides = array<i32>} : memref<128x128xf32, #tpu.memory_space<vmem>>, vector<128x128xf32>,
    return
  }
  func.func @transform_0(%arg0: i32) -> (i32, i32) {
    %c0_i32 = arith.constant 0 : i32
    %c0_i32_0 = arith.constant 0 : i32
    return %arg0, %c0_i32 : i32, i32
  }
  func.func @transform_1(%arg0: i32) -> (i32, i32) {
    %c0_i32 = arith.constant 0 : i32
    %c0_i32_0 = arith.constant 0 : i32
    %c0_i32_1 = arith.constant 0 : i32
    return %c0_i32, %c0_i32_0 : i32, i32
  }
  func.func @transform_2(%arg0: i32) -> (i32, i32) {
    %c0_i32 = arith.constant 0 : i32
    %c0_i32_0 = arith.constant 0 : i32
    %c0_i32_1 = arith.constant 0 : i32
    return %c0_i32, %c0_i32_0 : i32, i32
  }
  func.func @transform_3(%arg0: i32) -> (i32, i32) {
    %c0_i32 = arith.constant 0 : i32
    %c0_i32_0 = arith.constant 0 : i32
    %c0_i32_1 = arith.constant 0 : i32
    return %c0_i32, %c0_i32_0 : i32, i32
  }
  func.func @transform_4(%arg0: i32) -> (i32, i32) {
    %c0_i32 = arith.constant 0 : i32
    %c0_i32_0 = arith.constant 0 : i32
    %c0_i32_1 = arith.constant 0 : i32
    return %c0_i32, %c0_i32_0 : i32, i32
  }
  func.func @transform_5(%arg0: i32) -> (i32, i32) {
    %c0_i32 = arith.constant 0 : i32
    %c0_i32_0 = arith.constant 0 : i32
    %c0_i32_1 = arith.constant 0 : i32
    return %c0_i32, %c0_i32_0 : i32, i32
  }
  func.func @transform_6(%arg0: i32) -> (i32, i32) {
    %c0_i32 = arith.constant 0 : i32
    %c0_i32_0 = arith.constant 0 : i32
    %c0_i32_1 = arith.constant 0 : i32
    return %c0_i32, %c0_i32_0 : i32, i32
  }
  func.func @transform_7(%arg0: i32) -> (i32, i32) {
    %c0_i32 = arith.constant 0 : i32
    %c0_i32_0 = arith.constant 0 : i32
    %c0_i32_1 = arith.constant 0 : i32
    return %c0_i32, %c0_i32_0 : i32, i32
  }
  func.func @transform_8(%arg0: i32) -> (i32, i32) {
    %c0_i32 = arith.constant 0 : i32
    %c0_i32_0 = arith.constant 0 : i32
    %c0_i32_1 = arith.constant 0 : i32
    return %c0_i32, %c0_i32_0 : i32, i32
  }
  func.func @transform_9(%arg0: i32) -> (i32, i32) {
    %c0_i32 = arith.constant 0 : i32
    %c0_i32_0 = arith.constant 0 : i32
    %c0_i32_1 = arith.constant 0 : i32
    return %c0_i32, %c0_i32_0 : i32, i32
  }
  func.func @transform_10(%arg0: i32) -> (i32, i32) {
    %c0_i32 = arith.constant 0 : i32
    %c0_i32_0 = arith.constant 0 : i32
    %c0_i32_1 = arith.constant 0 : i32
    return %c0_i32, %c0_i32_0 : i32, i32
  }
  func.func @transform_11(%arg0: i32) -> (i32, i32) {
    %c0_i32 = arith.constant 0 : i32
    %c0_i32_0 = arith.constant 0 : i32
    %c0_i32_1 = arith.constant 0 : i32
    return %c0_i32, %c0_i32_0 : i32, i32
  }
  func.func @transform_12(%arg0: i32) -> (i32, i32) {
    %c0_i32 = arith.constant 0 : i32
    %c0_i32_0 = arith.constant 0 : i32
    %c0_i32_1 = arith.constant 0 : i32
    return %c0_i32, %c0_i32_0 : i32, i32
  }
  func.func @transform_13(%arg0: i32) -> (i32, i32) {
    %c0_i32 = arith.constant 0 : i32
    %c0_i32_0 = arith.constant 0 : i32
    return %arg0, %c0_i32 : i32, i32
  }
}

</mosaic_0001>

<llo_original>
// kernel: block_forward.1
$region0: #{block_forward.1}
  #allocation0 [shape = 'u32[]', space=smem, size = 0x4, offset = 0x4, fixed_abs, tag = 'smem constant byte address 0x4 - core index']
  #allocation1 [shape = 'u32[144,128]{1,0:T(1,128)}', space=vmem, size = 0x12000, scoped, tag = 'internal scratch']
  %s0 = inlined_call_operand.vmem [shape: f32[128,128], index: 0, kind: input, shape index: {}, may-alias: {0,13}]
  %s1 = inlined_call_operand.vmem [shape: f32[64,64], index: 1, kind: input, shape index: {}]
  %s2 = inlined_call_operand.vmem [shape: f32[1,128], index: 2, kind: input, shape index: {}]
  %s3 = inlined_call_operand.vmem [shape: f32[1,128], index: 3, kind: input, shape index: {}]
  %s4 = inlined_call_operand.vmem [shape: bf16[128,384], index: 4, kind: input, shape index: {}]
  %s5 = inlined_call_operand.hbm [shape: bf16[128,128], index: 5, kind: input, shape index: {}]
  %s6 = inlined_call_operand.vmem [shape: f32[1,128], index: 6, kind: input, shape index: {}]
  %s7 = inlined_call_operand.vmem [shape: f32[1,128], index: 7, kind: input, shape index: {}]
  %s8 = inlined_call_operand.vmem [shape: f32[1,128], index: 8, kind: input, shape index: {}]
  %s9 = inlined_call_operand.hbm [shape: bf16[128,512], index: 9, kind: input, shape index: {}]
  %s10 = inlined_call_operand.vmem [shape: f32[1,512], index: 10, kind: input, shape index: {}]
  %s11 = inlined_call_operand.hbm [shape: bf16[512,128], index: 11, kind: input, shape index: {}]
  %s12 = inlined_call_operand.vmem [shape: f32[1,128], index: 12, kind: input, shape index: {}]
  %s13 = inlined_call_operand.vmem [shape: f32[128,128], index: 13, kind: output, shape index: {}, may-alias: {0,13}]
  %s14 = sld [smem:[#allocation0]]
  $region74: #{block_forward.1} parent=0
    _
  %s16 = ssub.s32 1, %s14
  %s17 = scalar_select 0, %s16, %s14
  $region1: #{block_forward.1} parent=0
    #allocation2 [shape = 'u8[32768]{0}', space=vmem, size = 0x8000, scoped, tag = 'input window, operand 5, single buffered']
    #allocation3 [shape = 's32[1]{0}', space=sflag, size = 0x4, scoped, tag = 'scoped memory for block_forward.1']
    #allocation4 [shape = 'u8[131072]{0}', space=vmem, size = 0x20000, scoped, tag = 'input window, operand 9, single buffered']
    #allocation5 [shape = 's32[1]{0}', space=sflag, size = 0x4, scoped, tag = 'scoped memory for block_forward.1']
    #allocation6 [shape = 'u8[131072]{0}', space=vmem, size = 0x20000, scoped, tag = 'input window, operand 11, single buffered']
    %18 = vsyncpa [#allocation3], 0
    %19 = vsyncpa [#allocation5], 0
    // Predicated region
    $region2: #{block_forward.1} parent=1 // pred_check
      _
    $region3: #{block_forward.1} parent=1 // pred_check_branch
      %21 = sbr.rel (0) target = $region5
    $region4: #{block_forward.1} parent=1 // pred_region
      _
    $region5: #{block_forward.1} parent=1 // pred_fallthru
      _
    // Predicated region
    $region6: #{block_forward.1} parent=1 // pred_check
      _
    $region7: #{block_forward.1} parent=1 // pred_check_branch
      %23 = sbr.rel (0) target = $region9
    $region8: #{block_forward.1} parent=1 // pred_region
      _
    $region9: #{block_forward.1} parent=1 // pred_fallthru
      _
    // Predicated region
    $region10: #{block_forward.1} parent=1 // pred_check
      _
    $region11: #{block_forward.1} parent=1 // pred_check_branch
      %25 = sbr.rel (0) target = $region13
    $region12: #{block_forward.1} parent=1 // pred_region
      _
    $region13: #{block_forward.1} parent=1 // pred_fallthru
      _
    // Predicated region
    $region14: #{block_forward.1} parent=1 // pred_check
      _
    $region15: #{block_forward.1} parent=1 // pred_check_branch
      %27 = sbr.rel (0) target = $region17
    $region16: #{block_forward.1} parent=1 // pred_region
      _
    $region17: #{block_forward.1} parent=1 // pred_fallthru
      _
    // Predicated region
    $region18: #{block_forward.1} parent=1 // pred_check
      _
    $region19: #{block_forward.1} parent=1 // pred_check_branch
      %29 = sbr.rel (0) target = $region21
    $region20: #{block_forward.1} parent=1 // pred_region
      _
    $region21: #{block_forward.1} parent=1 // pred_fallthru
      _
    // Predicated region
    $region22: #{block_forward.1} parent=1 // pred_check
      _
    $region23: #{block_forward.1} parent=1 // pred_check_branch
      %31 = sbr.rel (0) target = $region25
    $region24: #{block_forward.1} parent=1 // pred_region
      %s33 = ssub.s32 1024, 1024
      %34 = vsyncadd [#allocation3], %s33
      %s35 = sshll.u32 [#allocation2], 4
      %s36 = int_to_ptr.vmem [resolvable:$true] %s35
      %41 = dma.hbm_to_vmem [thread:$0]  %s5, 1024, %s36, [#allocation3], 64, 64, 4
    $region25: #{block_forward.1} parent=1 // pred_fallthru
      _
    // Predicated region
    $region26: #{block_forward.1} parent=1 // pred_check
      _
    $region27: #{block_forward.1} parent=1 // pred_check_branch
      %43 = sbr.rel (0) target = $region29
    $region28: #{block_forward.1} parent=1 // pred_region
      _
    $region29: #{block_forward.1} parent=1 // pred_fallthru
      _
    // Predicated region
    $region30: #{block_forward.1} parent=1 // pred_check
      _
    $region31: #{block_forward.1} parent=1 // pred_check_branch
      %45 = sbr.rel (0) target = $region33
    $region32: #{block_forward.1} parent=1 // pred_region
      _
    $region33: #{block_forward.1} parent=1 // pred_fallthru
      _
    // Predicated region
    $region34: #{block_forward.1} parent=1 // pred_check
      _
    $region35: #{block_forward.1} parent=1 // pred_check_branch
      %47 = sbr.rel (0) target = $region37
    $region36: #{block_forward.1} parent=1 // pred_region
      _
    $region37: #{block_forward.1} parent=1 // pred_fallthru
      _
    // Predicated region
    $region38: #{block_forward.1} parent=1 // pred_check
      _
    $region39: #{block_forward.1} parent=1 // pred_check_branch
      %49 = sbr.rel (0) target = $region41
    $region40: #{block_forward.1} parent=1 // pred_region
      %s51 = ssub.s32 4096, 4096
      %52 = vsyncadd [#allocation5], %s51
      %s53 = sshll.u32 [#allocation4], 4
      %s54 = int_to_ptr.vmem [resolvable:$true] %s53
      %59 = dma.hbm_to_vmem [thread:$0]  %s9, 4096, %s54, [#allocation5], 256, 256, 16
    $region41: #{block_forward.1} parent=1 // pred_fallthru
      _
    // Predicated region
    $region42: #{block_forward.1} parent=1 // pred_check
      _
    $region43: #{block_forward.1} parent=1 // pred_check_branch
      %61 = sbr.rel (0) target = $region45
    $region44: #{block_forward.1} parent=1 // pred_region
      _
    $region45: #{block_forward.1} parent=1 // pred_fallthru
      _
    // Predicated region
    $region46: #{block_forward.1} parent=1 // pred_check
      _
    $region47: #{block_forward.1} parent=1 // pred_check_branch
      %63 = sbr.rel (0) target = $region49
    $region48: #{block_forward.1} parent=1 // pred_region
      %s65 = ssub.s32 4096, 4096
      %66 = vsyncadd [#allocation5], %s65
      %s67 = sshll.u32 [#allocation6], 4
      %s68 = int_to_ptr.vmem [resolvable:$true] %s67
      %73 = dma.hbm_to_vmem [thread:$0]  %s11, 4096, %s68, [#allocation5], 64, 64, 4
    $region49: #{block_forward.1} parent=1 // pred_fallthru
      _
    // Predicated region
    $region50: #{block_forward.1} parent=1 // pred_check
      _
    $region51: #{block_forward.1} parent=1 // pred_check_branch
      %75 = sbr.rel (0) target = $region53
    $region52: #{block_forward.1} parent=1 // pred_region
      _
    $region53: #{block_forward.1} parent=1 // pred_fallthru
      _
    // Predicated region
    $region54: #{block_forward.1} parent=1 // pred_check
      _
    $region55: #{block_forward.1} parent=1 // pred_check_branch
      %77 = sbr.rel (0) target = $region57
    $region56: #{block_forward.1} parent=1 // pred_region
      %78 = dma.done [#allocation3], 1024
    $region57: #{block_forward.1} parent=1 // pred_fallthru
      _
    // Predicated region
    $region58: #{block_forward.1} parent=1 // pred_check
      _
    $region59: #{block_forward.1} parent=1 // pred_check_branch
      %80 = sbr.rel (0) target = $region61
    $region60: #{block_forward.1} parent=1 // pred_region
      %81 = dma.done [#allocation5], 4096
    $region61: #{block_forward.1} parent=1 // pred_fallthru
      _
    // Predicated region
    $region62: #{block_forward.1} parent=1 // pred_check
      _
    $region63: #{block_forward.1} parent=1 // pred_check_branch
      %83 = sbr.rel (0) target = $region65
    $region64: #{block_forward.1} parent=1 // pred_region
      %84 = dma.done [#allocation5], 4096
    $region65: #{block_forward.1} parent=1 // pred_fallthru
      _
    %v86 = vld [vmem:[%s0] sm:$0xff]
    %v87 = vld [vmem:[%s0 + $0x8] sm:$0xff]
    %v88 = vld [vmem:[%s0 + $0x10] sm:$0xff]
    %v89 = vld [vmem:[%s0 + $0x18] sm:$0xff]
    %v90 = vld [vmem:[%s0 + $0x20] sm:$0xff]
    %v91 = vld [vmem:[%s0 + $0x28] sm:$0xff]
    %v92 = vld [vmem:[%s0 + $0x30] sm:$0xff]
    %v93 = vld [vmem:[%s0 + $0x38] sm:$0xff]
    %v94 = vld [vmem:[%s0 + $0x40] sm:$0xff]
    %v95 = vld [vmem:[%s0 + $0x48] sm:$0xff]
    %v96 = vld [vmem:[%s0 + $0x50] sm:$0xff]
    %v97 = vld [vmem:[%s0 + $0x58] sm:$0xff]
    %v98 = vld [vmem:[%s0 + $0x60] sm:$0xff]
    %v99 = vld [vmem:[%s0 + $0x68] sm:$0xff]
    %v100 = vld [vmem:[%s0 + $0x70] sm:$0xff]
    %v101 = vld [vmem:[%s0 + $0x78] sm:$0xff]
    %102 = vadd.xlane.f32.xlu0 %v86
    %v103 = vpop.xlane.xlu0 %102
    %104 = vadd.xlane.f32.xlu0 %v87
    %v105 = vpop.xlane.xlu0 %104
    %106 = vadd.xlane.f32.xlu0 %v88
    %v107 = vpop.xlane.xlu0 %106
    %108 = vadd.xlane.f32.xlu0 %v89
    %v109 = vpop.xlane.xlu0 %108
    %110 = vadd.xlane.f32.xlu0 %v90
    %v111 = vpop.xlane.xlu0 %110
    %112 = vadd.xlane.f32.xlu0 %v91
    %v113 = vpop.xlane.xlu0 %112
    %114 = vadd.xlane.f32.xlu0 %v92
    %v115 = vpop.xlane.xlu0 %114
    %116 = vadd.xlane.f32.xlu0 %v93
    %v117 = vpop.xlane.xlu0 %116
    %118 = vadd.xlane.f32.xlu0 %v94
    %v119 = vpop.xlane.xlu0 %118
    %120 = vadd.xlane.f32.xlu0 %v95
    %v121 = vpop.xlane.xlu0 %120
    %122 = vadd.xlane.f32.xlu0 %v96
    %v123 = vpop.xlane.xlu0 %122
    %124 = vadd.xlane.f32.xlu0 %v97
    %v125 = vpop.xlane.xlu0 %124
    %126 = vadd.xlane.f32.xlu0 %v98
    %v127 = vpop.xlane.xlu0 %126
    %128 = vadd.xlane.f32.xlu0 %v99
    %v129 = vpop.xlane.xlu0 %128
    %130 = vadd.xlane.f32.xlu0 %v100
    %v131 = vpop.xlane.xlu0 %130
    %132 = vadd.xlane.f32.xlu0 %v101
    %v133 = vpop.xlane.xlu0 %132
    %v134 = vrcp.pop 128.0
    %v135 = vmul.f32 %v103, %v134
    %v136 = vmul.f32 %v105, %v134
    %v137 = vmul.f32 %v107, %v134
    %v138 = vmul.f32 %v109, %v134
    %v139 = vmul.f32 %v111, %v134
    %v140 = vmul.f32 %v113, %v134
    %v141 = vmul.f32 %v115, %v134
    %v142 = vmul.f32 %v117, %v134
    %v143 = vmul.f32 %v119, %v134
    %v144 = vmul.f32 %v121, %v134
    %v145 = vmul.f32 %v123, %v134
    %v146 = vmul.f32 %v125, %v134
    %v147 = vmul.f32 %v127, %v134
    %v148 = vmul.f32 %v129, %v134
    %v149 = vmul.f32 %v131, %v134
    %v150 = vmul.f32 %v133, %v134
    %v151 = vsub.f32 %v86, %v135
    %v152 = vsub.f32 %v87, %v136
    %v153 = vsub.f32 %v88, %v137
    %v154 = vsub.f32 %v89, %v138
    %v155 = vsub.f32 %v90, %v139
    %v156 = vsub.f32 %v91, %v140
    %v157 = vsub.f32 %v92, %v141
    %v158 = vsub.f32 %v93, %v142
    %v159 = vsub.f32 %v94, %v143
    %v160 = vsub.f32 %v95, %v144
    %v161 = vsub.f32 %v96, %v145
    %v162 = vsub.f32 %v97, %v146
    %v163 = vsub.f32 %v98, %v147
    %v164 = vsub.f32 %v99, %v148
    %v165 = vsub.f32 %v100, %v149
    %v166 = vsub.f32 %v101, %v150
    %v167 = vmul.f32 %v151, %v151
    %v168 = vmul.f32 %v152, %v152
    %v169 = vmul.f32 %v153, %v153
    %v170 = vmul.f32 %v154, %v154
    %v171 = vmul.f32 %v155, %v155
    %v172 = vmul.f32 %v156, %v156
    %v173 = vmul.f32 %v157, %v157
    %v174 = vmul.f32 %v158, %v158
    %v175 = vmul.f32 %v159, %v159
    %v176 = vmul.f32 %v160, %v160
    %v177 = vmul.f32 %v161, %v161
    %v178 = vmul.f32 %v162, %v162
    %v179 = vmul.f32 %v163, %v163
    %v180 = vmul.f32 %v164, %v164
    %v181 = vmul.f32 %v165, %v165
    %v182 = vmul.f32 %v166, %v166
    %183 = vadd.xlane.f32.xlu0 %v167
    %v184 = vpop.xlane.xlu0 %183
    %185 = vadd.xlane.f32.xlu0 %v168
    %v186 = vpop.xlane.xlu0 %185
    %187 = vadd.xlane.f32.xlu0 %v169
    %v188 = vpop.xlane.xlu0 %187
    %189 = vadd.xlane.f32.xlu0 %v170
    %v190 = vpop.xlane.xlu0 %189
    %191 = vadd.xlane.f32.xlu0 %v171
    %v192 = vpop.xlane.xlu0 %191
    %193 = vadd.xlane.f32.xlu0 %v172
    %v194 = vpop.xlane.xlu0 %193
    %195 = vadd.xlane.f32.xlu0 %v173
    %v196 = vpop.xlane.xlu0 %195
    %197 = vadd.xlane.f32.xlu0 %v174
    %v198 = vpop.xlane.xlu0 %197
    %199 = vadd.xlane.f32.xlu0 %v175
    %v200 = vpop.xlane.xlu0 %199
    %201 = vadd.xlane.f32.xlu0 %v176
    %v202 = vpop.xlane.xlu0 %201
    %203 = vadd.xlane.f32.xlu0 %v177
    %v204 = vpop.xlane.xlu0 %203
    %205 = vadd.xlane.f32.xlu0 %v178
    %v206 = vpop.xlane.xlu0 %205
    %207 = vadd.xlane.f32.xlu0 %v179
    %v208 = vpop.xlane.xlu0 %207
    %209 = vadd.xlane.f32.xlu0 %v180
    %v210 = vpop.xlane.xlu0 %209
    %211 = vadd.xlane.f32.xlu0 %v181
    %v212 = vpop.xlane.xlu0 %211
    %213 = vadd.xlane.f32.xlu0 %v182
    %v214 = vpop.xlane.xlu0 %213
    %v215 = vmul.f32 %v184, %v134
    %v216 = vmul.f32 %v186, %v134
    %v217 = vmul.f32 %v188, %v134
    %v218 = vmul.f32 %v190, %v134
    %v219 = vmul.f32 %v192, %v134
    %v220 = vmul.f32 %v194, %v134
    %v221 = vmul.f32 %v196, %v134
    %v222 = vmul.f32 %v198, %v134
    %v223 = vmul.f32 %v200, %v134
    %v224 = vmul.f32 %v202, %v134
    %v225 = vmul.f32 %v204, %v134
    %v226 = vmul.f32 %v206, %v134
    %v227 = vmul.f32 %v208, %v134
    %v228 = vmul.f32 %v210, %v134
    %v229 = vmul.f32 %v212, %v134
    %v230 = vmul.f32 %v214, %v134
    %v231 = vadd.f32 %v215, 1e-05
    %v232 = vadd.f32 %v216, 1e-05
    %v233 = vadd.f32 %v217, 1e-05
    %v234 = vadd.f32 %v218, 1e-05
    %v235 = vadd.f32 %v219, 1e-05
    %v236 = vadd.f32 %v220, 1e-05
    %v237 = vadd.f32 %v221, 1e-05
    %v238 = vadd.f32 %v222, 1e-05
    %v239 = vadd.f32 %v223, 1e-05
    %v240 = vadd.f32 %v224, 1e-05
    %v241 = vadd.f32 %v225, 1e-05
    %v242 = vadd.f32 %v226, 1e-05
    %v243 = vadd.f32 %v227, 1e-05
    %v244 = vadd.f32 %v228, 1e-05
    %v245 = vadd.f32 %v229, 1e-05
    %v246 = vadd.f32 %v230, 1e-05
    %v247 = vrsqrt.pop %v231
    %v248 = vrsqrt.pop %v232
    %v249 = vrsqrt.pop %v233
    %v250 = vrsqrt.pop %v234
    %v251 = vrsqrt.pop %v235
    %v252 = vrsqrt.pop %v236
    %v253 = vrsqrt.pop %v237
    %v254 = vrsqrt.pop %v238
    %v255 = vrsqrt.pop %v239
    %v256 = vrsqrt.pop %v240
    %v257 = vrsqrt.pop %v241
    %v258 = vrsqrt.pop %v242
    %v259 = vrsqrt.pop %v243
    %v260 = vrsqrt.pop %v244
    %v261 = vrsqrt.pop %v245
    %v262 = vrsqrt.pop %v246
    %v263 = vmul.f32 %v151, %v247
    %v264 = vmul.f32 %v152, %v248
    %v265 = vmul.f32 %v153, %v249
    %v266 = vmul.f32 %v154, %v250
    %v267 = vmul.f32 %v155, %v251
    %v268 = vmul.f32 %v156, %v252
    %v269 = vmul.f32 %v157, %v253
    %v270 = vmul.f32 %v158, %v254
    %v271 = vmul.f32 %v159, %v255
    %v272 = vmul.f32 %v160, %v256
    %v273 = vmul.f32 %v161, %v257
    %v274 = vmul.f32 %v162, %v258
    %v275 = vmul.f32 %v163, %v259
    %v276 = vmul.f32 %v164, %v260
    %v277 = vmul.f32 %v165, %v261
    %v278 = vmul.f32 %v166, %v262
    %v279 = vld [vmem:[%s2] sm:$0x1]
    %v281 = vlaneseq
    %v282 = vshrl.u32 %v281, 7
    %v283 = vsub.s32 0, %v282
    %v284 = vrot.slane %v279, %v283
    %v286 = vmul.f32 %v263, %v284
    %v287 = vmul.f32 %v264, %v284
    %v288 = vmul.f32 %v265, %v284
    %v289 = vmul.f32 %v266, %v284
    %v290 = vmul.f32 %v267, %v284
    %v291 = vmul.f32 %v268, %v284
    %v292 = vmul.f32 %v269, %v284
    %v293 = vmul.f32 %v270, %v284
    %v294 = vmul.f32 %v271, %v284
    %v295 = vmul.f32 %v272, %v284
    %v296 = vmul.f32 %v273, %v284
    %v297 = vmul.f32 %v274, %v284
    %v298 = vmul.f32 %v275, %v284
    %v299 = vmul.f32 %v276, %v284
    %v300 = vmul.f32 %v277, %v284
    %v301 = vmul.f32 %v278, %v284
    %v302 = vld [vmem:[%s3] sm:$0x1]
    %v304 = vlaneseq
    %v305 = vshrl.u32 %v304, 7
    %v306 = vsub.s32 0, %v305
    %v307 = vrot.slane %v302, %v306
    %v309 = vadd.f32 %v286, %v307
    %v310 = vadd.f32 %v287, %v307
    %v311 = vadd.f32 %v288, %v307
    %v312 = vadd.f32 %v289, %v307
    %v313 = vadd.f32 %v290, %v307
    %v314 = vadd.f32 %v291, %v307
    %v315 = vadd.f32 %v292, %v307
    %v316 = vadd.f32 %v293, %v307
    %v317 = vadd.f32 %v294, %v307
    %v318 = vadd.f32 %v295, %v307
    %v319 = vadd.f32 %v296, %v307
    %v320 = vadd.f32 %v297, %v307
    %v321 = vadd.f32 %v298, %v307
    %v322 = vadd.f32 %v299, %v307
    %v323 = vadd.f32 %v300, %v307
    %v324 = vadd.f32 %v301, %v307
    %v325 = vpack.c.bf16 %v310, %v309
    %v326 = vpack.c.bf16 %v312, %v311
    %v327 = vpack.c.bf16 %v314, %v313
    %v328 = vpack.c.bf16 %v316, %v315
    %v329 = vpack.c.bf16 %v318, %v317
    %v330 = vpack.c.bf16 %v320, %v319
    %v331 = vpack.c.bf16 %v322, %v321
    %v332 = vpack.c.bf16 %v324, %v323
    %v333 = vld [vmem:[%s4] sm:$0xff]
    %v334 = vld [vmem:[%s4 + $0x8] sm:$0xf]
    %v335 = vld [vmem:[%s4 + $0xc] sm:$0xff]
    %v336 = vld [vmem:[%s4 + $0x14] sm:$0xf]
    %v337 = vld [vmem:[%s4 + $0x18] sm:$0xff]
    %v338 = vld [vmem:[%s4 + $0x20] sm:$0xf]
    %v339 = vld [vmem:[%s4 + $0x24] sm:$0xff]
    %v340 = vld [vmem:[%s4 + $0x2c] sm:$0xf]
    %v341 = vld [vmem:[%s4 + $0x30] sm:$0xff]
    %v342 = vld [vmem:[%s4 + $0x38] sm:$0xf]
    %v343 = vld [vmem:[%s4 + $0x3c] sm:$0xff]
    %v344 = vld [vmem:[%s4 + $0x44] sm:$0xf]
    %v345 = vld [vmem:[%s4 + $0x48] sm:$0xff]
    %v346 = vld [vmem:[%s4 + $0x50] sm:$0xf]
    %v347 = vld [vmem:[%s4 + $0x54] sm:$0xff]
    %v348 = vld [vmem:[%s4 + $0x5c] sm:$0xf]
    %v349 = vld [vmem:[%s4 + $0x60] sm:$0xff]
    %v350 = vld [vmem:[%s4 + $0x68] sm:$0xf]
    %v351 = vld [vmem:[%s4 + $0x6c] sm:$0xff]
    %v352 = vld [vmem:[%s4 + $0x74] sm:$0xf]
    %v353 = vld [vmem:[%s4 + $0x78] sm:$0xff]
    %v354 = vld [vmem:[%s4 + $0x80] sm:$0xf]
    %v355 = vld [vmem:[%s4 + $0x84] sm:$0xff]
    %v356 = vld [vmem:[%s4 + $0x8c] sm:$0xf]
    %v357 = vld [vmem:[%s4 + $0x90] sm:$0xff]
    %v358 = vld [vmem:[%s4 + $0x98] sm:$0xf]
    %v359 = vld [vmem:[%s4 + $0x9c] sm:$0xff]
    %v360 = vld [vmem:[%s4 + $0xa4] sm:$0xf]
    %v361 = vld [vmem:[%s4 + $0xa8] sm:$0xff]
    %v362 = vld [vmem:[%s4 + $0xb0] sm:$0xf]
    %v363 = vld [vmem:[%s4 + $0xb4] sm:$0xff]
    %v364 = vld [vmem:[%s4 + $0xbc] sm:$0xf]
    %v397 = vunpack.c.l.b16 %v333
    %v398 = vunpack.c.h.b16 %v333
    %v399 = vunpack.c.l.b16 %v334
    %v400 = vunpack.c.l.b16 %v335
    %v401 = vunpack.c.h.b16 %v335
    %v402 = vunpack.c.l.b16 %v336
    %v403 = vunpack.c.l.b16 %v337
    %v404 = vunpack.c.h.b16 %v337
    %v405 = vunpack.c.l.b16 %v338
    %v406 = vunpack.c.l.b16 %v339
    %v407 = vunpack.c.h.b16 %v339
    %v408 = vunpack.c.l.b16 %v340
    %v409 = vunpack.c.l.b16 %v341
    %v410 = vunpack.c.h.b16 %v341
    %v411 = vunpack.c.l.b16 %v342
    %v412 = vunpack.c.l.b16 %v343
    %v413 = vunpack.c.h.b16 %v343
    %v414 = vunpack.c.l.b16 %v344
    %v415 = vunpack.c.l.b16 %v345
    %v416 = vunpack.c.h.b16 %v345
    %v417 = vunpack.c.l.b16 %v346
    %v418 = vunpack.c.l.b16 %v347
    %v419 = vunpack.c.h.b16 %v347
    %v420 = vunpack.c.l.b16 %v348
    %v421 = vunpack.c.l.b16 %v349
    %v422 = vunpack.c.h.b16 %v349
    %v423 = vunpack.c.l.b16 %v350
    %v424 = vunpack.c.l.b16 %v351
    %v425 = vunpack.c.h.b16 %v351
    %v426 = vunpack.c.l.b16 %v352
    %v427 = vunpack.c.l.b16 %v353
    %v428 = vunpack.c.h.b16 %v353
    %v429 = vunpack.c.l.b16 %v354
    %v430 = vunpack.c.l.b16 %v355
    %v431 = vunpack.c.h.b16 %v355
    %v432 = vunpack.c.l.b16 %v356
    %v433 = vunpack.c.l.b16 %v357
    %v434 = vunpack.c.h.b16 %v357
    %v435 = vunpack.c.l.b16 %v358
    %v436 = vunpack.c.l.b16 %v359
    %v437 = vunpack.c.h.b16 %v359
    %v438 = vunpack.c.l.b16 %v360
    %v439 = vunpack.c.l.b16 %v361
    %v440 = vunpack.c.h.b16 %v361
    %v441 = vunpack.c.l.b16 %v362
    %v442 = vunpack.c.l.b16 %v363
    %v443 = vunpack.c.h.b16 %v363
    %v444 = vunpack.c.l.b16 %v364
    %v445 = vpack.c.b16 %v400, %v397
    %v446 = vpack.c.b16 %v401, %v398
    %v447 = vpack.c.b16 %v402, %v399
    %v448 = vpack.c.b16 %v406, %v403
    %v449 = vpack.c.b16 %v407, %v404
    %v450 = vpack.c.b16 %v408, %v405
    %v451 = vpack.c.b16 %v412, %v409
    %v452 = vpack.c.b16 %v413, %v410
    %v453 = vpack.c.b16 %v414, %v411
    %v454 = vpack.c.b16 %v418, %v415
    %v455 = vpack.c.b16 %v419, %v416
    %v456 = vpack.c.b16 %v420, %v417
    %v457 = vpack.c.b16 %v424, %v421
    %v458 = vpack.c.b16 %v425, %v422
    %v459 = vpack.c.b16 %v426, %v423
    %v460 = vpack.c.b16 %v430, %v427
    %v461 = vpack.c.b16 %v431, %v428
    %v462 = vpack.c.b16 %v432, %v429
    %v463 = vpack.c.b16 %v436, %v433
    %v464 = vpack.c.b16 %v437, %v434
    %v465 = vpack.c.b16 %v438, %v435
    %v466 = vpack.c.b16 %v442, %v439
    %v467 = vpack.c.b16 %v443, %v440
    %v468 = vpack.c.b16 %v444, %v441
    %493 = vmatprep.subr.bf16.mxu0 %v467
    %494 = vmatpush1.bf16.msra.mxu0 %v466
    %495 = vmatprep.subr.bf16.mxu0 %v464
    %496 = vmatpush1.bf16.msra.mxu0 %v463
    %497 = vmatprep.subr.bf16.mxu0 %v461
    %498 = vmatpush1.bf16.msra.mxu0 %v460
    %499 = vmatprep.subr.bf16.mxu0 %v458
    %500 = vmatpush1.bf16.msra.mxu0 %v457
    %501 = vmatprep.subr.bf16.mxu0 %v455
    %502 = vmatpush1.bf16.msra.mxu0 %v454
    %503 = vmatprep.subr.bf16.mxu0 %v452
    %504 = vmatpush1.bf16.msra.mxu0 %v451
    %505 = vmatprep.subr.bf16.mxu0 %v449
    %506 = vmatpush1.bf16.msra.mxu0 %v448
    %507 = vmatprep.subr.bf16.mxu0 %v446
    %508 = vmatpush1.bf16.msra.mxu0 %v445
    %509 = vmatprep.subr.bf16.mxu0 0
    %510 = vmatpush2.bf16.msra.mxu0 0
    %511 = vmatprep.subr.bf16.mxu0 0
    %512 = vmatpush2.bf16.msra.mxu0 0
    %513 = vmatprep.subr.bf16.mxu0 0
    %514 = vmatpush2.bf16.msra.mxu0 0
    %515 = vmatprep.subr.bf16.mxu0 0
    %516 = vmatpush2.bf16.msra.mxu0 0
    %517 = vmatprep.subr.bf16.mxu0 0
    %518 = vmatpush2.bf16.msra.mxu0 0
    %519 = vmatprep.subr.bf16.mxu0 0
    %520 = vmatpush2.bf16.msra.mxu0 0
    %521 = vmatprep.subr.bf16.mxu0 0
    %522 = vmatpush2.bf16.msra.mxu0 0
    %523 = vmatprep.subr.bf16.mxu0 0
    %524 = vmatpush2.bf16.msra.mxu0 0
    %525 = vmatprep.mubr.bf16.mxu0 0
    %526 = vmatmul.mubr.bf16.gmra.mxu0 %v325
    %v527 = vpop.f32.mrf.mxu0
    %v528 = vadd.f32 0.0, %v527
    %v529 = vpop.f32.mrf.mxu0
    %v530 = vadd.f32 0.0, %v529
    %v531 = vpop.f32.mrf.mxu0
    %v532 = vadd.f32 0.0, %v531
    %v533 = vpop.f32.mrf.mxu0
    %v534 = vadd.f32 0.0, %v533
    %535 = vmatprep.mubr.bf16.mxu0 0
    %536 = vmatmul.mubr.bf16.gmra.mxu0 %v326
    %v537 = vpop.f32.mrf.mxu0
    %v538 = vadd.f32 0.0, %v537
    %v539 = vpop.f32.mrf.mxu0
    %v540 = vadd.f32 0.0, %v539
    %v541 = vpop.f32.mrf.mxu0
    %v542 = vadd.f32 0.0, %v541
    %v543 = vpop.f32.mrf.mxu0
    %v544 = vadd.f32 0.0, %v543
    %545 = vmatprep.mubr.bf16.mxu0 0
    %546 = vmatmul.mubr.bf16.gmra.mxu0 %v327
    %v547 = vpop.f32.mrf.mxu0
    %v548 = vadd.f32 0.0, %v547
    %v549 = vpop.f32.mrf.mxu0
    %v550 = vadd.f32 0.0, %v549
    %v551 = vpop.f32.mrf.mxu0
    %v552 = vadd.f32 0.0, %v551
    %v553 = vpop.f32.mrf.mxu0
    %v554 = vadd.f32 0.0, %v553
    %555 = vmatprep.mubr.bf16.mxu0 0
    %556 = vmatmul.mubr.bf16.gmra.mxu0 %v328
    %v557 = vpop.f32.mrf.mxu0
    %v558 = vadd.f32 0.0, %v557
    %v559 = vpop.f32.mrf.mxu0
    %v560 = vadd.f32 0.0, %v559
    %v561 = vpop.f32.mrf.mxu0
    %v562 = vadd.f32 0.0, %v561
    %v563 = vpop.f32.mrf.mxu0
    %v564 = vadd.f32 0.0, %v563
    %565 = vmatprep.mubr.bf16.mxu0 0
    %566 = vmatmul.mubr.bf16.gmra.mxu0 %v329
    %v567 = vpop.f32.mrf.mxu0
    %v568 = vadd.f32 0.0, %v567
    %v569 = vpop.f32.mrf.mxu0
    %v570 = vadd.f32 0.0, %v569
    %v571 = vpop.f32.mrf.mxu0
    %v572 = vadd.f32 0.0, %v571
    %v573 = vpop.f32.mrf.mxu0
    %v574 = vadd.f32 0.0, %v573
    %575 = vmatprep.mubr.bf16.mxu0 0
    %576 = vmatmul.mubr.bf16.gmra.mxu0 %v330
    %v577 = vpop.f32.mrf.mxu0
    %v578 = vadd.f32 0.0, %v577
    %v579 = vpop.f32.mrf.mxu0
    %v580 = vadd.f32 0.0, %v579
    %v581 = vpop.f32.mrf.mxu0
    %v582 = vadd.f32 0.0, %v581
    %v583 = vpop.f32.mrf.mxu0
    %v584 = vadd.f32 0.0, %v583
    %585 = vmatprep.mubr.bf16.mxu0 0
    %586 = vmatmul.mubr.bf16.gmra.mxu0 %v331
    %v587 = vpop.f32.mrf.mxu0
    %v588 = vadd.f32 0.0, %v587
    %v589 = vpop.f32.mrf.mxu0
    %v590 = vadd.f32 0.0, %v589
    %v591 = vpop.f32.mrf.mxu0
    %v592 = vadd.f32 0.0, %v591
    %v593 = vpop.f32.mrf.mxu0
    %v594 = vadd.f32 0.0, %v593
    %595 = vmatprep.mubr.bf16.mxu0 0
    %596 = vmatmul.mubr.bf16.gmra.mxu0 %v332
    %v597 = vpop.f32.mrf.mxu0
    %v598 = vadd.f32 0.0, %v597
    %v599 = vpop.f32.mrf.mxu0
    %v600 = vadd.f32 0.0, %v599
    %v601 = vpop.f32.mrf.mxu0
    %v602 = vadd.f32 0.0, %v601
    %v603 = vpop.f32.mrf.mxu0
    %v604 = vadd.f32 0.0, %v603
    %605 = vdwg.mxu0
    %606 = vmatprep.subr.bf16.mxu0 0
    %607 = vmatpush1.bf16.msra.mxu0 %v468
    %608 = vmatprep.subr.bf16.mxu0 0
    %609 = vmatpush1.bf16.msra.mxu0 %v465
    %610 = vmatprep.subr.bf16.mxu0 0
    %611 = vmatpush1.bf16.msra.mxu0 %v462
    %612 = vmatprep.subr.bf16.mxu0 0
    %613 = vmatpush1.bf16.msra.mxu0 %v459
    %614 = vmatprep.subr.bf16.mxu0 0
    %615 = vmatpush1.bf16.msra.mxu0 %v456
    %616 = vmatprep.subr.bf16.mxu0 0
    %617 = vmatpush1.bf16.msra.mxu0 %v453
    %618 = vmatprep.subr.bf16.mxu0 0
    %619 = vmatpush1.bf16.msra.mxu0 %v450
    %620 = vmatprep.subr.bf16.mxu0 0
    %621 = vmatpush1.bf16.msra.mxu0 %v447
    %622 = vmatprep.subr.bf16.mxu0 0
    %623 = vmatpush2.bf16.msra.mxu0 0
    %624 = vmatprep.subr.bf16.mxu0 0
    %625 = vmatpush2.bf16.msra.mxu0 0
    %626 = vmatprep.subr.bf16.mxu0 0
    %627 = vmatpush2.bf16.msra.mxu0 0
    %628 = vmatprep.subr.bf16.mxu0 0
    %629 = vmatpush2.bf16.msra.mxu0 0
    %630 = vmatprep.subr.bf16.mxu0 0
    %631 = vmatpush2.bf16.msra.mxu0 0
    %632 = vmatprep.subr.bf16.mxu0 0
    %633 = vmatpush2.bf16.msra.mxu0 0
    %634 = vmatprep.subr.bf16.mxu0 0
    %635 = vmatpush2.bf16.msra.mxu0 0
    %636 = vmatprep.subr.bf16.mxu0 0
    %637 = vmatpush2.bf16.msra.mxu0 0
    %638 = vmatprep.mubr.bf16.mxu0 0
    %639 = vmatmul.mubr.bf16.gmra.mxu0 %v325
    %v640 = vpop.f32.mrf.mxu0
    %v641 = vadd.f32 0.0, %v640
    %v642 = vpop.f32.mrf.mxu0
    %v643 = vpop.f32.mrf.mxu0
    %v644 = vadd.f32 0.0, %v643
    %v645 = vpop.f32.mrf.mxu0
    %646 = vmatprep.mubr.bf16.mxu0 0
    %647 = vmatmul.mubr.bf16.gmra.mxu0 %v326
    %v648 = vpop.f32.mrf.mxu0
    %v649 = vadd.f32 0.0, %v648
    %v650 = vpop.f32.mrf.mxu0
    %v651 = vpop.f32.mrf.mxu0
    %v652 = vadd.f32 0.0, %v651
    %v653 = vpop.f32.mrf.mxu0
    %654 = vmatprep.mubr.bf16.mxu0 0
    %655 = vmatmul.mubr.bf16.gmra.mxu0 %v327
    %v656 = vpop.f32.mrf.mxu0
    %v657 = vadd.f32 0.0, %v656
    %v658 = vpop.f32.mrf.mxu0
    %v659 = vpop.f32.mrf.mxu0
    %v660 = vadd.f32 0.0, %v659
    %v661 = vpop.f32.mrf.mxu0
    %662 = vmatprep.mubr.bf16.mxu0 0
    %663 = vmatmul.mubr.bf16.gmra.mxu0 %v328
    %v664 = vpop.f32.mrf.mxu0
    %v665 = vadd.f32 0.0, %v664
    %v666 = vpop.f32.mrf.mxu0
    %v667 = vpop.f32.mrf.mxu0
    %v668 = vadd.f32 0.0, %v667
    %v669 = vpop.f32.mrf.mxu0
    %670 = vmatprep.mubr.bf16.mxu0 0
    %671 = vmatmul.mubr.bf16.gmra.mxu0 %v329
    %v672 = vpop.f32.mrf.mxu0
    %v673 = vadd.f32 0.0, %v672
    %v674 = vpop.f32.mrf.mxu0
    %v675 = vpop.f32.mrf.mxu0
    %v676 = vadd.f32 0.0, %v675
    %v677 = vpop.f32.mrf.mxu0
    %678 = vmatprep.mubr.bf16.mxu0 0
    %679 = vmatmul.mubr.bf16.gmra.mxu0 %v330
    %v680 = vpop.f32.mrf.mxu0
    %v681 = vadd.f32 0.0, %v680
    %v682 = vpop.f32.mrf.mxu0
    %v683 = vpop.f32.mrf.mxu0
    %v684 = vadd.f32 0.0, %v683
    %v685 = vpop.f32.mrf.mxu0
    %686 = vmatprep.mubr.bf16.mxu0 0
    %687 = vmatmul.mubr.bf16.gmra.mxu0 %v331
    %v688 = vpop.f32.mrf.mxu0
    %v689 = vadd.f32 0.0, %v688
    %v690 = vpop.f32.mrf.mxu0
    %v691 = vpop.f32.mrf.mxu0
    %v692 = vadd.f32 0.0, %v691
    %v693 = vpop.f32.mrf.mxu0
    %694 = vmatprep.mubr.bf16.mxu0 0
    %695 = vmatmul.mubr.bf16.gmra.mxu0 %v332
    %v696 = vpop.f32.mrf.mxu0
    %v697 = vadd.f32 0.0, %v696
    %v698 = vpop.f32.mrf.mxu0
    %v699 = vpop.f32.mrf.mxu0
    %v700 = vadd.f32 0.0, %v699
    %v701 = vpop.f32.mrf.mxu0
    %702 = vdwg.mxu0
    %v703 = vmul.f32 %v528, 0.088388346
    %v704 = vmul.f32 %v532, 0.088388346
    %v705 = vmul.f32 %v538, 0.088388346
    %v706 = vmul.f32 %v542, 0.088388346
    %v707 = vmul.f32 %v548, 0.088388346
    %v708 = vmul.f32 %v552, 0.088388346
    %v709 = vmul.f32 %v558, 0.088388346
    %v710 = vmul.f32 %v562, 0.088388346
    %v711 = vmul.f32 %v568, 0.088388346
    %v712 = vmul.f32 %v572, 0.088388346
    %v713 = vmul.f32 %v578, 0.088388346
    %v714 = vmul.f32 %v582, 0.088388346
    %v715 = vmul.f32 %v588, 0.088388346
    %v716 = vmul.f32 %v592, 0.088388346
    %v717 = vmul.f32 %v598, 0.088388346
    %v718 = vmul.f32 %v602, 0.088388346
    %v719 = vpack.c.bf16 %v704, %v703
    %v720 = vpack.c.bf16 %v706, %v705
    %v721 = vpack.c.bf16 %v708, %v707
    %v722 = vpack.c.bf16 %v710, %v709
    %v723 = vpack.c.bf16 %v712, %v711
    %v724 = vpack.c.bf16 %v714, %v713
    %v725 = vpack.c.bf16 %v716, %v715
    %v726 = vpack.c.bf16 %v718, %v717
    %v727 = vpack.c.bf16 %v534, %v530
    %v728 = vpack.c.bf16 %v544, %v540
    %v729 = vpack.c.bf16 %v554, %v550
    %v730 = vpack.c.bf16 %v564, %v560
    %v731 = vpack.c.bf16 %v574, %v570
    %v732 = vpack.c.bf16 %v584, %v580
    %v733 = vpack.c.bf16 %v594, %v590
    %v734 = vpack.c.bf16 %v604, %v600
    %v735 = vpack.c.bf16 %v644, %v641
    %v736 = vpack.c.bf16 %v652, %v649
    %v737 = vpack.c.bf16 %v660, %v657
    %v738 = vpack.c.bf16 %v668, %v665
    %v739 = vpack.c.bf16 %v676, %v673
    %v740 = vpack.c.bf16 %v684, %v681
    %v741 = vpack.c.bf16 %v692, %v689
    %v742 = vpack.c.bf16 %v700, %v697
    %v743 = vld [vmem:[%s1] sm:$0xff]
    %v744 = vld [vmem:[%s1 + $0x8] sm:$0xff]
    %v745 = vld [vmem:[%s1 + $0x10] sm:$0xff]
    %v746 = vld [vmem:[%s1 + $0x18] sm:$0xff]
    %v747 = vld [vmem:[%s1 + $0x20] sm:$0xff]
    %v748 = vld [vmem:[%s1 + $0x28] sm:$0xff]
    %v749 = vld [vmem:[%s1 + $0x30] sm:$0xff]
    %v750 = vld [vmem:[%s1 + $0x38] sm:$0xff]
    %v751 = vld [vmem:[#allocation2] sm:$0xf]
    %v752 = vld [vmem:[#allocation2 + $0x4] sm:$0xf]
    %v753 = vld [vmem:[#allocation2 + $0x8] sm:$0xf]
    %v754 = vld [vmem:[#allocation2 + $0xc] sm:$0xf]
    %v755 = vld [vmem:[#allocation2 + $0x10] sm:$0xf]
    %v756 = vld [vmem:[#allocation2 + $0x14] sm:$0xf]
    %v757 = vld [vmem:[#allocation2 + $0x18] sm:$0xf]
    %v758 = vld [vmem:[#allocation2 + $0x1c] sm:$0xf]
    %v759 = vld [vmem:[#allocation2 + $0x20] sm:$0xf]
    %v760 = vld [vmem:[#allocation2 + $0x24] sm:$0xf]
    %v761 = vld [vmem:[#allocation2 + $0x28] sm:$0xf]
    %v762 = vld [vmem:[#allocation2 + $0x2c] sm:$0xf]
    %v763 = vld [vmem:[#allocation2 + $0x30] sm:$0xf]
    %v764 = vld [vmem:[#allocation2 + $0x34] sm:$0xf]
    %v765 = vld [vmem:[#allocation2 + $0x38] sm:$0xf]
    %v766 = vld [vmem:[#allocation2 + $0x3c] sm:$0xf]
    %v771 = vunpack.c.l.b16 %v751
    %v772 = vunpack.c.l.b16 %v752
    %v773 = vunpack.c.l.b16 %v753
    %v774 = vunpack.c.l.b16 %v754
    %v775 = vpack.c.b16 %v772, %v771
    %v776 = vpack.c.b16 %v774, %v773
    %vm779 = vcmask 261120
    %v781 = vsel %vm779, %v735, 0
    %v784 = vsel %vm779, %v736, 0
    %v787 = vsel %vm779, %v737, 0
    %v790 = vsel %vm779, %v738, 0
    %v793 = vsel %vm779, %v739, 0
    %v796 = vsel %vm779, %v740, 0
    %v799 = vsel %vm779, %v741, 0
    %v802 = vsel %vm779, %v742, 0
    %804 = vmatprep.subr.bf16.mxu0 0
    %805 = vmatpush1.bf16.msra.mxu0 0
    %806 = vmatprep.subr.bf16.mxu0 0
    %807 = vmatpush1.bf16.msra.mxu0 0
    %808 = vmatprep.subr.bf16.mxu0 0
    %809 = vmatpush1.bf16.msra.mxu0 0
    %810 = vmatprep.subr.bf16.mxu0 0
    %811 = vmatpush1.bf16.msra.mxu0 0
    %812 = vmatprep.subr.bf16.mxu0 0
    %813 = vmatpush1.bf16.msra.mxu0 0
    %814 = vmatprep.subr.bf16.mxu0 0
    %815 = vmatpush1.bf16.msra.mxu0 0
    %816 = vmatprep.subr.bf16.mxu0 0
    %817 = vmatpush1.bf16.msra.mxu0 %v776
    %818 = vmatprep.subr.bf16.mxu0 0
    %819 = vmatpush1.bf16.msra.mxu0 %v775
    %820 = vmatprep.subr.bf16.mxu0 0
    %821 = vmatpush2.bf16.msra.mxu0 0
    %822 = vmatprep.subr.bf16.mxu0 0
    %823 = vmatpush2.bf16.msra.mxu0 0
    %824 = vmatprep.subr.bf16.mxu0 0
    %825 = vmatpush2.bf16.msra.mxu0 0
    %826 = vmatprep.subr.bf16.mxu0 0
    %827 = vmatpush2.bf16.msra.mxu0 0
    %828 = vmatprep.subr.bf16.mxu0 0
    %829 = vmatpush2.bf16.msra.mxu0 0
    %830 = vmatprep.subr.bf16.mxu0 0
    %831 = vmatpush2.bf16.msra.mxu0 0
    %832 = vmatprep.subr.bf16.mxu0 0
    %833 = vmatpush2.bf16.msra.mxu0 0
    %834 = vmatprep.subr.bf16.mxu0 0
    %835 = vmatpush2.bf16.msra.mxu0 0
    %836 = vmatprep.mubr.bf16.mxu0 0
    %837 = vmatmul.mubr.bf16.gmra.mxu0 %v781
    %v838 = vpop.f32.mrf.mxu0
    %v839 = vadd.f32 0.0, %v838
    %v840 = vpop.f32.mrf.mxu0
    %v841 = vpop.f32.mrf.mxu0
    %v842 = vadd.f32 0.0, %v841
    %v843 = vpop.f32.mrf.mxu0
    %844 = vmatprep.mubr.bf16.mxu0 0
    %845 = vmatmul.mubr.bf16.gmra.mxu0 %v784
    %v846 = vpop.f32.mrf.mxu0
    %v847 = vadd.f32 0.0, %v846
    %v848 = vpop.f32.mrf.mxu0
    %v849 = vpop.f32.mrf.mxu0
    %v850 = vadd.f32 0.0, %v849
    %v851 = vpop.f32.mrf.mxu0
    %852 = vmatprep.mubr.bf16.mxu0 0
    %853 = vmatmul.mubr.bf16.gmra.mxu0 %v787
    %v854 = vpop.f32.mrf.mxu0
    %v855 = vadd.f32 0.0, %v854
    %v856 = vpop.f32.mrf.mxu0
    %v857 = vpop.f32.mrf.mxu0
    %v858 = vadd.f32 0.0, %v857
    %v859 = vpop.f32.mrf.mxu0
    %860 = vmatprep.mubr.bf16.mxu0 0
    %861 = vmatmul.mubr.bf16.gmra.mxu0 %v790
    %v862 = vpop.f32.mrf.mxu0
    %v863 = vadd.f32 0.0, %v862
    %v864 = vpop.f32.mrf.mxu0
    %v865 = vpop.f32.mrf.mxu0
    %v866 = vadd.f32 0.0, %v865
    %v867 = vpop.f32.mrf.mxu0
    %868 = vmatprep.mubr.bf16.mxu0 0
    %869 = vmatmul.mubr.bf16.gmra.mxu0 %v793
    %v870 = vpop.f32.mrf.mxu0
    %v871 = vadd.f32 0.0, %v870
    %v872 = vpop.f32.mrf.mxu0
    %v873 = vpop.f32.mrf.mxu0
    %v874 = vadd.f32 0.0, %v873
    %v875 = vpop.f32.mrf.mxu0
    %876 = vmatprep.mubr.bf16.mxu0 0
    %877 = vmatmul.mubr.bf16.gmra.mxu0 %v796
    %v878 = vpop.f32.mrf.mxu0
    %v879 = vadd.f32 0.0, %v878
    %v880 = vpop.f32.mrf.mxu0
    %v881 = vpop.f32.mrf.mxu0
    %v882 = vadd.f32 0.0, %v881
    %v883 = vpop.f32.mrf.mxu0
    %884 = vmatprep.mubr.bf16.mxu0 0
    %885 = vmatmul.mubr.bf16.gmra.mxu0 %v799
    %v886 = vpop.f32.mrf.mxu0
    %v887 = vadd.f32 0.0, %v886
    %v888 = vpop.f32.mrf.mxu0
    %v889 = vpop.f32.mrf.mxu0
    %v890 = vadd.f32 0.0, %v889
    %v891 = vpop.f32.mrf.mxu0
    %892 = vmatprep.mubr.bf16.mxu0 0
    %893 = vmatmul.mubr.bf16.gmra.mxu0 %v802
    %v894 = vpop.f32.mrf.mxu0
    %v895 = vadd.f32 0.0, %v894
    %v896 = vpop.f32.mrf.mxu0
    %v897 = vpop.f32.mrf.mxu0
    %v898 = vadd.f32 0.0, %v897
    %v899 = vpop.f32.mrf.mxu0
    %900 = vdwg.mxu0
    %v901 = vpack.c.bf16 %v842, %v839
    %v902 = vpack.c.bf16 %v850, %v847
    %v903 = vpack.c.bf16 %v858, %v855
    %v904 = vpack.c.bf16 %v866, %v863
    %v905 = vpack.c.bf16 %v874, %v871
    %v906 = vpack.c.bf16 %v882, %v879
    %v907 = vpack.c.bf16 %v890, %v887
    %v908 = vpack.c.bf16 %v898, %v895
    %917 = vrot.lane.b32.xlu0 %v735, 96
    %v918 = vpop.permute.xlu0 %917
    %919 = vrot.lane.b32.xlu0 %v736, 96
    %v920 = vpop.permute.xlu0 %919
    %921 = vrot.lane.b32.xlu0 %v737, 96
    %v922 = vpop.permute.xlu0 %921
    %923 = vrot.lane.b32.xlu0 %v738, 96
    %v924 = vpop.permute.xlu0 %923
    %925 = vrot.lane.b32.xlu0 %v739, 96
    %v926 = vpop.permute.xlu0 %925
    %927 = vrot.lane.b32.xlu0 %v740, 96
    %v928 = vpop.permute.xlu0 %927
    %929 = vrot.lane.b32.xlu0 %v741, 96
    %v930 = vpop.permute.xlu0 %929
    %931 = vrot.lane.b32.xlu0 %v742, 96
    %v932 = vpop.permute.xlu0 %931
    %v937 = vunpack.c.l.b16 %v755
    %v938 = vunpack.c.l.b16 %v756
    %v939 = vunpack.c.l.b16 %v757
    %v940 = vunpack.c.l.b16 %v758
    %v941 = vpack.c.b16 %v938, %v937
    %v942 = vpack.c.b16 %v940, %v939
    %v946 = vsel %vm779, %v918, 0
    %v949 = vsel %vm779, %v920, 0
    %v952 = vsel %vm779, %v922, 0
    %v955 = vsel %vm779, %v924, 0
    %v958 = vsel %vm779, %v926, 0
    %v961 = vsel %vm779, %v928, 0
    %v964 = vsel %vm779, %v930, 0
    %v967 = vsel %vm779, %v932, 0
    %969 = vmatprep.subr.bf16.mxu0 0
    %970 = vmatpush1.bf16.msra.mxu0 0
    %971 = vmatprep.subr.bf16.mxu0 0
    %972 = vmatpush1.bf16.msra.mxu0 0
    %973 = vmatprep.subr.bf16.mxu0 0
    %974 = vmatpush1.bf16.msra.mxu0 0
    %975 = vmatprep.subr.bf16.mxu0 0
    %976 = vmatpush1.bf16.msra.mxu0 0
    %977 = vmatprep.subr.bf16.mxu0 0
    %978 = vmatpush1.bf16.msra.mxu0 0
    %979 = vmatprep.subr.bf16.mxu0 0
    %980 = vmatpush1.bf16.msra.mxu0 0
    %981 = vmatprep.subr.bf16.mxu0 0
    %982 = vmatpush1.bf16.msra.mxu0 %v942
    %983 = vmatprep.subr.bf16.mxu0 0
    %984 = vmatpush1.bf16.msra.mxu0 %v941
    %985 = vmatprep.subr.bf16.mxu0 0
    %986 = vmatpush2.bf16.msra.mxu0 0
    %987 = vmatprep.subr.bf16.mxu0 0
    %988 = vmatpush2.bf16.msra.mxu0 0
    %989 = vmatprep.subr.bf16.mxu0 0
    %990 = vmatpush2.bf16.msra.mxu0 0
    %991 = vmatprep.subr.bf16.mxu0 0
    %992 = vmatpush2.bf16.msra.mxu0 0
    %993 = vmatprep.subr.bf16.mxu0 0
    %994 = vmatpush2.bf16.msra.mxu0 0
    %995 = vmatprep.subr.bf16.mxu0 0
    %996 = vmatpush2.bf16.msra.mxu0 0
    %997 = vmatprep.subr.bf16.mxu0 0
    %998 = vmatpush2.bf16.msra.mxu0 0
    %999 = vmatprep.subr.bf16.mxu0 0
    %1000 = vmatpush2.bf16.msra.mxu0 0
    %1001 = vmatprep.mubr.bf16.mxu0 0
    %1002 = vmatmul.mubr.bf16.gmra.mxu0 %v946
    %v1003 = vpop.f32.mrf.mxu0
    %v1004 = vadd.f32 0.0, %v1003
    %v1005 = vpop.f32.mrf.mxu0
    %v1006 = vpop.f32.mrf.mxu0
    %v1007 = vadd.f32 0.0, %v1006
    %v1008 = vpop.f32.mrf.mxu0
    %1009 = vmatprep.mubr.bf16.mxu0 0
    %1010 = vmatmul.mubr.bf16.gmra.mxu0 %v949
    %v1011 = vpop.f32.mrf.mxu0
    %v1012 = vadd.f32 0.0, %v1011
    %v1013 = vpop.f32.mrf.mxu0
    %v1014 = vpop.f32.mrf.mxu0
    %v1015 = vadd.f32 0.0, %v1014
    %v1016 = vpop.f32.mrf.mxu0
    %1017 = vmatprep.mubr.bf16.mxu0 0
    %1018 = vmatmul.mubr.bf16.gmra.mxu0 %v952
    %v1019 = vpop.f32.mrf.mxu0
    %v1020 = vadd.f32 0.0, %v1019
    %v1021 = vpop.f32.mrf.mxu0
    %v1022 = vpop.f32.mrf.mxu0
    %v1023 = vadd.f32 0.0, %v1022
    %v1024 = vpop.f32.mrf.mxu0
    %1025 = vmatprep.mubr.bf16.mxu0 0
    %1026 = vmatmul.mubr.bf16.gmra.mxu0 %v955
    %v1027 = vpop.f32.mrf.mxu0
    %v1028 = vadd.f32 0.0, %v1027
    %v1029 = vpop.f32.mrf.mxu0
    %v1030 = vpop.f32.mrf.mxu0
    %v1031 = vadd.f32 0.0, %v1030
    %v1032 = vpop.f32.mrf.mxu0
    %1033 = vmatprep.mubr.bf16.mxu0 0
    %1034 = vmatmul.mubr.bf16.gmra.mxu0 %v958
    %v1035 = vpop.f32.mrf.mxu0
    %v1036 = vadd.f32 0.0, %v1035
    %v1037 = vpop.f32.mrf.mxu0
    %v1038 = vpop.f32.mrf.mxu0
    %v1039 = vadd.f32 0.0, %v1038
    %v1040 = vpop.f32.mrf.mxu0
    %1041 = vmatprep.mubr.bf16.mxu0 0
    %1042 = vmatmul.mubr.bf16.gmra.mxu0 %v961
    %v1043 = vpop.f32.mrf.mxu0
    %v1044 = vadd.f32 0.0, %v1043
    %v1045 = vpop.f32.mrf.mxu0
    %v1046 = vpop.f32.mrf.mxu0
    %v1047 = vadd.f32 0.0, %v1046
    %v1048 = vpop.f32.mrf.mxu0
    %1049 = vmatprep.mubr.bf16.mxu0 0
    %1050 = vmatmul.mubr.bf16.gmra.mxu0 %v964
    %v1051 = vpop.f32.mrf.mxu0
    %v1052 = vadd.f32 0.0, %v1051
    %v1053 = vpop.f32.mrf.mxu0
    %v1054 = vpop.f32.mrf.mxu0
    %v1055 = vadd.f32 0.0, %v1054
    %v1056 = vpop.f32.mrf.mxu0
    %1057 = vmatprep.mubr.bf16.mxu0 0
    %1058 = vmatmul.mubr.bf16.gmra.mxu0 %v967
    %v1059 = vpop.f32.mrf.mxu0
    %v1060 = vadd.f32 0.0, %v1059
    %v1061 = vpop.f32.mrf.mxu0
    %v1062 = vpop.f32.mrf.mxu0
    %v1063 = vadd.f32 0.0, %v1062
    %v1064 = vpop.f32.mrf.mxu0
    %1065 = vdwg.mxu0
    %v1066 = vpack.c.bf16 %v1007, %v1004
    %v1067 = vpack.c.bf16 %v1015, %v1012
    %v1068 = vpack.c.bf16 %v1023, %v1020
    %v1069 = vpack.c.bf16 %v1031, %v1028
    %v1070 = vpack.c.bf16 %v1039, %v1036
    %v1071 = vpack.c.bf16 %v1047, %v1044
    %v1072 = vpack.c.bf16 %v1055, %v1052
    %v1073 = vpack.c.bf16 %v1063, %v1060
    %1074 = vrot.lane.b32.xlu0 %v735, 64
    %v1075 = vpop.permute.xlu0 %1074
    %1076 = vrot.lane.b32.xlu0 %v736, 64
    %v1077 = vpop.permute.xlu0 %1076
    %1078 = vrot.lane.b32.xlu0 %v737, 64
    %v1079 = vpop.permute.xlu0 %1078
    %1080 = vrot.lane.b32.xlu0 %v738, 64
    %v1081 = vpop.permute.xlu0 %1080
    %1082 = vrot.lane.b32.xlu0 %v739, 64
    %v1083 = vpop.permute.xlu0 %1082
    %1084 = vrot.lane.b32.xlu0 %v740, 64
    %v1085 = vpop.permute.xlu0 %1084
    %1086 = vrot.lane.b32.xlu0 %v741, 64
    %v1087 = vpop.permute.xlu0 %1086
    %1088 = vrot.lane.b32.xlu0 %v742, 64
    %v1089 = vpop.permute.xlu0 %1088
    %v1094 = vunpack.c.l.b16 %v759
    %v1095 = vunpack.c.l.b16 %v760
    %v1096 = vunpack.c.l.b16 %v761
    %v1097 = vunpack.c.l.b16 %v762
    %v1098 = vpack.c.b16 %v1095, %v1094
    %v1099 = vpack.c.b16 %v1097, %v1096
    %v1103 = vsel %vm779, %v1075, 0
    %v1106 = vsel %vm779, %v1077, 0
    %v1109 = vsel %vm779, %v1079, 0
    %v1112 = vsel %vm779, %v1081, 0
    %v1115 = vsel %vm779, %v1083, 0
    %v1118 = vsel %vm779, %v1085, 0
    %v1121 = vsel %vm779, %v1087, 0
    %v1124 = vsel %vm779, %v1089, 0
    %1126 = vmatprep.subr.bf16.mxu0 0
    %1127 = vmatpush1.bf16.msra.mxu0 0
    %1128 = vmatprep.subr.bf16.mxu0 0
    %1129 = vmatpush1.bf16.msra.mxu0 0
    %1130 = vmatprep.subr.bf16.mxu0 0
    %1131 = vmatpush1.bf16.msra.mxu0 0
    %1132 = vmatprep.subr.bf16.mxu0 0
    %1133 = vmatpush1.bf16.msra.mxu0 0
    %1134 = vmatprep.subr.bf16.mxu0 0
    %1135 = vmatpush1.bf16.msra.mxu0 0
    %1136 = vmatprep.subr.bf16.mxu0 0
    %1137 = vmatpush1.bf16.msra.mxu0 0
    %1138 = vmatprep.subr.bf16.mxu0 0
    %1139 = vmatpush1.bf16.msra.mxu0 %v1099
    %1140 = vmatprep.subr.bf16.mxu0 0
    %1141 = vmatpush1.bf16.msra.mxu0 %v1098
    %1142 = vmatprep.subr.bf16.mxu0 0
    %1143 = vmatpush2.bf16.msra.mxu0 0
    %1144 = vmatprep.subr.bf16.mxu0 0
    %1145 = vmatpush2.bf16.msra.mxu0 0
    %1146 = vmatprep.subr.bf16.mxu0 0
    %1147 = vmatpush2.bf16.msra.mxu0 0
    %1148 = vmatprep.subr.bf16.mxu0 0
    %1149 = vmatpush2.bf16.msra.mxu0 0
    %1150 = vmatprep.subr.bf16.mxu0 0
    %1151 = vmatpush2.bf16.msra.mxu0 0
    %1152 = vmatprep.subr.bf16.mxu0 0
    %1153 = vmatpush2.bf16.msra.mxu0 0
    %1154 = vmatprep.subr.bf16.mxu0 0
    %1155 = vmatpush2.bf16.msra.mxu0 0
    %1156 = vmatprep.subr.bf16.mxu0 0
    %1157 = vmatpush2.bf16.msra.mxu0 0
    %1158 = vmatprep.mubr.bf16.mxu0 0
    %1159 = vmatmul.mubr.bf16.gmra.mxu0 %v1103
    %v1160 = vpop.f32.mrf.mxu0
    %v1161 = vadd.f32 0.0, %v1160
    %v1162 = vpop.f32.mrf.mxu0
    %v1163 = vpop.f32.mrf.mxu0
    %v1164 = vadd.f32 0.0, %v1163
    %v1165 = vpop.f32.mrf.mxu0
    %1166 = vmatprep.mubr.bf16.mxu0 0
    %1167 = vmatmul.mubr.bf16.gmra.mxu0 %v1106
    %v1168 = vpop.f32.mrf.mxu0
    %v1169 = vadd.f32 0.0, %v1168
    %v1170 = vpop.f32.mrf.mxu0
    %v1171 = vpop.f32.mrf.mxu0
    %v1172 = vadd.f32 0.0, %v1171
    %v1173 = vpop.f32.mrf.mxu0
    %1174 = vmatprep.mubr.bf16.mxu0 0
    %1175 = vmatmul.mubr.bf16.gmra.mxu0 %v1109
    %v1176 = vpop.f32.mrf.mxu0
    %v1177 = vadd.f32 0.0, %v1176
    %v1178 = vpop.f32.mrf.mxu0
    %v1179 = vpop.f32.mrf.mxu0
    %v1180 = vadd.f32 0.0, %v1179
    %v1181 = vpop.f32.mrf.mxu0
    %1182 = vmatprep.mubr.bf16.mxu0 0
    %1183 = vmatmul.mubr.bf16.gmra.mxu0 %v1112
    %v1184 = vpop.f32.mrf.mxu0
    %v1185 = vadd.f32 0.0, %v1184
    %v1186 = vpop.f32.mrf.mxu0
    %v1187 = vpop.f32.mrf.mxu0
    %v1188 = vadd.f32 0.0, %v1187
    %v1189 = vpop.f32.mrf.mxu0
    %1190 = vmatprep.mubr.bf16.mxu0 0
    %1191 = vmatmul.mubr.bf16.gmra.mxu0 %v1115
    %v1192 = vpop.f32.mrf.mxu0
    %v1193 = vadd.f32 0.0, %v1192
    %v1194 = vpop.f32.mrf.mxu0
    %v1195 = vpop.f32.mrf.mxu0
    %v1196 = vadd.f32 0.0, %v1195
    %v1197 = vpop.f32.mrf.mxu0
    %1198 = vmatprep.mubr.bf16.mxu0 0
    %1199 = vmatmul.mubr.bf16.gmra.mxu0 %v1118
    %v1200 = vpop.f32.mrf.mxu0
    %v1201 = vadd.f32 0.0, %v1200
    %v1202 = vpop.f32.mrf.mxu0
    %v1203 = vpop.f32.mrf.mxu0
    %v1204 = vadd.f32 0.0, %v1203
    %v1205 = vpop.f32.mrf.mxu0
    %1206 = vmatprep.mubr.bf16.mxu0 0
    %1207 = vmatmul.mubr.bf16.gmra.mxu0 %v1121
    %v1208 = vpop.f32.mrf.mxu0
    %v1209 = vadd.f32 0.0, %v1208
    %v1210 = vpop.f32.mrf.mxu0
    %v1211 = vpop.f32.mrf.mxu0
    %v1212 = vadd.f32 0.0, %v1211
    %v1213 = vpop.f32.mrf.mxu0
    %1214 = vmatprep.mubr.bf16.mxu0 0
    %1215 = vmatmul.mubr.bf16.gmra.mxu0 %v1124
    %v1216 = vpop.f32.mrf.mxu0
    %v1217 = vadd.f32 0.0, %v1216
    %v1218 = vpop.f32.mrf.mxu0
    %v1219 = vpop.f32.mrf.mxu0
    %v1220 = vadd.f32 0.0, %v1219
    %v1221 = vpop.f32.mrf.mxu0
    %1222 = vdwg.mxu0
    %v1223 = vpack.c.bf16 %v1164, %v1161
    %v1224 = vpack.c.bf16 %v1172, %v1169
    %v1225 = vpack.c.bf16 %v1180, %v1177
    %v1226 = vpack.c.bf16 %v1188, %v1185
    %v1227 = vpack.c.bf16 %v1196, %v1193
    %v1228 = vpack.c.bf16 %v1204, %v1201
    %v1229 = vpack.c.bf16 %v1212, %v1209
    %v1230 = vpack.c.bf16 %v1220, %v1217
    %1231 = vrot.lane.b32.xlu0 %v735, 32
    %v1232 = vpop.permute.xlu0 %1231
    %1233 = vrot.lane.b32.xlu0 %v736, 32
    %v1234 = vpop.permute.xlu0 %1233
    %1235 = vrot.lane.b32.xlu0 %v737, 32
    %v1236 = vpop.permute.xlu0 %1235
    %1237 = vrot.lane.b32.xlu0 %v738, 32
    %v1238 = vpop.permute.xlu0 %1237
    %1239 = vrot.lane.b32.xlu0 %v739, 32
    %v1240 = vpop.permute.xlu0 %1239
    %1241 = vrot.lane.b32.xlu0 %v740, 32
    %v1242 = vpop.permute.xlu0 %1241
    %1243 = vrot.lane.b32.xlu0 %v741, 32
    %v1244 = vpop.permute.xlu0 %1243
    %1245 = vrot.lane.b32.xlu0 %v742, 32
    %v1246 = vpop.permute.xlu0 %1245
    %v1251 = vunpack.c.l.b16 %v763
    %v1252 = vunpack.c.l.b16 %v764
    %v1253 = vunpack.c.l.b16 %v765
    %v1254 = vunpack.c.l.b16 %v766
    %v1255 = vpack.c.b16 %v1252, %v1251
    %v1256 = vpack.c.b16 %v1254, %v1253
    %v1260 = vsel %vm779, %v1232, 0
    %v1263 = vsel %vm779, %v1234, 0
    %v1266 = vsel %vm779, %v1236, 0
    %v1269 = vsel %vm779, %v1238, 0
    %v1272 = vsel %vm779, %v1240, 0
    %v1275 = vsel %vm779, %v1242, 0
    %v1278 = vsel %vm779, %v1244, 0
    %v1281 = vsel %vm779, %v1246, 0
    %1283 = vmatprep.subr.bf16.mxu0 0
    %1284 = vmatpush1.bf16.msra.mxu0 0
    %1285 = vmatprep.subr.bf16.mxu0 0
    %1286 = vmatpush1.bf16.msra.mxu0 0
    %1287 = vmatprep.subr.bf16.mxu0 0
    %1288 = vmatpush1.bf16.msra.mxu0 0
    %1289 = vmatprep.subr.bf16.mxu0 0
    %1290 = vmatpush1.bf16.msra.mxu0 0
    %1291 = vmatprep.subr.bf16.mxu0 0
    %1292 = vmatpush1.bf16.msra.mxu0 0
    %1293 = vmatprep.subr.bf16.mxu0 0
    %1294 = vmatpush1.bf16.msra.mxu0 0
    %1295 = vmatprep.subr.bf16.mxu0 0
    %1296 = vmatpush1.bf16.msra.mxu0 %v1256
    %1297 = vmatprep.subr.bf16.mxu0 0
    %1298 = vmatpush1.bf16.msra.mxu0 %v1255
    %1299 = vmatprep.subr.bf16.mxu0 0
    %1300 = vmatpush2.bf16.msra.mxu0 0
    %1301 = vmatprep.subr.bf16.mxu0 0
    %1302 = vmatpush2.bf16.msra.mxu0 0
    %1303 = vmatprep.subr.bf16.mxu0 0
    %1304 = vmatpush2.bf16.msra.mxu0 0
    %1305 = vmatprep.subr.bf16.mxu0 0
    %1306 = vmatpush2.bf16.msra.mxu0 0
    %1307 = vmatprep.subr.bf16.mxu0 0
    %1308 = vmatpush2.bf16.msra.mxu0 0
    %1309 = vmatprep.subr.bf16.mxu0 0
    %1310 = vmatpush2.bf16.msra.mxu0 0
    %1311 = vmatprep.subr.bf16.mxu0 0
    %1312 = vmatpush2.bf16.msra.mxu0 0
    %1313 = vmatprep.subr.bf16.mxu0 0
    %1314 = vmatpush2.bf16.msra.mxu0 0
    %1315 = vmatprep.mubr.bf16.mxu0 0
    %1316 = vmatmul.mubr.bf16.gmra.mxu0 %v1260
    %v1317 = vpop.f32.mrf.mxu0
    %v1318 = vadd.f32 0.0, %v1317
    %v1319 = vpop.f32.mrf.mxu0
    %v1320 = vpop.f32.mrf.mxu0
    %v1321 = vadd.f32 0.0, %v1320
    %v1322 = vpop.f32.mrf.mxu0
    %1323 = vmatprep.mubr.bf16.mxu0 0
    %1324 = vmatmul.mubr.bf16.gmra.mxu0 %v1263
    %v1325 = vpop.f32.mrf.mxu0
    %v1326 = vadd.f32 0.0, %v1325
    %v1327 = vpop.f32.mrf.mxu0
    %v1328 = vpop.f32.mrf.mxu0
    %v1329 = vadd.f32 0.0, %v1328
    %v1330 = vpop.f32.mrf.mxu0
    %1331 = vmatprep.mubr.bf16.mxu0 0
    %1332 = vmatmul.mubr.bf16.gmra.mxu0 %v1266
    %v1333 = vpop.f32.mrf.mxu0
    %v1334 = vadd.f32 0.0, %v1333
    %v1335 = vpop.f32.mrf.mxu0
    %v1336 = vpop.f32.mrf.mxu0
    %v1337 = vadd.f32 0.0, %v1336
    %v1338 = vpop.f32.mrf.mxu0
    %1339 = vmatprep.mubr.bf16.mxu0 0
    %1340 = vmatmul.mubr.bf16.gmra.mxu0 %v1269
    %v1341 = vpop.f32.mrf.mxu0
    %v1342 = vadd.f32 0.0, %v1341
    %v1343 = vpop.f32.mrf.mxu0
    %v1344 = vpop.f32.mrf.mxu0
    %v1345 = vadd.f32 0.0, %v1344
    %v1346 = vpop.f32.mrf.mxu0
    %1347 = vmatprep.mubr.bf16.mxu0 0
    %1348 = vmatmul.mubr.bf16.gmra.mxu0 %v1272
    %v1349 = vpop.f32.mrf.mxu0
    %v1350 = vadd.f32 0.0, %v1349
    %v1351 = vpop.f32.mrf.mxu0
    %v1352 = vpop.f32.mrf.mxu0
    %v1353 = vadd.f32 0.0, %v1352
    %v1354 = vpop.f32.mrf.mxu0
    %1355 = vmatprep.mubr.bf16.mxu0 0
    %1356 = vmatmul.mubr.bf16.gmra.mxu0 %v1275
    %v1357 = vpop.f32.mrf.mxu0
    %v1358 = vadd.f32 0.0, %v1357
    %v1359 = vpop.f32.mrf.mxu0
    %v1360 = vpop.f32.mrf.mxu0
    %v1361 = vadd.f32 0.0, %v1360
    %v1362 = vpop.f32.mrf.mxu0
    %1363 = vmatprep.mubr.bf16.mxu0 0
    %1364 = vmatmul.mubr.bf16.gmra.mxu0 %v1278
    %v1365 = vpop.f32.mrf.mxu0
    %v1366 = vadd.f32 0.0, %v1365
    %v1367 = vpop.f32.mrf.mxu0
    %v1368 = vpop.f32.mrf.mxu0
    %v1369 = vadd.f32 0.0, %v1368
    %v1370 = vpop.f32.mrf.mxu0
    %1371 = vmatprep.mubr.bf16.mxu0 0
    %1372 = vmatmul.mubr.bf16.gmra.mxu0 %v1281
    %v1373 = vpop.f32.mrf.mxu0
    %v1374 = vadd.f32 0.0, %v1373
    %v1375 = vpop.f32.mrf.mxu0
    %v1376 = vpop.f32.mrf.mxu0
    %v1377 = vadd.f32 0.0, %v1376
    %v1378 = vpop.f32.mrf.mxu0
    %1379 = vdwg.mxu0
    %v1380 = vpack.c.bf16 %v1321, %v1318
    %v1381 = vpack.c.bf16 %v1329, %v1326
    %v1382 = vpack.c.bf16 %v1337, %v1334
    %v1383 = vpack.c.bf16 %v1345, %v1342
    %v1384 = vpack.c.bf16 %v1353, %v1350
    %v1385 = vpack.c.bf16 %v1361, %v1358
    %v1386 = vpack.c.bf16 %v1369, %v1366
    %v1387 = vpack.c.bf16 %v1377, %v1374
    %v1389 = vsel %vm779, %v719, 0
    %v1392 = vsel %vm779, %v720, 0
    %v1395 = vsel %vm779, %v721, 0
    %v1398 = vsel %vm779, %v722, 0
    %v1401 = vsel %vm779, %v727, 0
    %v1404 = vsel %vm779, %v728, 0
    %v1407 = vsel %vm779, %v729, 0
    %v1410 = vsel %vm779, %v730, 0
    %1412 = vmatprep.subr.bf16.mxu0 0
    %1413 = vmatpush1.bf16.xpose.msra.mxu0 0
    %1414 = vmatprep.subr.bf16.mxu0 0
    %1415 = vmatpush1.bf16.xpose.msra.mxu0 0
    %1416 = vmatprep.subr.bf16.mxu0 0
    %1417 = vmatpush1.bf16.xpose.msra.mxu0 0
    %1418 = vmatprep.subr.bf16.mxu0 0
    %1419 = vmatpush1.bf16.xpose.msra.mxu0 0
    %1420 = vmatprep.subr.bf16.mxu0 0
    %1421 = vmatpush1.bf16.xpose.msra.mxu0 %v1410
    %1422 = vmatprep.subr.bf16.mxu0 0
    %1423 = vmatpush1.bf16.xpose.msra.mxu0 %v1407
    %1424 = vmatprep.subr.bf16.mxu0 0
    %1425 = vmatpush1.bf16.xpose.msra.mxu0 %v1404
    %1426 = vmatprep.subr.bf16.mxu0 0
    %1427 = vmatpush1.bf16.xpose.msra.mxu0 %v1401
    %1428 = vmatprep.subr.bf16.mxu0 0
    %1429 = vmatpush2.bf16.xpose.msra.mxu0 0
    %1430 = vmatprep.subr.bf16.mxu0 0
    %1431 = vmatpush2.bf16.xpose.msra.mxu0 0
    %1432 = vmatprep.subr.bf16.mxu0 0
    %1433 = vmatpush2.bf16.xpose.msra.mxu0 0
    %1434 = vmatprep.subr.bf16.mxu0 0
    %1435 = vmatpush2.bf16.xpose.msra.mxu0 0
    %1436 = vmatprep.subr.bf16.mxu0 0
    %1437 = vmatpush2.bf16.xpose.msra.mxu0 0
    %1438 = vmatprep.subr.bf16.mxu0 0
    %1439 = vmatpush2.bf16.xpose.msra.mxu0 0
    %1440 = vmatprep.subr.bf16.mxu0 0
    %1441 = vmatpush2.bf16.xpose.msra.mxu0 0
    %1442 = vmatprep.subr.bf16.mxu0 0
    %1443 = vmatpush2.bf16.xpose.msra.mxu0 0
    %1444 = vmatprep.mubr.bf16.mxu0 0
    %1445 = vmatmul.mubr.bf16.gmra.mxu0 %v1389
    %v1446 = vpop.f32.mrf.mxu0
    %v1447 = vadd.f32 %v743, %v1446
    %v1448 = vpop.f32.mrf.mxu0
    %v1449 = vpop.f32.mrf.mxu0
    %v1450 = vadd.f32 %v744, %v1449
    %v1451 = vpop.f32.mrf.mxu0
    %1452 = vmatprep.mubr.bf16.mxu0 0
    %1453 = vmatmul.mubr.bf16.gmra.mxu0 %v1392
    %v1454 = vpop.f32.mrf.mxu0
    %v1455 = vadd.f32 %v745, %v1454
    %v1456 = vpop.f32.mrf.mxu0
    %v1457 = vpop.f32.mrf.mxu0
    %v1458 = vadd.f32 %v746, %v1457
    %v1459 = vpop.f32.mrf.mxu0
    %1460 = vmatprep.mubr.bf16.mxu0 0
    %1461 = vmatmul.mubr.bf16.gmra.mxu0 %v1395
    %v1462 = vpop.f32.mrf.mxu0
    %v1463 = vadd.f32 %v747, %v1462
    %v1464 = vpop.f32.mrf.mxu0
    %v1465 = vpop.f32.mrf.mxu0
    %v1466 = vadd.f32 %v748, %v1465
    %v1467 = vpop.f32.mrf.mxu0
    %1468 = vmatprep.mubr.bf16.mxu0 0
    %1469 = vmatmul.mubr.bf16.gmra.mxu0 %v1398
    %v1470 = vpop.f32.mrf.mxu0
    %v1471 = vadd.f32 %v749, %v1470
    %v1472 = vpop.f32.mrf.mxu0
    %v1473 = vpop.f32.mrf.mxu0
    %v1474 = vadd.f32 %v750, %v1473
    %v1475 = vpop.f32.mrf.mxu0
    %1476 = vdwg.mxu0
    %vm1477 = vcmask 523264
    %v1478 = vsel %vm1477, %v1447, -inf
    %1479 = vmax.xlane.f32.xlu0 %v1478
    %v1480 = vpop.xlane.xlu0 %1479
    %v1481 = vsel %vm1477, %v1450, -inf
    %1482 = vmax.xlane.f32.xlu0 %v1481
    %v1483 = vpop.xlane.xlu0 %1482
    %v1484 = vsel %vm1477, %v1455, -inf
    %1485 = vmax.xlane.f32.xlu0 %v1484
    %v1486 = vpop.xlane.xlu0 %1485
    %v1487 = vsel %vm1477, %v1458, -inf
    %1488 = vmax.xlane.f32.xlu0 %v1487
    %v1489 = vpop.xlane.xlu0 %1488
    %v1490 = vsel %vm1477, %v1463, -inf
    %1491 = vmax.xlane.f32.xlu0 %v1490
    %v1492 = vpop.xlane.xlu0 %1491
    %v1493 = vsel %vm1477, %v1466, -inf
    %1494 = vmax.xlane.f32.xlu0 %v1493
    %v1495 = vpop.xlane.xlu0 %1494
    %v1496 = vsel %vm1477, %v1471, -inf
    %1497 = vmax.xlane.f32.xlu0 %v1496
    %v1498 = vpop.xlane.xlu0 %1497
    %v1499 = vsel %vm1477, %v1474, -inf
    %1500 = vmax.xlane.f32.xlu0 %v1499
    %v1501 = vpop.xlane.xlu0 %1500
    %v1502 = vsub.f32 %v1447, %v1480
    %v1503 = vsub.f32 %v1450, %v1483
    %v1504 = vsub.f32 %v1455, %v1486
    %v1505 = vsub.f32 %v1458, %v1489
    %v1506 = vsub.f32 %v1463, %v1492
    %v1507 = vsub.f32 %v1466, %v1495
    %v1508 = vsub.f32 %v1471, %v1498
    %v1509 = vsub.f32 %v1474, %v1501
    %v1510 = vmul.f32 %v1502, 1.442695
    %v1511 = vpow.pop %v1510
    %v1512 = vmul.f32 %v1503, 1.442695
    %v1513 = vpow.pop %v1512
    %v1514 = vmul.f32 %v1504, 1.442695
    %v1515 = vpow.pop %v1514
    %v1516 = vmul.f32 %v1505, 1.442695
    %v1517 = vpow.pop %v1516
    %v1518 = vmul.f32 %v1506, 1.442695
    %v1519 = vpow.pop %v1518
    %v1520 = vmul.f32 %v1507, 1.442695
    %v1521 = vpow.pop %v1520
    %v1522 = vmul.f32 %v1508, 1.442695
    %v1523 = vpow.pop %v1522
    %v1524 = vmul.f32 %v1509, 1.442695
    %v1525 = vpow.pop %v1524
    %v1526 = vsel %vm1477, %v1511, 0.0
    %1527 = vadd.xlane.f32.xlu0 %v1526
    %v1528 = vpop.xlane.xlu0 %1527
    %v1529 = vsel %vm1477, %v1513, 0.0
    %1530 = vadd.xlane.f32.xlu0 %v1529
    %v1531 = vpop.xlane.xlu0 %1530
    %v1532 = vsel %vm1477, %v1515, 0.0
    %1533 = vadd.xlane.f32.xlu0 %v1532
    %v1534 = vpop.xlane.xlu0 %1533
    %v1535 = vsel %vm1477, %v1517, 0.0
    %1536 = vadd.xlane.f32.xlu0 %v1535
    %v1537 = vpop.xlane.xlu0 %1536
    %v1538 = vsel %vm1477, %v1519, 0.0
    %1539 = vadd.xlane.f32.xlu0 %v1538
    %v1540 = vpop.xlane.xlu0 %1539
    %v1541 = vsel %vm1477, %v1521, 0.0
    %1542 = vadd.xlane.f32.xlu0 %v1541
    %v1543 = vpop.xlane.xlu0 %1542
    %v1544 = vsel %vm1477, %v1523, 0.0
    %1545 = vadd.xlane.f32.xlu0 %v1544
    %v1546 = vpop.xlane.xlu0 %1545
    %v1547 = vsel %vm1477, %v1525, 0.0
    %1548 = vadd.xlane.f32.xlu0 %v1547
    %v1549 = vpop.xlane.xlu0 %1548
    %v1550 = vrcp.pop %v1528
    %v1551 = vrcp.pop %v1531
    %v1552 = vrcp.pop %v1534
    %v1553 = vrcp.pop %v1537
    %v1554 = vrcp.pop %v1540
    %v1555 = vrcp.pop %v1543
    %v1556 = vrcp.pop %v1546
    %v1557 = vrcp.pop %v1549
    %v1558 = vmul.f32 %v1511, %v1550
    %v1559 = vmul.f32 %v1513, %v1551
    %v1560 = vmul.f32 %v1515, %v1552
    %v1561 = vmul.f32 %v1517, %v1553
    %v1562 = vmul.f32 %v1519, %v1554
    %v1563 = vmul.f32 %v1521, %v1555
    %v1564 = vmul.f32 %v1523, %v1556
    %v1565 = vmul.f32 %v1525, %v1557
    %v1566 = vpack.c.bf16 %v1559, %v1558
    %v1567 = vpack.c.bf16 %v1561, %v1560
    %v1568 = vpack.c.bf16 %v1563, %v1562
    %v1569 = vpack.c.bf16 %v1565, %v1564
    %1574 = vrot.lane.b32.xlu0 %v719, 96
    %v1575 = vpop.permute.xlu0 %1574
    %1576 = vrot.lane.b32.xlu0 %v720, 96
    %v1577 = vpop.permute.xlu0 %1576
    %1578 = vrot.lane.b32.xlu0 %v721, 96
    %v1579 = vpop.permute.xlu0 %1578
    %1580 = vrot.lane.b32.xlu0 %v722, 96
    %v1581 = vpop.permute.xlu0 %1580
    %1586 = vrot.lane.b32.xlu0 %v727, 96
    %v1587 = vpop.permute.xlu0 %1586
    %1588 = vrot.lane.b32.xlu0 %v728, 96
    %v1589 = vpop.permute.xlu0 %1588
    %1590 = vrot.lane.b32.xlu0 %v729, 96
    %v1591 = vpop.permute.xlu0 %1590
    %1592 = vrot.lane.b32.xlu0 %v730, 96
    %v1593 = vpop.permute.xlu0 %1592
    %v1595 = vsel %vm779, %v1575, 0
    %v1598 = vsel %vm779, %v1577, 0
    %v1601 = vsel %vm779, %v1579, 0
    %v1604 = vsel %vm779, %v1581, 0
    %v1607 = vsel %vm779, %v1587, 0
    %v1610 = vsel %vm779, %v1589, 0
    %v1613 = vsel %vm779, %v1591, 0
    %v1616 = vsel %vm779, %v1593, 0
    %1618 = vmatprep.subr.bf16.mxu0 0
    %1619 = vmatpush1.bf16.xpose.msra.mxu0 0
    %1620 = vmatprep.subr.bf16.mxu0 0
    %1621 = vmatpush1.bf16.xpose.msra.mxu0 0
    %1622 = vmatprep.subr.bf16.mxu0 0
    %1623 = vmatpush1.bf16.xpose.msra.mxu0 0
    %1624 = vmatprep.subr.bf16.mxu0 0
    %1625 = vmatpush1.bf16.xpose.msra.mxu0 0
    %1626 = vmatprep.subr.bf16.mxu0 0
    %1627 = vmatpush1.bf16.xpose.msra.mxu0 %v1616
    %1628 = vmatprep.subr.bf16.mxu0 0
    %1629 = vmatpush1.bf16.xpose.msra.mxu0 %v1613
    %1630 = vmatprep.subr.bf16.mxu0 0
    %1631 = vmatpush1.bf16.xpose.msra.mxu0 %v1610
    %1632 = vmatprep.subr.bf16.mxu0 0
    %1633 = vmatpush1.bf16.xpose.msra.mxu0 %v1607
    %1634 = vmatprep.subr.bf16.mxu0 0
    %1635 = vmatpush2.bf16.xpose.msra.mxu0 0
    %1636 = vmatprep.subr.bf16.mxu0 0
    %1637 = vmatpush2.bf16.xpose.msra.mxu0 0
    %1638 = vmatprep.subr.bf16.mxu0 0
    %1639 = vmatpush2.bf16.xpose.msra.mxu0 0
    %1640 = vmatprep.subr.bf16.mxu0 0
    %1641 = vmatpush2.bf16.xpose.msra.mxu0 0
    %1642 = vmatprep.subr.bf16.mxu0 0
    %1643 = vmatpush2.bf16.xpose.msra.mxu0 0
    %1644 = vmatprep.subr.bf16.mxu0 0
    %1645 = vmatpush2.bf16.xpose.msra.mxu0 0
    %1646 = vmatprep.subr.bf16.mxu0 0
    %1647 = vmatpush2.bf16.xpose.msra.mxu0 0
    %1648 = vmatprep.subr.bf16.mxu0 0
    %1649 = vmatpush2.bf16.xpose.msra.mxu0 0
    %1650 = vmatprep.mubr.bf16.mxu0 0
    %1651 = vmatmul.mubr.bf16.gmra.mxu0 %v1595
    %v1652 = vpop.f32.mrf.mxu0
    %v1653 = vadd.f32 %v743, %v1652
    %v1654 = vpop.f32.mrf.mxu0
    %v1655 = vpop.f32.mrf.mxu0
    %v1656 = vadd.f32 %v744, %v1655
    %v1657 = vpop.f32.mrf.mxu0
    %1658 = vmatprep.mubr.bf16.mxu0 0
    %1659 = vmatmul.mubr.bf16.gmra.mxu0 %v1598
    %v1660 = vpop.f32.mrf.mxu0
    %v1661 = vadd.f32 %v745, %v1660
    %v1662 = vpop.f32.mrf.mxu0
    %v1663 = vpop.f32.mrf.mxu0
    %v1664 = vadd.f32 %v746, %v1663
    %v1665 = vpop.f32.mrf.mxu0
    %1666 = vmatprep.mubr.bf16.mxu0 0
    %1667 = vmatmul.mubr.bf16.gmra.mxu0 %v1601
    %v1668 = vpop.f32.mrf.mxu0
    %v1669 = vadd.f32 %v747, %v1668
    %v1670 = vpop.f32.mrf.mxu0
    %v1671 = vpop.f32.mrf.mxu0
    %v1672 = vadd.f32 %v748, %v1671
    %v1673 = vpop.f32.mrf.mxu0
    %1674 = vmatprep.mubr.bf16.mxu0 0
    %1675 = vmatmul.mubr.bf16.gmra.mxu0 %v1604
    %v1676 = vpop.f32.mrf.mxu0
    %v1677 = vadd.f32 %v749, %v1676
    %v1678 = vpop.f32.mrf.mxu0
    %v1679 = vpop.f32.mrf.mxu0
    %v1680 = vadd.f32 %v750, %v1679
    %v1681 = vpop.f32.mrf.mxu0
    %1682 = vdwg.mxu0
    %v1683 = vsel %vm1477, %v1653, -inf
    %1684 = vmax.xlane.f32.xlu0 %v1683
    %v1685 = vpop.xlane.xlu0 %1684
    %v1686 = vsel %vm1477, %v1656, -inf
    %1687 = vmax.xlane.f32.xlu0 %v1686
    %v1688 = vpop.xlane.xlu0 %1687
    %v1689 = vsel %vm1477, %v1661, -inf
    %1690 = vmax.xlane.f32.xlu0 %v1689
    %v1691 = vpop.xlane.xlu0 %1690
    %v1692 = vsel %vm1477, %v1664, -inf
    %1693 = vmax.xlane.f32.xlu0 %v1692
    %v1694 = vpop.xlane.xlu0 %1693
    %v1695 = vsel %vm1477, %v1669, -inf
    %1696 = vmax.xlane.f32.xlu0 %v1695
    %v1697 = vpop.xlane.xlu0 %1696
    %v1698 = vsel %vm1477, %v1672, -inf
    %1699 = vmax.xlane.f32.xlu0 %v1698
    %v1700 = vpop.xlane.xlu0 %1699
    %v1701 = vsel %vm1477, %v1677, -inf
    %1702 = vmax.xlane.f32.xlu0 %v1701
    %v1703 = vpop.xlane.xlu0 %1702
    %v1704 = vsel %vm1477, %v1680, -inf
    %1705 = vmax.xlane.f32.xlu0 %v1704
    %v1706 = vpop.xlane.xlu0 %1705
    %v1707 = vsub.f32 %v1653, %v1685
    %v1708 = vsub.f32 %v1656, %v1688
    %v1709 = vsub.f32 %v1661, %v1691
    %v1710 = vsub.f32 %v1664, %v1694
    %v1711 = vsub.f32 %v1669, %v1697
    %v1712 = vsub.f32 %v1672, %v1700
    %v1713 = vsub.f32 %v1677, %v1703
    %v1714 = vsub.f32 %v1680, %v1706
    %v1715 = vmul.f32 %v1707, 1.442695
    %v1716 = vpow.pop %v1715
    %v1717 = vmul.f32 %v1708, 1.442695
    %v1718 = vpow.pop %v1717
    %v1719 = vmul.f32 %v1709, 1.442695
    %v1720 = vpow.pop %v1719
    %v1721 = vmul.f32 %v1710, 1.442695
    %v1722 = vpow.pop %v1721
    %v1723 = vmul.f32 %v1711, 1.442695
    %v1724 = vpow.pop %v1723
    %v1725 = vmul.f32 %v1712, 1.442695
    %v1726 = vpow.pop %v1725
    %v1727 = vmul.f32 %v1713, 1.442695
    %v1728 = vpow.pop %v1727
    %v1729 = vmul.f32 %v1714, 1.442695
    %v1730 = vpow.pop %v1729
    %v1731 = vsel %vm1477, %v1716, 0.0
    %1732 = vadd.xlane.f32.xlu0 %v1731
    %v1733 = vpop.xlane.xlu0 %1732
    %v1734 = vsel %vm1477, %v1718, 0.0
    %1735 = vadd.xlane.f32.xlu0 %v1734
    %v1736 = vpop.xlane.xlu0 %1735
    %v1737 = vsel %vm1477, %v1720, 0.0
    %1738 = vadd.xlane.f32.xlu0 %v1737
    %v1739 = vpop.xlane.xlu0 %1738
    %v1740 = vsel %vm1477, %v1722, 0.0
    %1741 = vadd.xlane.f32.xlu0 %v1740
    %v1742 = vpop.xlane.xlu0 %1741
    %v1743 = vsel %vm1477, %v1724, 0.0
    %1744 = vadd.xlane.f32.xlu0 %v1743
    %v1745 = vpop.xlane.xlu0 %1744
    %v1746 = vsel %vm1477, %v1726, 0.0
    %1747 = vadd.xlane.f32.xlu0 %v1746
    %v1748 = vpop.xlane.xlu0 %1747
    %v1749 = vsel %vm1477, %v1728, 0.0
    %1750 = vadd.xlane.f32.xlu0 %v1749
    %v1751 = vpop.xlane.xlu0 %1750
    %v1752 = vsel %vm1477, %v1730, 0.0
    %1753 = vadd.xlane.f32.xlu0 %v1752
    %v1754 = vpop.xlane.xlu0 %1753
    %v1755 = vrcp.pop %v1733
    %v1756 = vrcp.pop %v1736
    %v1757 = vrcp.pop %v1739
    %v1758 = vrcp.pop %v1742
    %v1759 = vrcp.pop %v1745
    %v1760 = vrcp.pop %v1748
    %v1761 = vrcp.pop %v1751
    %v1762 = vrcp.pop %v1754
    %v1763 = vmul.f32 %v1716, %v1755
    %v1764 = vmul.f32 %v1718, %v1756
    %v1765 = vmul.f32 %v1720, %v1757
    %v1766 = vmul.f32 %v1722, %v1758
    %v1767 = vmul.f32 %v1724, %v1759
    %v1768 = vmul.f32 %v1726, %v1760
    %v1769 = vmul.f32 %v1728, %v1761
    %v1770 = vmul.f32 %v1730, %v1762
    %v1771 = vpack.c.bf16 %v1764, %v1763
    %v1772 = vpack.c.bf16 %v1766, %v1765
    %v1773 = vpack.c.bf16 %v1768, %v1767
    %v1774 = vpack.c.bf16 %v1770, %v1769
    %v1776 = vsel %vm1477, %v1771, 0
    %v1779 = vsel %vm1477, %v1772, 0
    %v1782 = vsel %vm1477, %v1773, 0
    %v1785 = vsel %vm1477, %v1774, 0
    %1787 = vmatprep.subr.bf16.mxu0 0
    %1788 = vmatpush1.bf16.msra.mxu0 0
    %1789 = vmatprep.subr.bf16.mxu0 0
    %1790 = vmatpush1.bf16.msra.mxu0 0
    %1791 = vmatprep.subr.bf16.mxu0 0
    %1792 = vmatpush1.bf16.msra.mxu0 0
    %1793 = vmatprep.subr.bf16.mxu0 0
    %1794 = vmatpush1.bf16.msra.mxu0 0
    %1795 = vmatprep.subr.bf16.mxu0 0
    %1796 = vmatpush1.bf16.msra.mxu0 %v1069
    %1797 = vmatprep.subr.bf16.mxu0 0
    %1798 = vmatpush1.bf16.msra.mxu0 %v1068
    %1799 = vmatprep.subr.bf16.mxu0 0
    %1800 = vmatpush1.bf16.msra.mxu0 %v1067
    %1801 = vmatprep.subr.bf16.mxu0 0
    %1802 = vmatpush1.bf16.msra.mxu0 %v1066
    %1803 = vmatprep.subr.bf16.mxu0 0
    %1804 = vmatpush2.bf16.msra.mxu0 0
    %1805 = vmatprep.subr.bf16.mxu0 0
    %1806 = vmatpush2.bf16.msra.mxu0 0
    %1807 = vmatprep.subr.bf16.mxu0 0
    %1808 = vmatpush2.bf16.msra.mxu0 0
    %1809 = vmatprep.subr.bf16.mxu0 0
    %1810 = vmatpush2.bf16.msra.mxu0 0
    %1811 = vmatprep.subr.bf16.mxu0 0
    %1812 = vmatpush2.bf16.msra.mxu0 0
    %1813 = vmatprep.subr.bf16.mxu0 0
    %1814 = vmatpush2.bf16.msra.mxu0 0
    %1815 = vmatprep.subr.bf16.mxu0 0
    %1816 = vmatpush2.bf16.msra.mxu0 0
    %1817 = vmatprep.subr.bf16.mxu0 0
    %1818 = vmatpush2.bf16.msra.mxu0 0
    %1819 = vmatprep.mubr.bf16.mxu0 0
    %1820 = vmatmul.mubr.bf16.gmra.mxu0 %v1776
    %v1821 = vpop.f32.mrf.mxu0
    %v1822 = vadd.f32 0.0, %v1821
    %v1823 = vpop.f32.mrf.mxu0
    %v1824 = vpop.f32.mrf.mxu0
    %v1825 = vadd.f32 0.0, %v1824
    %v1826 = vpop.f32.mrf.mxu0
    %1827 = vmatprep.mubr.bf16.mxu0 0
    %1828 = vmatmul.mubr.bf16.gmra.mxu0 %v1779
    %v1829 = vpop.f32.mrf.mxu0
    %v1830 = vadd.f32 0.0, %v1829
    %v1831 = vpop.f32.mrf.mxu0
    %v1832 = vpop.f32.mrf.mxu0
    %v1833 = vadd.f32 0.0, %v1832
    %v1834 = vpop.f32.mrf.mxu0
    %1835 = vmatprep.mubr.bf16.mxu0 0
    %1836 = vmatmul.mubr.bf16.gmra.mxu0 %v1782
    %v1837 = vpop.f32.mrf.mxu0
    %v1838 = vadd.f32 0.0, %v1837
    %v1839 = vpop.f32.mrf.mxu0
    %v1840 = vpop.f32.mrf.mxu0
    %v1841 = vadd.f32 0.0, %v1840
    %v1842 = vpop.f32.mrf.mxu0
    %1843 = vmatprep.mubr.bf16.mxu0 0
    %1844 = vmatmul.mubr.bf16.gmra.mxu0 %v1785
    %v1845 = vpop.f32.mrf.mxu0
    %v1846 = vadd.f32 0.0, %v1845
    %v1847 = vpop.f32.mrf.mxu0
    %v1848 = vpop.f32.mrf.mxu0
    %v1849 = vadd.f32 0.0, %v1848
    %v1850 = vpop.f32.mrf.mxu0
    %1851 = vdwg.mxu0
    %v1853 = vsel %vm1477, %v1566, 0
    %v1856 = vsel %vm1477, %v1567, 0
    %v1859 = vsel %vm1477, %v1568, 0
    %v1862 = vsel %vm1477, %v1569, 0
    %1864 = vmatprep.subr.bf16.mxu0 0
    %1865 = vmatpush1.bf16.msra.mxu0 0
    %1866 = vmatprep.subr.bf16.mxu0 0
    %1867 = vmatpush1.bf16.msra.mxu0 0
    %1868 = vmatprep.subr.bf16.mxu0 0
    %1869 = vmatpush1.bf16.msra.mxu0 0
    %1870 = vmatprep.subr.bf16.mxu0 0
    %1871 = vmatpush1.bf16.msra.mxu0 0
    %1872 = vmatprep.subr.bf16.mxu0 0
    %1873 = vmatpush1.bf16.msra.mxu0 %v904
    %1874 = vmatprep.subr.bf16.mxu0 0
    %1875 = vmatpush1.bf16.msra.mxu0 %v903
    %1876 = vmatprep.subr.bf16.mxu0 0
    %1877 = vmatpush1.bf16.msra.mxu0 %v902
    %1878 = vmatprep.subr.bf16.mxu0 0
    %1879 = vmatpush1.bf16.msra.mxu0 %v901
    %1880 = vmatprep.subr.bf16.mxu0 0
    %1881 = vmatpush2.bf16.msra.mxu0 0
    %1882 = vmatprep.subr.bf16.mxu0 0
    %1883 = vmatpush2.bf16.msra.mxu0 0
    %1884 = vmatprep.subr.bf16.mxu0 0
    %1885 = vmatpush2.bf16.msra.mxu0 0
    %1886 = vmatprep.subr.bf16.mxu0 0
    %1887 = vmatpush2.bf16.msra.mxu0 0
    %1888 = vmatprep.subr.bf16.mxu0 0
    %1889 = vmatpush2.bf16.msra.mxu0 0
    %1890 = vmatprep.subr.bf16.mxu0 0
    %1891 = vmatpush2.bf16.msra.mxu0 0
    %1892 = vmatprep.subr.bf16.mxu0 0
    %1893 = vmatpush2.bf16.msra.mxu0 0
    %1894 = vmatprep.subr.bf16.mxu0 0
    %1895 = vmatpush2.bf16.msra.mxu0 0
    %1896 = vmatprep.mubr.bf16.mxu0 0
    %1897 = vmatmul.mubr.bf16.gmra.mxu0 %v1853
    %v1898 = vpop.f32.mrf.mxu0
    %v1899 = vadd.f32 %v1822, %v1898
    %v1900 = vpop.f32.mrf.mxu0
    %v1901 = vpop.f32.mrf.mxu0
    %v1902 = vadd.f32 %v1825, %v1901
    %v1903 = vpop.f32.mrf.mxu0
    %1904 = vmatprep.mubr.bf16.mxu0 0
    %1905 = vmatmul.mubr.bf16.gmra.mxu0 %v1856
    %v1906 = vpop.f32.mrf.mxu0
    %v1907 = vadd.f32 %v1830, %v1906
    %v1908 = vpop.f32.mrf.mxu0
    %v1909 = vpop.f32.mrf.mxu0
    %v1910 = vadd.f32 %v1833, %v1909
    %v1911 = vpop.f32.mrf.mxu0
    %1912 = vmatprep.mubr.bf16.mxu0 0
    %1913 = vmatmul.mubr.bf16.gmra.mxu0 %v1859
    %v1914 = vpop.f32.mrf.mxu0
    %v1915 = vadd.f32 %v1838, %v1914
    %v1916 = vpop.f32.mrf.mxu0
    %v1917 = vpop.f32.mrf.mxu0
    %v1918 = vadd.f32 %v1841, %v1917
    %v1919 = vpop.f32.mrf.mxu0
    %1920 = vmatprep.mubr.bf16.mxu0 0
    %1921 = vmatmul.mubr.bf16.gmra.mxu0 %v1862
    %v1922 = vpop.f32.mrf.mxu0
    %v1923 = vadd.f32 %v1846, %v1922
    %v1924 = vpop.f32.mrf.mxu0
    %v1925 = vpop.f32.mrf.mxu0
    %v1926 = vadd.f32 %v1849, %v1925
    %v1927 = vpop.f32.mrf.mxu0
    %1928 = vdwg.mxu0
    %1929 = vrot.lane.b32.xlu0 %v719, 64
    %v1930 = vpop.permute.xlu0 %1929
    %1931 = vrot.lane.b32.xlu0 %v720, 64
    %v1932 = vpop.permute.xlu0 %1931
    %1933 = vrot.lane.b32.xlu0 %v721, 64
    %v1934 = vpop.permute.xlu0 %1933
    %1935 = vrot.lane.b32.xlu0 %v722, 64
    %v1936 = vpop.permute.xlu0 %1935
    %1937 = vrot.lane.b32.xlu0 %v727, 64
    %v1938 = vpop.permute.xlu0 %1937
    %1939 = vrot.lane.b32.xlu0 %v728, 64
    %v1940 = vpop.permute.xlu0 %1939
    %1941 = vrot.lane.b32.xlu0 %v729, 64
    %v1942 = vpop.permute.xlu0 %1941
    %1943 = vrot.lane.b32.xlu0 %v730, 64
    %v1944 = vpop.permute.xlu0 %1943
    %v1946 = vsel %vm779, %v1930, 0
    %v1949 = vsel %vm779, %v1932, 0
    %v1952 = vsel %vm779, %v1934, 0
    %v1955 = vsel %vm779, %v1936, 0
    %v1958 = vsel %vm779, %v1938, 0
    %v1961 = vsel %vm779, %v1940, 0
    %v1964 = vsel %vm779, %v1942, 0
    %v1967 = vsel %vm779, %v1944, 0
    %1969 = vmatprep.subr.bf16.mxu0 0
    %1970 = vmatpush1.bf16.xpose.msra.mxu0 0
    %1971 = vmatprep.subr.bf16.mxu0 0
    %1972 = vmatpush1.bf16.xpose.msra.mxu0 0
    %1973 = vmatprep.subr.bf16.mxu0 0
    %1974 = vmatpush1.bf16.xpose.msra.mxu0 0
    %1975 = vmatprep.subr.bf16.mxu0 0
    %1976 = vmatpush1.bf16.xpose.msra.mxu0 0
    %1977 = vmatprep.subr.bf16.mxu0 0
    %1978 = vmatpush1.bf16.xpose.msra.mxu0 %v1967
    %1979 = vmatprep.subr.bf16.mxu0 0
    %1980 = vmatpush1.bf16.xpose.msra.mxu0 %v1964
    %1981 = vmatprep.subr.bf16.mxu0 0
    %1982 = vmatpush1.bf16.xpose.msra.mxu0 %v1961
    %1983 = vmatprep.subr.bf16.mxu0 0
    %1984 = vmatpush1.bf16.xpose.msra.mxu0 %v1958
    %1985 = vmatprep.subr.bf16.mxu0 0
    %1986 = vmatpush2.bf16.xpose.msra.mxu0 0
    %1987 = vmatprep.subr.bf16.mxu0 0
    %1988 = vmatpush2.bf16.xpose.msra.mxu0 0
    %1989 = vmatprep.subr.bf16.mxu0 0
    %1990 = vmatpush2.bf16.xpose.msra.mxu0 0
    %1991 = vmatprep.subr.bf16.mxu0 0
    %1992 = vmatpush2.bf16.xpose.msra.mxu0 0
    %1993 = vmatprep.subr.bf16.mxu0 0
    %1994 = vmatpush2.bf16.xpose.msra.mxu0 0
    %1995 = vmatprep.subr.bf16.mxu0 0
    %1996 = vmatpush2.bf16.xpose.msra.mxu0 0
    %1997 = vmatprep.subr.bf16.mxu0 0
    %1998 = vmatpush2.bf16.xpose.msra.mxu0 0
    %1999 = vmatprep.subr.bf16.mxu0 0
    %2000 = vmatpush2.bf16.xpose.msra.mxu0 0
    %2001 = vmatprep.mubr.bf16.mxu0 0
    %2002 = vmatmul.mubr.bf16.gmra.mxu0 %v1946
    %v2003 = vpop.f32.mrf.mxu0
    %v2004 = vadd.f32 %v743, %v2003
    %v2005 = vpop.f32.mrf.mxu0
    %v2006 = vpop.f32.mrf.mxu0
    %v2007 = vadd.f32 %v744, %v2006
    %v2008 = vpop.f32.mrf.mxu0
    %2009 = vmatprep.mubr.bf16.mxu0 0
    %2010 = vmatmul.mubr.bf16.gmra.mxu0 %v1949
    %v2011 = vpop.f32.mrf.mxu0
    %v2012 = vadd.f32 %v745, %v2011
    %v2013 = vpop.f32.mrf.mxu0
    %v2014 = vpop.f32.mrf.mxu0
    %v2015 = vadd.f32 %v746, %v2014
    %v2016 = vpop.f32.mrf.mxu0
    %2017 = vmatprep.mubr.bf16.mxu0 0
    %2018 = vmatmul.mubr.bf16.gmra.mxu0 %v1952
    %v2019 = vpop.f32.mrf.mxu0
    %v2020 = vadd.f32 %v747, %v2019
    %v2021 = vpop.f32.mrf.mxu0
    %v2022 = vpop.f32.mrf.mxu0
    %v2023 = vadd.f32 %v748, %v2022
    %v2024 = vpop.f32.mrf.mxu0
    %2025 = vmatprep.mubr.bf16.mxu0 0
    %2026 = vmatmul.mubr.bf16.gmra.mxu0 %v1955
    %v2027 = vpop.f32.mrf.mxu0
    %v2028 = vadd.f32 %v749, %v2027
    %v2029 = vpop.f32.mrf.mxu0
    %v2030 = vpop.f32.mrf.mxu0
    %v2031 = vadd.f32 %v750, %v2030
    %v2032 = vpop.f32.mrf.mxu0
    %2033 = vdwg.mxu0
    %v2034 = vsel %vm1477, %v2004, -inf
    %2035 = vmax.xlane.f32.xlu0 %v2034
    %v2036 = vpop.xlane.xlu0 %2035
    %v2037 = vsel %vm1477, %v2007, -inf
    %2038 = vmax.xlane.f32.xlu0 %v2037
    %v2039 = vpop.xlane.xlu0 %2038
    %v2040 = vsel %vm1477, %v2012, -inf
    %2041 = vmax.xlane.f32.xlu0 %v2040
    %v2042 = vpop.xlane.xlu0 %2041
    %v2043 = vsel %vm1477, %v2015, -inf
    %2044 = vmax.xlane.f32.xlu0 %v2043
    %v2045 = vpop.xlane.xlu0 %2044
    %v2046 = vsel %vm1477, %v2020, -inf
    %2047 = vmax.xlane.f32.xlu0 %v2046
    %v2048 = vpop.xlane.xlu0 %2047
    %v2049 = vsel %vm1477, %v2023, -inf
    %2050 = vmax.xlane.f32.xlu0 %v2049
    %v2051 = vpop.xlane.xlu0 %2050
    %v2052 = vsel %vm1477, %v2028, -inf
    %2053 = vmax.xlane.f32.xlu0 %v2052
    %v2054 = vpop.xlane.xlu0 %2053
    %v2055 = vsel %vm1477, %v2031, -inf
    %2056 = vmax.xlane.f32.xlu0 %v2055
    %v2057 = vpop.xlane.xlu0 %2056
    %v2058 = vsub.f32 %v2004, %v2036
    %v2059 = vsub.f32 %v2007, %v2039
    %v2060 = vsub.f32 %v2012, %v2042
    %v2061 = vsub.f32 %v2015, %v2045
    %v2062 = vsub.f32 %v2020, %v2048
    %v2063 = vsub.f32 %v2023, %v2051
    %v2064 = vsub.f32 %v2028, %v2054
    %v2065 = vsub.f32 %v2031, %v2057
    %v2066 = vmul.f32 %v2058, 1.442695
    %v2067 = vpow.pop %v2066
    %v2068 = vmul.f32 %v2059, 1.442695
    %v2069 = vpow.pop %v2068
    %v2070 = vmul.f32 %v2060, 1.442695
    %v2071 = vpow.pop %v2070
    %v2072 = vmul.f32 %v2061, 1.442695
    %v2073 = vpow.pop %v2072
    %v2074 = vmul.f32 %v2062, 1.442695
    %v2075 = vpow.pop %v2074
    %v2076 = vmul.f32 %v2063, 1.442695
    %v2077 = vpow.pop %v2076
    %v2078 = vmul.f32 %v2064, 1.442695
    %v2079 = vpow.pop %v2078
    %v2080 = vmul.f32 %v2065, 1.442695
    %v2081 = vpow.pop %v2080
    %v2082 = vsel %vm1477, %v2067, 0.0
    %2083 = vadd.xlane.f32.xlu0 %v2082
    %v2084 = vpop.xlane.xlu0 %2083
    %v2085 = vsel %vm1477, %v2069, 0.0
    %2086 = vadd.xlane.f32.xlu0 %v2085
    %v2087 = vpop.xlane.xlu0 %2086
    %v2088 = vsel %vm1477, %v2071, 0.0
    %2089 = vadd.xlane.f32.xlu0 %v2088
    %v2090 = vpop.xlane.xlu0 %2089
    %v2091 = vsel %vm1477, %v2073, 0.0
    %2092 = vadd.xlane.f32.xlu0 %v2091
    %v2093 = vpop.xlane.xlu0 %2092
    %v2094 = vsel %vm1477, %v2075, 0.0
    %2095 = vadd.xlane.f32.xlu0 %v2094
    %v2096 = vpop.xlane.xlu0 %2095
    %v2097 = vsel %vm1477, %v2077, 0.0
    %2098 = vadd.xlane.f32.xlu0 %v2097
    %v2099 = vpop.xlane.xlu0 %2098
    %v2100 = vsel %vm1477, %v2079, 0.0
    %2101 = vadd.xlane.f32.xlu0 %v2100
    %v2102 = vpop.xlane.xlu0 %2101
    %v2103 = vsel %vm1477, %v2081, 0.0
    %2104 = vadd.xlane.f32.xlu0 %v2103
    %v2105 = vpop.xlane.xlu0 %2104
    %v2106 = vrcp.pop %v2084
    %v2107 = vrcp.pop %v2087
    %v2108 = vrcp.pop %v2090
    %v2109 = vrcp.pop %v2093
    %v2110 = vrcp.pop %v2096
    %v2111 = vrcp.pop %v2099
    %v2112 = vrcp.pop %v2102
    %v2113 = vrcp.pop %v2105
    %v2114 = vmul.f32 %v2067, %v2106
    %v2115 = vmul.f32 %v2069, %v2107
    %v2116 = vmul.f32 %v2071, %v2108
    %v2117 = vmul.f32 %v2073, %v2109
    %v2118 = vmul.f32 %v2075, %v2110
    %v2119 = vmul.f32 %v2077, %v2111
    %v2120 = vmul.f32 %v2079, %v2112
    %v2121 = vmul.f32 %v2081, %v2113
    %v2122 = vpack.c.bf16 %v2115, %v2114
    %v2123 = vpack.c.bf16 %v2117, %v2116
    %v2124 = vpack.c.bf16 %v2119, %v2118
    %v2125 = vpack.c.bf16 %v2121, %v2120
    %v2127 = vsel %vm1477, %v2122, 0
    %v2130 = vsel %vm1477, %v2123, 0
    %v2133 = vsel %vm1477, %v2124, 0
    %v2136 = vsel %vm1477, %v2125, 0
    %2138 = vmatprep.subr.bf16.mxu0 0
    %2139 = vmatpush1.bf16.msra.mxu0 0
    %2140 = vmatprep.subr.bf16.mxu0 0
    %2141 = vmatpush1.bf16.msra.mxu0 0
    %2142 = vmatprep.subr.bf16.mxu0 0
    %2143 = vmatpush1.bf16.msra.mxu0 0
    %2144 = vmatprep.subr.bf16.mxu0 0
    %2145 = vmatpush1.bf16.msra.mxu0 0
    %2146 = vmatprep.subr.bf16.mxu0 0
    %2147 = vmatpush1.bf16.msra.mxu0 %v1226
    %2148 = vmatprep.subr.bf16.mxu0 0
    %2149 = vmatpush1.bf16.msra.mxu0 %v1225
    %2150 = vmatprep.subr.bf16.mxu0 0
    %2151 = vmatpush1.bf16.msra.mxu0 %v1224
    %2152 = vmatprep.subr.bf16.mxu0 0
    %2153 = vmatpush1.bf16.msra.mxu0 %v1223
    %2154 = vmatprep.subr.bf16.mxu0 0
    %2155 = vmatpush2.bf16.msra.mxu0 0
    %2156 = vmatprep.subr.bf16.mxu0 0
    %2157 = vmatpush2.bf16.msra.mxu0 0
    %2158 = vmatprep.subr.bf16.mxu0 0
    %2159 = vmatpush2.bf16.msra.mxu0 0
    %2160 = vmatprep.subr.bf16.mxu0 0
    %2161 = vmatpush2.bf16.msra.mxu0 0
    %2162 = vmatprep.subr.bf16.mxu0 0
    %2163 = vmatpush2.bf16.msra.mxu0 0
    %2164 = vmatprep.subr.bf16.mxu0 0
    %2165 = vmatpush2.bf16.msra.mxu0 0
    %2166 = vmatprep.subr.bf16.mxu0 0
    %2167 = vmatpush2.bf16.msra.mxu0 0
    %2168 = vmatprep.subr.bf16.mxu0 0
    %2169 = vmatpush2.bf16.msra.mxu0 0
    %2170 = vmatprep.mubr.bf16.mxu0 0
    %2171 = vmatmul.mubr.bf16.gmra.mxu0 %v2127
    %v2172 = vpop.f32.mrf.mxu0
    %v2173 = vadd.f32 0.0, %v2172
    %v2174 = vpop.f32.mrf.mxu0
    %v2175 = vpop.f32.mrf.mxu0
    %v2176 = vadd.f32 0.0, %v2175
    %v2177 = vpop.f32.mrf.mxu0
    %2178 = vmatprep.mubr.bf16.mxu0 0
    %2179 = vmatmul.mubr.bf16.gmra.mxu0 %v2130
    %v2180 = vpop.f32.mrf.mxu0
    %v2181 = vadd.f32 0.0, %v2180
    %v2182 = vpop.f32.mrf.mxu0
    %v2183 = vpop.f32.mrf.mxu0
    %v2184 = vadd.f32 0.0, %v2183
    %v2185 = vpop.f32.mrf.mxu0
    %2186 = vmatprep.mubr.bf16.mxu0 0
    %2187 = vmatmul.mubr.bf16.gmra.mxu0 %v2133
    %v2188 = vpop.f32.mrf.mxu0
    %v2189 = vadd.f32 0.0, %v2188
    %v2190 = vpop.f32.mrf.mxu0
    %v2191 = vpop.f32.mrf.mxu0
    %v2192 = vadd.f32 0.0, %v2191
    %v2193 = vpop.f32.mrf.mxu0
    %2194 = vmatprep.mubr.bf16.mxu0 0
    %2195 = vmatmul.mubr.bf16.gmra.mxu0 %v2136
    %v2196 = vpop.f32.mrf.mxu0
    %v2197 = vadd.f32 0.0, %v2196
    %v2198 = vpop.f32.mrf.mxu0
    %v2199 = vpop.f32.mrf.mxu0
    %v2200 = vadd.f32 0.0, %v2199
    %v2201 = vpop.f32.mrf.mxu0
    %2202 = vdwg.mxu0
    %v2203 = vadd.f32 %v1899, %v2173
    %v2204 = vadd.f32 %v1902, %v2176
    %v2205 = vadd.f32 %v1907, %v2181
    %v2206 = vadd.f32 %v1910, %v2184
    %v2207 = vadd.f32 %v1915, %v2189
    %v2208 = vadd.f32 %v1918, %v2192
    %v2209 = vadd.f32 %v1923, %v2197
    %v2210 = vadd.f32 %v1926, %v2200
    %2211 = vrot.lane.b32.xlu0 %v719, 32
    %v2212 = vpop.permute.xlu0 %2211
    %2213 = vrot.lane.b32.xlu0 %v720, 32
    %v2214 = vpop.permute.xlu0 %2213
    %2215 = vrot.lane.b32.xlu0 %v721, 32
    %v2216 = vpop.permute.xlu0 %2215
    %2217 = vrot.lane.b32.xlu0 %v722, 32
    %v2218 = vpop.permute.xlu0 %2217
    %2219 = vrot.lane.b32.xlu0 %v727, 32
    %v2220 = vpop.permute.xlu0 %2219
    %2221 = vrot.lane.b32.xlu0 %v728, 32
    %v2222 = vpop.permute.xlu0 %2221
    %2223 = vrot.lane.b32.xlu0 %v729, 32
    %v2224 = vpop.permute.xlu0 %2223
    %2225 = vrot.lane.b32.xlu0 %v730, 32
    %v2226 = vpop.permute.xlu0 %2225
    %v2228 = vsel %vm779, %v2212, 0
    %v2231 = vsel %vm779, %v2214, 0
    %v2234 = vsel %vm779, %v2216, 0
    %v2237 = vsel %vm779, %v2218, 0
    %v2240 = vsel %vm779, %v2220, 0
    %v2243 = vsel %vm779, %v2222, 0
    %v2246 = vsel %vm779, %v2224, 0
    %v2249 = vsel %vm779, %v2226, 0
    %2251 = vmatprep.subr.bf16.mxu0 0
    %2252 = vmatpush1.bf16.xpose.msra.mxu0 0
    %2253 = vmatprep.subr.bf16.mxu0 0
    %2254 = vmatpush1.bf16.xpose.msra.mxu0 0
    %2255 = vmatprep.subr.bf16.mxu0 0
    %2256 = vmatpush1.bf16.xpose.msra.mxu0 0
    %2257 = vmatprep.subr.bf16.mxu0 0
    %2258 = vmatpush1.bf16.xpose.msra.mxu0 0
    %2259 = vmatprep.subr.bf16.mxu0 0
    %2260 = vmatpush1.bf16.xpose.msra.mxu0 %v2249
    %2261 = vmatprep.subr.bf16.mxu0 0
    %2262 = vmatpush1.bf16.xpose.msra.mxu0 %v2246
    %2263 = vmatprep.subr.bf16.mxu0 0
    %2264 = vmatpush1.bf16.xpose.msra.mxu0 %v2243
    %2265 = vmatprep.subr.bf16.mxu0 0
    %2266 = vmatpush1.bf16.xpose.msra.mxu0 %v2240
    %2267 = vmatprep.subr.bf16.mxu0 0
    %2268 = vmatpush2.bf16.xpose.msra.mxu0 0
    %2269 = vmatprep.subr.bf16.mxu0 0
    %2270 = vmatpush2.bf16.xpose.msra.mxu0 0
    %2271 = vmatprep.subr.bf16.mxu0 0
    %2272 = vmatpush2.bf16.xpose.msra.mxu0 0
    %2273 = vmatprep.subr.bf16.mxu0 0
    %2274 = vmatpush2.bf16.xpose.msra.mxu0 0
    %2275 = vmatprep.subr.bf16.mxu0 0
    %2276 = vmatpush2.bf16.xpose.msra.mxu0 0
    %2277 = vmatprep.subr.bf16.mxu0 0
    %2278 = vmatpush2.bf16.xpose.msra.mxu0 0
    %2279 = vmatprep.subr.bf16.mxu0 0
    %2280 = vmatpush2.bf16.xpose.msra.mxu0 0
    %2281 = vmatprep.subr.bf16.mxu0 0
    %2282 = vmatpush2.bf16.xpose.msra.mxu0 0
    %2283 = vmatprep.mubr.bf16.mxu0 0
    %2284 = vmatmul.mubr.bf16.gmra.mxu0 %v2228
    %v2285 = vpop.f32.mrf.mxu0
    %v2286 = vadd.f32 %v743, %v2285
    %v2287 = vpop.f32.mrf.mxu0
    %v2288 = vpop.f32.mrf.mxu0
    %v2289 = vadd.f32 %v744, %v2288
    %v2290 = vpop.f32.mrf.mxu0
    %2291 = vmatprep.mubr.bf16.mxu0 0
    %2292 = vmatmul.mubr.bf16.gmra.mxu0 %v2231
    %v2293 = vpop.f32.mrf.mxu0
    %v2294 = vadd.f32 %v745, %v2293
    %v2295 = vpop.f32.mrf.mxu0
    %v2296 = vpop.f32.mrf.mxu0
    %v2297 = vadd.f32 %v746, %v2296
    %v2298 = vpop.f32.mrf.mxu0
    %2299 = vmatprep.mubr.bf16.mxu0 0
    %2300 = vmatmul.mubr.bf16.gmra.mxu0 %v2234
    %v2301 = vpop.f32.mrf.mxu0
    %v2302 = vadd.f32 %v747, %v2301
    %v2303 = vpop.f32.mrf.mxu0
    %v2304 = vpop.f32.mrf.mxu0
    %v2305 = vadd.f32 %v748, %v2304
    %v2306 = vpop.f32.mrf.mxu0
    %2307 = vmatprep.mubr.bf16.mxu0 0
    %2308 = vmatmul.mubr.bf16.gmra.mxu0 %v2237
    %v2309 = vpop.f32.mrf.mxu0
    %v2310 = vadd.f32 %v749, %v2309
    %v2311 = vpop.f32.mrf.mxu0
    %v2312 = vpop.f32.mrf.mxu0
    %v2313 = vadd.f32 %v750, %v2312
    %v2314 = vpop.f32.mrf.mxu0
    %2315 = vdwg.mxu0
    %v2316 = vsel %vm1477, %v2286, -inf
    %2317 = vmax.xlane.f32.xlu0 %v2316
    %v2318 = vpop.xlane.xlu0 %2317
    %v2319 = vsel %vm1477, %v2289, -inf
    %2320 = vmax.xlane.f32.xlu0 %v2319
    %v2321 = vpop.xlane.xlu0 %2320
    %v2322 = vsel %vm1477, %v2294, -inf
    %2323 = vmax.xlane.f32.xlu0 %v2322
    %v2324 = vpop.xlane.xlu0 %2323
    %v2325 = vsel %vm1477, %v2297, -inf
    %2326 = vmax.xlane.f32.xlu0 %v2325
    %v2327 = vpop.xlane.xlu0 %2326
    %v2328 = vsel %vm1477, %v2302, -inf
    %2329 = vmax.xlane.f32.xlu0 %v2328
    %v2330 = vpop.xlane.xlu0 %2329
    %v2331 = vsel %vm1477, %v2305, -inf
    %2332 = vmax.xlane.f32.xlu0 %v2331
    %v2333 = vpop.xlane.xlu0 %2332
    %v2334 = vsel %vm1477, %v2310, -inf
    %2335 = vmax.xlane.f32.xlu0 %v2334
    %v2336 = vpop.xlane.xlu0 %2335
    %v2337 = vsel %vm1477, %v2313, -inf
    %2338 = vmax.xlane.f32.xlu0 %v2337
    %v2339 = vpop.xlane.xlu0 %2338
    %v2340 = vsub.f32 %v2286, %v2318
    %v2341 = vsub.f32 %v2289, %v2321
    %v2342 = vsub.f32 %v2294, %v2324
    %v2343 = vsub.f32 %v2297, %v2327
    %v2344 = vsub.f32 %v2302, %v2330
    %v2345 = vsub.f32 %v2305, %v2333
    %v2346 = vsub.f32 %v2310, %v2336
    %v2347 = vsub.f32 %v2313, %v2339
    %v2348 = vmul.f32 %v2340, 1.442695
    %v2349 = vpow.pop %v2348
    %v2350 = vmul.f32 %v2341, 1.442695
    %v2351 = vpow.pop %v2350
    %v2352 = vmul.f32 %v2342, 1.442695
    %v2353 = vpow.pop %v2352
    %v2354 = vmul.f32 %v2343, 1.442695
    %v2355 = vpow.pop %v2354
    %v2356 = vmul.f32 %v2344, 1.442695
    %v2357 = vpow.pop %v2356
    %v2358 = vmul.f32 %v2345, 1.442695
    %v2359 = vpow.pop %v2358
    %v2360 = vmul.f32 %v2346, 1.442695
    %v2361 = vpow.pop %v2360
    %v2362 = vmul.f32 %v2347, 1.442695
    %v2363 = vpow.pop %v2362
    %v2364 = vsel %vm1477, %v2349, 0.0
    %2365 = vadd.xlane.f32.xlu0 %v2364
    %v2366 = vpop.xlane.xlu0 %2365
    %v2367 = vsel %vm1477, %v2351, 0.0
    %2368 = vadd.xlane.f32.xlu0 %v2367
    %v2369 = vpop.xlane.xlu0 %2368
    %v2370 = vsel %vm1477, %v2353, 0.0
    %2371 = vadd.xlane.f32.xlu0 %v2370
    %v2372 = vpop.xlane.xlu0 %2371
    %v2373 = vsel %vm1477, %v2355, 0.0
    %2374 = vadd.xlane.f32.xlu0 %v2373
    %v2375 = vpop.xlane.xlu0 %2374
    %v2376 = vsel %vm1477, %v2357, 0.0
    %2377 = vadd.xlane.f32.xlu0 %v2376
    %v2378 = vpop.xlane.xlu0 %2377
    %v2379 = vsel %vm1477, %v2359, 0.0
    %2380 = vadd.xlane.f32.xlu0 %v2379
    %v2381 = vpop.xlane.xlu0 %2380
    %v2382 = vsel %vm1477, %v2361, 0.0
    %2383 = vadd.xlane.f32.xlu0 %v2382
    %v2384 = vpop.xlane.xlu0 %2383
    %v2385 = vsel %vm1477, %v2363, 0.0
    %2386 = vadd.xlane.f32.xlu0 %v2385
    %v2387 = vpop.xlane.xlu0 %2386
    %v2388 = vrcp.pop %v2366
    %v2389 = vrcp.pop %v2369
    %v2390 = vrcp.pop %v2372
    %v2391 = vrcp.pop %v2375
    %v2392 = vrcp.pop %v2378
    %v2393 = vrcp.pop %v2381
    %v2394 = vrcp.pop %v2384
    %v2395 = vrcp.pop %v2387
    %v2396 = vmul.f32 %v2349, %v2388
    %v2397 = vmul.f32 %v2351, %v2389
    %v2398 = vmul.f32 %v2353, %v2390
    %v2399 = vmul.f32 %v2355, %v2391
    %v2400 = vmul.f32 %v2357, %v2392
    %v2401 = vmul.f32 %v2359, %v2393
    %v2402 = vmul.f32 %v2361, %v2394
    %v2403 = vmul.f32 %v2363, %v2395
    %v2404 = vpack.c.bf16 %v2397, %v2396
    %v2405 = vpack.c.bf16 %v2399, %v2398
    %v2406 = vpack.c.bf16 %v2401, %v2400
    %v2407 = vpack.c.bf16 %v2403, %v2402
    %v2409 = vsel %vm1477, %v2404, 0
    %v2412 = vsel %vm1477, %v2405, 0
    %v2415 = vsel %vm1477, %v2406, 0
    %v2418 = vsel %vm1477, %v2407, 0
    %2420 = vmatprep.subr.bf16.mxu0 0
    %2421 = vmatpush1.bf16.msra.mxu0 0
    %2422 = vmatprep.subr.bf16.mxu0 0
    %2423 = vmatpush1.bf16.msra.mxu0 0
    %2424 = vmatprep.subr.bf16.mxu0 0
    %2425 = vmatpush1.bf16.msra.mxu0 0
    %2426 = vmatprep.subr.bf16.mxu0 0
    %2427 = vmatpush1.bf16.msra.mxu0 0
    %2428 = vmatprep.subr.bf16.mxu0 0
    %2429 = vmatpush1.bf16.msra.mxu0 %v1383
    %2430 = vmatprep.subr.bf16.mxu0 0
    %2431 = vmatpush1.bf16.msra.mxu0 %v1382
    %2432 = vmatprep.subr.bf16.mxu0 0
    %2433 = vmatpush1.bf16.msra.mxu0 %v1381
    %2434 = vmatprep.subr.bf16.mxu0 0
    %2435 = vmatpush1.bf16.msra.mxu0 %v1380
    %2436 = vmatprep.subr.bf16.mxu0 0
    %2437 = vmatpush2.bf16.msra.mxu0 0
    %2438 = vmatprep.subr.bf16.mxu0 0
    %2439 = vmatpush2.bf16.msra.mxu0 0
    %2440 = vmatprep.subr.bf16.mxu0 0
    %2441 = vmatpush2.bf16.msra.mxu0 0
    %2442 = vmatprep.subr.bf16.mxu0 0
    %2443 = vmatpush2.bf16.msra.mxu0 0
    %2444 = vmatprep.subr.bf16.mxu0 0
    %2445 = vmatpush2.bf16.msra.mxu0 0
    %2446 = vmatprep.subr.bf16.mxu0 0
    %2447 = vmatpush2.bf16.msra.mxu0 0
    %2448 = vmatprep.subr.bf16.mxu0 0
    %2449 = vmatpush2.bf16.msra.mxu0 0
    %2450 = vmatprep.subr.bf16.mxu0 0
    %2451 = vmatpush2.bf16.msra.mxu0 0
    %2452 = vmatprep.mubr.bf16.mxu0 0
    %2453 = vmatmul.mubr.bf16.gmra.mxu0 %v2409
    %v2454 = vpop.f32.mrf.mxu0
    %v2455 = vadd.f32 0.0, %v2454
    %v2456 = vpop.f32.mrf.mxu0
    %v2457 = vpop.f32.mrf.mxu0
    %v2458 = vadd.f32 0.0, %v2457
    %v2459 = vpop.f32.mrf.mxu0
    %2460 = vmatprep.mubr.bf16.mxu0 0
    %2461 = vmatmul.mubr.bf16.gmra.mxu0 %v2412
    %v2462 = vpop.f32.mrf.mxu0
    %v2463 = vadd.f32 0.0, %v2462
    %v2464 = vpop.f32.mrf.mxu0
    %v2465 = vpop.f32.mrf.mxu0
    %v2466 = vadd.f32 0.0, %v2465
    %v2467 = vpop.f32.mrf.mxu0
    %2468 = vmatprep.mubr.bf16.mxu0 0
    %2469 = vmatmul.mubr.bf16.gmra.mxu0 %v2415
    %v2470 = vpop.f32.mrf.mxu0
    %v2471 = vadd.f32 0.0, %v2470
    %v2472 = vpop.f32.mrf.mxu0
    %v2473 = vpop.f32.mrf.mxu0
    %v2474 = vadd.f32 0.0, %v2473
    %v2475 = vpop.f32.mrf.mxu0
    %2476 = vmatprep.mubr.bf16.mxu0 0
    %2477 = vmatmul.mubr.bf16.gmra.mxu0 %v2418
    %v2478 = vpop.f32.mrf.mxu0
    %v2479 = vadd.f32 0.0, %v2478
    %v2480 = vpop.f32.mrf.mxu0
    %v2481 = vpop.f32.mrf.mxu0
    %v2482 = vadd.f32 0.0, %v2481
    %v2483 = vpop.f32.mrf.mxu0
    %2484 = vdwg.mxu0
    %v2485 = vadd.f32 %v2203, %v2455
    %v2486 = vadd.f32 %v2204, %v2458
    %v2487 = vadd.f32 %v2205, %v2463
    %v2488 = vadd.f32 %v2206, %v2466
    %v2489 = vadd.f32 %v2207, %v2471
    %v2490 = vadd.f32 %v2208, %v2474
    %v2491 = vadd.f32 %v2209, %v2479
    %v2492 = vadd.f32 %v2210, %v2482
    %v2494 = vsel %vm779, %v723, 0
    %v2497 = vsel %vm779, %v724, 0
    %v2500 = vsel %vm779, %v725, 0
    %v2503 = vsel %vm779, %v726, 0
    %v2506 = vsel %vm779, %v731, 0
    %v2509 = vsel %vm779, %v732, 0
    %v2512 = vsel %vm779, %v733, 0
    %v2515 = vsel %vm779, %v734, 0
    %2517 = vmatprep.subr.bf16.mxu0 0
    %2518 = vmatpush1.bf16.xpose.msra.mxu0 0
    %2519 = vmatprep.subr.bf16.mxu0 0
    %2520 = vmatpush1.bf16.xpose.msra.mxu0 0
    %2521 = vmatprep.subr.bf16.mxu0 0
    %2522 = vmatpush1.bf16.xpose.msra.mxu0 0
    %2523 = vmatprep.subr.bf16.mxu0 0
    %2524 = vmatpush1.bf16.xpose.msra.mxu0 0
    %2525 = vmatprep.subr.bf16.mxu0 0
    %2526 = vmatpush1.bf16.xpose.msra.mxu0 %v2515
    %2527 = vmatprep.subr.bf16.mxu0 0
    %2528 = vmatpush1.bf16.xpose.msra.mxu0 %v2512
    %2529 = vmatprep.subr.bf16.mxu0 0
    %2530 = vmatpush1.bf16.xpose.msra.mxu0 %v2509
    %2531 = vmatprep.subr.bf16.mxu0 0
    %2532 = vmatpush1.bf16.xpose.msra.mxu0 %v2506
    %2533 = vmatprep.subr.bf16.mxu0 0
    %2534 = vmatpush2.bf16.xpose.msra.mxu0 0
    %2535 = vmatprep.subr.bf16.mxu0 0
    %2536 = vmatpush2.bf16.xpose.msra.mxu0 0
    %2537 = vmatprep.subr.bf16.mxu0 0
    %2538 = vmatpush2.bf16.xpose.msra.mxu0 0
    %2539 = vmatprep.subr.bf16.mxu0 0
    %2540 = vmatpush2.bf16.xpose.msra.mxu0 0
    %2541 = vmatprep.subr.bf16.mxu0 0
    %2542 = vmatpush2.bf16.xpose.msra.mxu0 0
    %2543 = vmatprep.subr.bf16.mxu0 0
    %2544 = vmatpush2.bf16.xpose.msra.mxu0 0
    %2545 = vmatprep.subr.bf16.mxu0 0
    %2546 = vmatpush2.bf16.xpose.msra.mxu0 0
    %2547 = vmatprep.subr.bf16.mxu0 0
    %2548 = vmatpush2.bf16.xpose.msra.mxu0 0
    %2549 = vmatprep.mubr.bf16.mxu0 0
    %2550 = vmatmul.mubr.bf16.gmra.mxu0 %v2494
    %v2551 = vpop.f32.mrf.mxu0
    %v2552 = vadd.f32 %v743, %v2551
    %v2553 = vpop.f32.mrf.mxu0
    %v2554 = vpop.f32.mrf.mxu0
    %v2555 = vadd.f32 %v744, %v2554
    %v2556 = vpop.f32.mrf.mxu0
    %2557 = vmatprep.mubr.bf16.mxu0 0
    %2558 = vmatmul.mubr.bf16.gmra.mxu0 %v2497
    %v2559 = vpop.f32.mrf.mxu0
    %v2560 = vadd.f32 %v745, %v2559
    %v2561 = vpop.f32.mrf.mxu0
    %v2562 = vpop.f32.mrf.mxu0
    %v2563 = vadd.f32 %v746, %v2562
    %v2564 = vpop.f32.mrf.mxu0
    %2565 = vmatprep.mubr.bf16.mxu0 0
    %2566 = vmatmul.mubr.bf16.gmra.mxu0 %v2500
    %v2567 = vpop.f32.mrf.mxu0
    %v2568 = vadd.f32 %v747, %v2567
    %v2569 = vpop.f32.mrf.mxu0
    %v2570 = vpop.f32.mrf.mxu0
    %v2571 = vadd.f32 %v748, %v2570
    %v2572 = vpop.f32.mrf.mxu0
    %2573 = vmatprep.mubr.bf16.mxu0 0
    %2574 = vmatmul.mubr.bf16.gmra.mxu0 %v2503
    %v2575 = vpop.f32.mrf.mxu0
    %v2576 = vadd.f32 %v749, %v2575
    %v2577 = vpop.f32.mrf.mxu0
    %v2578 = vpop.f32.mrf.mxu0
    %v2579 = vadd.f32 %v750, %v2578
    %v2580 = vpop.f32.mrf.mxu0
    %2581 = vdwg.mxu0
    %v2582 = vsel %vm1477, %v2552, -inf
    %2583 = vmax.xlane.f32.xlu0 %v2582
    %v2584 = vpop.xlane.xlu0 %2583
    %v2585 = vsel %vm1477, %v2555, -inf
    %2586 = vmax.xlane.f32.xlu0 %v2585
    %v2587 = vpop.xlane.xlu0 %2586
    %v2588 = vsel %vm1477, %v2560, -inf
    %2589 = vmax.xlane.f32.xlu0 %v2588
    %v2590 = vpop.xlane.xlu0 %2589
    %v2591 = vsel %vm1477, %v2563, -inf
    %2592 = vmax.xlane.f32.xlu0 %v2591
    %v2593 = vpop.xlane.xlu0 %2592
    %v2594 = vsel %vm1477, %v2568, -inf
    %2595 = vmax.xlane.f32.xlu0 %v2594
    %v2596 = vpop.xlane.xlu0 %2595
    %v2597 = vsel %vm1477, %v2571, -inf
    %2598 = vmax.xlane.f32.xlu0 %v2597
    %v2599 = vpop.xlane.xlu0 %2598
    %v2600 = vsel %vm1477, %v2576, -inf
    %2601 = vmax.xlane.f32.xlu0 %v2600
    %v2602 = vpop.xlane.xlu0 %2601
    %v2603 = vsel %vm1477, %v2579, -inf
    %2604 = vmax.xlane.f32.xlu0 %v2603
    %v2605 = vpop.xlane.xlu0 %2604
    %v2606 = vsub.f32 %v2552, %v2584
    %v2607 = vsub.f32 %v2555, %v2587
    %v2608 = vsub.f32 %v2560, %v2590
    %v2609 = vsub.f32 %v2563, %v2593
    %v2610 = vsub.f32 %v2568, %v2596
    %v2611 = vsub.f32 %v2571, %v2599
    %v2612 = vsub.f32 %v2576, %v2602
    %v2613 = vsub.f32 %v2579, %v2605
    %v2614 = vmul.f32 %v2606, 1.442695
    %v2615 = vpow.pop %v2614
    %v2616 = vmul.f32 %v2607, 1.442695
    %v2617 = vpow.pop %v2616
    %v2618 = vmul.f32 %v2608, 1.442695
    %v2619 = vpow.pop %v2618
    %v2620 = vmul.f32 %v2609, 1.442695
    %v2621 = vpow.pop %v2620
    %v2622 = vmul.f32 %v2610, 1.442695
    %v2623 = vpow.pop %v2622
    %v2624 = vmul.f32 %v2611, 1.442695
    %v2625 = vpow.pop %v2624
    %v2626 = vmul.f32 %v2612, 1.442695
    %v2627 = vpow.pop %v2626
    %v2628 = vmul.f32 %v2613, 1.442695
    %v2629 = vpow.pop %v2628
    %v2630 = vsel %vm1477, %v2615, 0.0
    %2631 = vadd.xlane.f32.xlu0 %v2630
    %v2632 = vpop.xlane.xlu0 %2631
    %v2633 = vsel %vm1477, %v2617, 0.0
    %2634 = vadd.xlane.f32.xlu0 %v2633
    %v2635 = vpop.xlane.xlu0 %2634
    %v2636 = vsel %vm1477, %v2619, 0.0
    %2637 = vadd.xlane.f32.xlu0 %v2636
    %v2638 = vpop.xlane.xlu0 %2637
    %v2639 = vsel %vm1477, %v2621, 0.0
    %2640 = vadd.xlane.f32.xlu0 %v2639
    %v2641 = vpop.xlane.xlu0 %2640
    %v2642 = vsel %vm1477, %v2623, 0.0
    %2643 = vadd.xlane.f32.xlu0 %v2642
    %v2644 = vpop.xlane.xlu0 %2643
    %v2645 = vsel %vm1477, %v2625, 0.0
    %2646 = vadd.xlane.f32.xlu0 %v2645
    %v2647 = vpop.xlane.xlu0 %2646
    %v2648 = vsel %vm1477, %v2627, 0.0
    %2649 = vadd.xlane.f32.xlu0 %v2648
    %v2650 = vpop.xlane.xlu0 %2649
    %v2651 = vsel %vm1477, %v2629, 0.0
    %2652 = vadd.xlane.f32.xlu0 %v2651
    %v2653 = vpop.xlane.xlu0 %2652
    %v2654 = vrcp.pop %v2632
    %v2655 = vrcp.pop %v2635
    %v2656 = vrcp.pop %v2638
    %v2657 = vrcp.pop %v2641
    %v2658 = vrcp.pop %v2644
    %v2659 = vrcp.pop %v2647
    %v2660 = vrcp.pop %v2650
    %v2661 = vrcp.pop %v2653
    %v2662 = vmul.f32 %v2615, %v2654
    %v2663 = vmul.f32 %v2617, %v2655
    %v2664 = vmul.f32 %v2619, %v2656
    %v2665 = vmul.f32 %v2621, %v2657
    %v2666 = vmul.f32 %v2623, %v2658
    %v2667 = vmul.f32 %v2625, %v2659
    %v2668 = vmul.f32 %v2627, %v2660
    %v2669 = vmul.f32 %v2629, %v2661
    %v2670 = vpack.c.bf16 %v2663, %v2662
    %v2671 = vpack.c.bf16 %v2665, %v2664
    %v2672 = vpack.c.bf16 %v2667, %v2666
    %v2673 = vpack.c.bf16 %v2669, %v2668
    %2678 = vrot.lane.b32.xlu0 %v723, 96
    %v2679 = vpop.permute.xlu0 %2678
    %2680 = vrot.lane.b32.xlu0 %v724, 96
    %v2681 = vpop.permute.xlu0 %2680
    %2682 = vrot.lane.b32.xlu0 %v725, 96
    %v2683 = vpop.permute.xlu0 %2682
    %2684 = vrot.lane.b32.xlu0 %v726, 96
    %v2685 = vpop.permute.xlu0 %2684
    %2690 = vrot.lane.b32.xlu0 %v731, 96
    %v2691 = vpop.permute.xlu0 %2690
    %2692 = vrot.lane.b32.xlu0 %v732, 96
    %v2693 = vpop.permute.xlu0 %2692
    %2694 = vrot.lane.b32.xlu0 %v733, 96
    %v2695 = vpop.permute.xlu0 %2694
    %2696 = vrot.lane.b32.xlu0 %v734, 96
    %v2697 = vpop.permute.xlu0 %2696
    %v2699 = vsel %vm779, %v2679, 0
    %v2702 = vsel %vm779, %v2681, 0
    %v2705 = vsel %vm779, %v2683, 0
    %v2708 = vsel %vm779, %v2685, 0
    %v2711 = vsel %vm779, %v2691, 0
    %v2714 = vsel %vm779, %v2693, 0
    %v2717 = vsel %vm779, %v2695, 0
    %v2720 = vsel %vm779, %v2697, 0
    %2722 = vmatprep.subr.bf16.mxu0 0
    %2723 = vmatpush1.bf16.xpose.msra.mxu0 0
    %2724 = vmatprep.subr.bf16.mxu0 0
    %2725 = vmatpush1.bf16.xpose.msra.mxu0 0
    %2726 = vmatprep.subr.bf16.mxu0 0
    %2727 = vmatpush1.bf16.xpose.msra.mxu0 0
    %2728 = vmatprep.subr.bf16.mxu0 0
    %2729 = vmatpush1.bf16.xpose.msra.mxu0 0
    %2730 = vmatprep.subr.bf16.mxu0 0
    %2731 = vmatpush1.bf16.xpose.msra.mxu0 %v2720
    %2732 = vmatprep.subr.bf16.mxu0 0
    %2733 = vmatpush1.bf16.xpose.msra.mxu0 %v2717
    %2734 = vmatprep.subr.bf16.mxu0 0
    %2735 = vmatpush1.bf16.xpose.msra.mxu0 %v2714
    %2736 = vmatprep.subr.bf16.mxu0 0
    %2737 = vmatpush1.bf16.xpose.msra.mxu0 %v2711
    %2738 = vmatprep.subr.bf16.mxu0 0
    %2739 = vmatpush2.bf16.xpose.msra.mxu0 0
    %2740 = vmatprep.subr.bf16.mxu0 0
    %2741 = vmatpush2.bf16.xpose.msra.mxu0 0
    %2742 = vmatprep.subr.bf16.mxu0 0
    %2743 = vmatpush2.bf16.xpose.msra.mxu0 0
    %2744 = vmatprep.subr.bf16.mxu0 0
    %2745 = vmatpush2.bf16.xpose.msra.mxu0 0
    %2746 = vmatprep.subr.bf16.mxu0 0
    %2747 = vmatpush2.bf16.xpose.msra.mxu0 0
    %2748 = vmatprep.subr.bf16.mxu0 0
    %2749 = vmatpush2.bf16.xpose.msra.mxu0 0
    %2750 = vmatprep.subr.bf16.mxu0 0
    %2751 = vmatpush2.bf16.xpose.msra.mxu0 0
    %2752 = vmatprep.subr.bf16.mxu0 0
    %2753 = vmatpush2.bf16.xpose.msra.mxu0 0
    %2754 = vmatprep.mubr.bf16.mxu0 0
    %2755 = vmatmul.mubr.bf16.gmra.mxu0 %v2699
    %v2756 = vpop.f32.mrf.mxu0
    %v2757 = vadd.f32 %v743, %v2756
    %v2758 = vpop.f32.mrf.mxu0
    %v2759 = vpop.f32.mrf.mxu0
    %v2760 = vadd.f32 %v744, %v2759
    %v2761 = vpop.f32.mrf.mxu0
    %2762 = vmatprep.mubr.bf16.mxu0 0
    %2763 = vmatmul.mubr.bf16.gmra.mxu0 %v2702
    %v2764 = vpop.f32.mrf.mxu0
    %v2765 = vadd.f32 %v745, %v2764
    %v2766 = vpop.f32.mrf.mxu0
    %v2767 = vpop.f32.mrf.mxu0
    %v2768 = vadd.f32 %v746, %v2767
    %v2769 = vpop.f32.mrf.mxu0
    %2770 = vmatprep.mubr.bf16.mxu0 0
    %2771 = vmatmul.mubr.bf16.gmra.mxu0 %v2705
    %v2772 = vpop.f32.mrf.mxu0
    %v2773 = vadd.f32 %v747, %v2772
    %v2774 = vpop.f32.mrf.mxu0
    %v2775 = vpop.f32.mrf.mxu0
    %v2776 = vadd.f32 %v748, %v2775
    %v2777 = vpop.f32.mrf.mxu0
    %2778 = vmatprep.mubr.bf16.mxu0 0
    %2779 = vmatmul.mubr.bf16.gmra.mxu0 %v2708
    %v2780 = vpop.f32.mrf.mxu0
    %v2781 = vadd.f32 %v749, %v2780
    %v2782 = vpop.f32.mrf.mxu0
    %v2783 = vpop.f32.mrf.mxu0
    %v2784 = vadd.f32 %v750, %v2783
    %v2785 = vpop.f32.mrf.mxu0
    %2786 = vdwg.mxu0
    %v2787 = vsel %vm1477, %v2757, -inf
    %2788 = vmax.xlane.f32.xlu0 %v2787
    %v2789 = vpop.xlane.xlu0 %2788
    %v2790 = vsel %vm1477, %v2760, -inf
    %2791 = vmax.xlane.f32.xlu0 %v2790
    %v2792 = vpop.xlane.xlu0 %2791
    %v2793 = vsel %vm1477, %v2765, -inf
    %2794 = vmax.xlane.f32.xlu0 %v2793
    %v2795 = vpop.xlane.xlu0 %2794
    %v2796 = vsel %vm1477, %v2768, -inf
    %2797 = vmax.xlane.f32.xlu0 %v2796
    %v2798 = vpop.xlane.xlu0 %2797
    %v2799 = vsel %vm1477, %v2773, -inf
    %2800 = vmax.xlane.f32.xlu0 %v2799
    %v2801 = vpop.xlane.xlu0 %2800
    %v2802 = vsel %vm1477, %v2776, -inf
    %2803 = vmax.xlane.f32.xlu0 %v2802
    %v2804 = vpop.xlane.xlu0 %2803
    %v2805 = vsel %vm1477, %v2781, -inf
    %2806 = vmax.xlane.f32.xlu0 %v2805
    %v2807 = vpop.xlane.xlu0 %2806
    %v2808 = vsel %vm1477, %v2784, -inf
    %2809 = vmax.xlane.f32.xlu0 %v2808
    %v2810 = vpop.xlane.xlu0 %2809
    %v2811 = vsub.f32 %v2757, %v2789
    %v2812 = vsub.f32 %v2760, %v2792
    %v2813 = vsub.f32 %v2765, %v2795
    %v2814 = vsub.f32 %v2768, %v2798
    %v2815 = vsub.f32 %v2773, %v2801
    %v2816 = vsub.f32 %v2776, %v2804
    %v2817 = vsub.f32 %v2781, %v2807
    %v2818 = vsub.f32 %v2784, %v2810
    %v2819 = vmul.f32 %v2811, 1.442695
    %v2820 = vpow.pop %v2819
    %v2821 = vmul.f32 %v2812, 1.442695
    %v2822 = vpow.pop %v2821
    %v2823 = vmul.f32 %v2813, 1.442695
    %v2824 = vpow.pop %v2823
    %v2825 = vmul.f32 %v2814, 1.442695
    %v2826 = vpow.pop %v2825
    %v2827 = vmul.f32 %v2815, 1.442695
    %v2828 = vpow.pop %v2827
    %v2829 = vmul.f32 %v2816, 1.442695
    %v2830 = vpow.pop %v2829
    %v2831 = vmul.f32 %v2817, 1.442695
    %v2832 = vpow.pop %v2831
    %v2833 = vmul.f32 %v2818, 1.442695
    %v2834 = vpow.pop %v2833
    %v2835 = vsel %vm1477, %v2820, 0.0
    %2836 = vadd.xlane.f32.xlu0 %v2835
    %v2837 = vpop.xlane.xlu0 %2836
    %v2838 = vsel %vm1477, %v2822, 0.0
    %2839 = vadd.xlane.f32.xlu0 %v2838
    %v2840 = vpop.xlane.xlu0 %2839
    %v2841 = vsel %vm1477, %v2824, 0.0
    %2842 = vadd.xlane.f32.xlu0 %v2841
    %v2843 = vpop.xlane.xlu0 %2842
    %v2844 = vsel %vm1477, %v2826, 0.0
    %2845 = vadd.xlane.f32.xlu0 %v2844
    %v2846 = vpop.xlane.xlu0 %2845
    %v2847 = vsel %vm1477, %v2828, 0.0
    %2848 = vadd.xlane.f32.xlu0 %v2847
    %v2849 = vpop.xlane.xlu0 %2848
    %v2850 = vsel %vm1477, %v2830, 0.0
    %2851 = vadd.xlane.f32.xlu0 %v2850
    %v2852 = vpop.xlane.xlu0 %2851
    %v2853 = vsel %vm1477, %v2832, 0.0
    %2854 = vadd.xlane.f32.xlu0 %v2853
    %v2855 = vpop.xlane.xlu0 %2854
    %v2856 = vsel %vm1477, %v2834, 0.0
    %2857 = vadd.xlane.f32.xlu0 %v2856
    %v2858 = vpop.xlane.xlu0 %2857
    %v2859 = vrcp.pop %v2837
    %v2860 = vrcp.pop %v2840
    %v2861 = vrcp.pop %v2843
    %v2862 = vrcp.pop %v2846
    %v2863 = vrcp.pop %v2849
    %v2864 = vrcp.pop %v2852
    %v2865 = vrcp.pop %v2855
    %v2866 = vrcp.pop %v2858
    %v2867 = vmul.f32 %v2820, %v2859
    %v2868 = vmul.f32 %v2822, %v2860
    %v2869 = vmul.f32 %v2824, %v2861
    %v2870 = vmul.f32 %v2826, %v2862
    %v2871 = vmul.f32 %v2828, %v2863
    %v2872 = vmul.f32 %v2830, %v2864
    %v2873 = vmul.f32 %v2832, %v2865
    %v2874 = vmul.f32 %v2834, %v2866
    %v2875 = vpack.c.bf16 %v2868, %v2867
    %v2876 = vpack.c.bf16 %v2870, %v2869
    %v2877 = vpack.c.bf16 %v2872, %v2871
    %v2878 = vpack.c.bf16 %v2874, %v2873
    %v2880 = vsel %vm1477, %v2875, 0
    %v2883 = vsel %vm1477, %v2876, 0
    %v2886 = vsel %vm1477, %v2877, 0
    %v2889 = vsel %vm1477, %v2878, 0
    %2891 = vmatprep.subr.bf16.mxu0 0
    %2892 = vmatpush1.bf16.msra.mxu0 0
    %2893 = vmatprep.subr.bf16.mxu0 0
    %2894 = vmatpush1.bf16.msra.mxu0 0
    %2895 = vmatprep.subr.bf16.mxu0 0
    %2896 = vmatpush1.bf16.msra.mxu0 0
    %2897 = vmatprep.subr.bf16.mxu0 0
    %2898 = vmatpush1.bf16.msra.mxu0 0
    %2899 = vmatprep.subr.bf16.mxu0 0
    %2900 = vmatpush1.bf16.msra.mxu0 %v1073
    %2901 = vmatprep.subr.bf16.mxu0 0
    %2902 = vmatpush1.bf16.msra.mxu0 %v1072
    %2903 = vmatprep.subr.bf16.mxu0 0
    %2904 = vmatpush1.bf16.msra.mxu0 %v1071
    %2905 = vmatprep.subr.bf16.mxu0 0
    %2906 = vmatpush1.bf16.msra.mxu0 %v1070
    %2907 = vmatprep.subr.bf16.mxu0 0
    %2908 = vmatpush2.bf16.msra.mxu0 0
    %2909 = vmatprep.subr.bf16.mxu0 0
    %2910 = vmatpush2.bf16.msra.mxu0 0
    %2911 = vmatprep.subr.bf16.mxu0 0
    %2912 = vmatpush2.bf16.msra.mxu0 0
    %2913 = vmatprep.subr.bf16.mxu0 0
    %2914 = vmatpush2.bf16.msra.mxu0 0
    %2915 = vmatprep.subr.bf16.mxu0 0
    %2916 = vmatpush2.bf16.msra.mxu0 0
    %2917 = vmatprep.subr.bf16.mxu0 0
    %2918 = vmatpush2.bf16.msra.mxu0 0
    %2919 = vmatprep.subr.bf16.mxu0 0
    %2920 = vmatpush2.bf16.msra.mxu0 0
    %2921 = vmatprep.subr.bf16.mxu0 0
    %2922 = vmatpush2.bf16.msra.mxu0 0
    %2923 = vmatprep.mubr.bf16.mxu0 0
    %2924 = vmatmul.mubr.bf16.gmra.mxu0 %v2880
    %v2925 = vpop.f32.mrf.mxu0
    %v2926 = vadd.f32 0.0, %v2925
    %v2927 = vpop.f32.mrf.mxu0
    %v2928 = vpop.f32.mrf.mxu0
    %v2929 = vadd.f32 0.0, %v2928
    %v2930 = vpop.f32.mrf.mxu0
    %2931 = vmatprep.mubr.bf16.mxu0 0
    %2932 = vmatmul.mubr.bf16.gmra.mxu0 %v2883
    %v2933 = vpop.f32.mrf.mxu0
    %v2934 = vadd.f32 0.0, %v2933
    %v2935 = vpop.f32.mrf.mxu0
    %v2936 = vpop.f32.mrf.mxu0
    %v2937 = vadd.f32 0.0, %v2936
    %v2938 = vpop.f32.mrf.mxu0
    %2939 = vmatprep.mubr.bf16.mxu0 0
    %2940 = vmatmul.mubr.bf16.gmra.mxu0 %v2886
    %v2941 = vpop.f32.mrf.mxu0
    %v2942 = vadd.f32 0.0, %v2941
    %v2943 = vpop.f32.mrf.mxu0
    %v2944 = vpop.f32.mrf.mxu0
    %v2945 = vadd.f32 0.0, %v2944
    %v2946 = vpop.f32.mrf.mxu0
    %2947 = vmatprep.mubr.bf16.mxu0 0
    %2948 = vmatmul.mubr.bf16.gmra.mxu0 %v2889
    %v2949 = vpop.f32.mrf.mxu0
    %v2950 = vadd.f32 0.0, %v2949
    %v2951 = vpop.f32.mrf.mxu0
    %v2952 = vpop.f32.mrf.mxu0
    %v2953 = vadd.f32 0.0, %v2952
    %v2954 = vpop.f32.mrf.mxu0
    %2955 = vdwg.mxu0
    %v2957 = vsel %vm1477, %v2670, 0
    %v2960 = vsel %vm1477, %v2671, 0
    %v2963 = vsel %vm1477, %v2672, 0
    %v2966 = vsel %vm1477, %v2673, 0
    %2968 = vmatprep.subr.bf16.mxu0 0
    %2969 = vmatpush1.bf16.msra.mxu0 0
    %2970 = vmatprep.subr.bf16.mxu0 0
    %2971 = vmatpush1.bf16.msra.mxu0 0
    %2972 = vmatprep.subr.bf16.mxu0 0
    %2973 = vmatpush1.bf16.msra.mxu0 0
    %2974 = vmatprep.subr.bf16.mxu0 0
    %2975 = vmatpush1.bf16.msra.mxu0 0
    %2976 = vmatprep.subr.bf16.mxu0 0
    %2977 = vmatpush1.bf16.msra.mxu0 %v908
    %2978 = vmatprep.subr.bf16.mxu0 0
    %2979 = vmatpush1.bf16.msra.mxu0 %v907
    %2980 = vmatprep.subr.bf16.mxu0 0
    %2981 = vmatpush1.bf16.msra.mxu0 %v906
    %2982 = vmatprep.subr.bf16.mxu0 0
    %2983 = vmatpush1.bf16.msra.mxu0 %v905
    %2984 = vmatprep.subr.bf16.mxu0 0
    %2985 = vmatpush2.bf16.msra.mxu0 0
    %2986 = vmatprep.subr.bf16.mxu0 0
    %2987 = vmatpush2.bf16.msra.mxu0 0
    %2988 = vmatprep.subr.bf16.mxu0 0
    %2989 = vmatpush2.bf16.msra.mxu0 0
    %2990 = vmatprep.subr.bf16.mxu0 0
    %2991 = vmatpush2.bf16.msra.mxu0 0
    %2992 = vmatprep.subr.bf16.mxu0 0
    %2993 = vmatpush2.bf16.msra.mxu0 0
    %2994 = vmatprep.subr.bf16.mxu0 0
    %2995 = vmatpush2.bf16.msra.mxu0 0
    %2996 = vmatprep.subr.bf16.mxu0 0
    %2997 = vmatpush2.bf16.msra.mxu0 0
    %2998 = vmatprep.subr.bf16.mxu0 0
    %2999 = vmatpush2.bf16.msra.mxu0 0
    %3000 = vmatprep.mubr.bf16.mxu0 0
    %3001 = vmatmul.mubr.bf16.gmra.mxu0 %v2957
    %v3002 = vpop.f32.mrf.mxu0
    %v3003 = vadd.f32 %v2926, %v3002
    %v3004 = vpop.f32.mrf.mxu0
    %v3005 = vpop.f32.mrf.mxu0
    %v3006 = vadd.f32 %v2929, %v3005
    %v3007 = vpop.f32.mrf.mxu0
    %3008 = vmatprep.mubr.bf16.mxu0 0
    %3009 = vmatmul.mubr.bf16.gmra.mxu0 %v2960
    %v3010 = vpop.f32.mrf.mxu0
    %v3011 = vadd.f32 %v2934, %v3010
    %v3012 = vpop.f32.mrf.mxu0
    %v3013 = vpop.f32.mrf.mxu0
    %v3014 = vadd.f32 %v2937, %v3013
    %v3015 = vpop.f32.mrf.mxu0
    %3016 = vmatprep.mubr.bf16.mxu0 0
    %3017 = vmatmul.mubr.bf16.gmra.mxu0 %v2963
    %v3018 = vpop.f32.mrf.mxu0
    %v3019 = vadd.f32 %v2942, %v3018
    %v3020 = vpop.f32.mrf.mxu0
    %v3021 = vpop.f32.mrf.mxu0
    %v3022 = vadd.f32 %v2945, %v3021
    %v3023 = vpop.f32.mrf.mxu0
    %3024 = vmatprep.mubr.bf16.mxu0 0
    %3025 = vmatmul.mubr.bf16.gmra.mxu0 %v2966
    %v3026 = vpop.f32.mrf.mxu0
    %v3027 = vadd.f32 %v2950, %v3026
    %v3028 = vpop.f32.mrf.mxu0
    %v3029 = vpop.f32.mrf.mxu0
    %v3030 = vadd.f32 %v2953, %v3029
    %v3031 = vpop.f32.mrf.mxu0
    %3032 = vdwg.mxu0
    %3033 = vrot.lane.b32.xlu0 %v723, 64
    %v3034 = vpop.permute.xlu0 %3033
    %3035 = vrot.lane.b32.xlu0 %v724, 64
    %v3036 = vpop.permute.xlu0 %3035
    %3037 = vrot.lane.b32.xlu0 %v725, 64
    %v3038 = vpop.permute.xlu0 %3037
    %3039 = vrot.lane.b32.xlu0 %v726, 64
    %v3040 = vpop.permute.xlu0 %3039
    %3041 = vrot.lane.b32.xlu0 %v731, 64
    %v3042 = vpop.permute.xlu0 %3041
    %3043 = vrot.lane.b32.xlu0 %v732, 64
    %v3044 = vpop.permute.xlu0 %3043
    %3045 = vrot.lane.b32.xlu0 %v733, 64
    %v3046 = vpop.permute.xlu0 %3045
    %3047 = vrot.lane.b32.xlu0 %v734, 64
    %v3048 = vpop.permute.xlu0 %3047
    %v3050 = vsel %vm779, %v3034, 0
    %v3053 = vsel %vm779, %v3036, 0
    %v3056 = vsel %vm779, %v3038, 0
    %v3059 = vsel %vm779, %v3040, 0
    %v3062 = vsel %vm779, %v3042, 0
    %v3065 = vsel %vm779, %v3044, 0
    %v3068 = vsel %vm779, %v3046, 0
    %v3071 = vsel %vm779, %v3048, 0
    %3073 = vmatprep.subr.bf16.mxu0 0
    %3074 = vmatpush1.bf16.xpose.msra.mxu0 0
    %3075 = vmatprep.subr.bf16.mxu0 0
    %3076 = vmatpush1.bf16.xpose.msra.mxu0 0
    %3077 = vmatprep.subr.bf16.mxu0 0
    %3078 = vmatpush1.bf16.xpose.msra.mxu0 0
    %3079 = vmatprep.subr.bf16.mxu0 0
    %3080 = vmatpush1.bf16.xpose.msra.mxu0 0
    %3081 = vmatprep.subr.bf16.mxu0 0
    %3082 = vmatpush1.bf16.xpose.msra.mxu0 %v3071
    %3083 = vmatprep.subr.bf16.mxu0 0
    %3084 = vmatpush1.bf16.xpose.msra.mxu0 %v3068
    %3085 = vmatprep.subr.bf16.mxu0 0
    %3086 = vmatpush1.bf16.xpose.msra.mxu0 %v3065
    %3087 = vmatprep.subr.bf16.mxu0 0
    %3088 = vmatpush1.bf16.xpose.msra.mxu0 %v3062
    %3089 = vmatprep.subr.bf16.mxu0 0
    %3090 = vmatpush2.bf16.xpose.msra.mxu0 0
    %3091 = vmatprep.subr.bf16.mxu0 0
    %3092 = vmatpush2.bf16.xpose.msra.mxu0 0
    %3093 = vmatprep.subr.bf16.mxu0 0
    %3094 = vmatpush2.bf16.xpose.msra.mxu0 0
    %3095 = vmatprep.subr.bf16.mxu0 0
    %3096 = vmatpush2.bf16.xpose.msra.mxu0 0
    %3097 = vmatprep.subr.bf16.mxu0 0
    %3098 = vmatpush2.bf16.xpose.msra.mxu0 0
    %3099 = vmatprep.subr.bf16.mxu0 0
    %3100 = vmatpush2.bf16.xpose.msra.mxu0 0
    %3101 = vmatprep.subr.bf16.mxu0 0
    %3102 = vmatpush2.bf16.xpose.msra.mxu0 0
    %3103 = vmatprep.subr.bf16.mxu0 0
    %3104 = vmatpush2.bf16.xpose.msra.mxu0 0
    %3105 = vmatprep.mubr.bf16.mxu0 0
    %3106 = vmatmul.mubr.bf16.gmra.mxu0 %v3050
    %v3107 = vpop.f32.mrf.mxu0
    %v3108 = vadd.f32 %v743, %v3107
    %v3109 = vpop.f32.mrf.mxu0
    %v3110 = vpop.f32.mrf.mxu0
    %v3111 = vadd.f32 %v744, %v3110
    %v3112 = vpop.f32.mrf.mxu0
    %3113 = vmatprep.mubr.bf16.mxu0 0
    %3114 = vmatmul.mubr.bf16.gmra.mxu0 %v3053
    %v3115 = vpop.f32.mrf.mxu0
    %v3116 = vadd.f32 %v745, %v3115
    %v3117 = vpop.f32.mrf.mxu0
    %v3118 = vpop.f32.mrf.mxu0
    %v3119 = vadd.f32 %v746, %v3118
    %v3120 = vpop.f32.mrf.mxu0
    %3121 = vmatprep.mubr.bf16.mxu0 0
    %3122 = vmatmul.mubr.bf16.gmra.mxu0 %v3056
    %v3123 = vpop.f32.mrf.mxu0
    %v3124 = vadd.f32 %v747, %v3123
    %v3125 = vpop.f32.mrf.mxu0
    %v3126 = vpop.f32.mrf.mxu0
    %v3127 = vadd.f32 %v748, %v3126
    %v3128 = vpop.f32.mrf.mxu0
    %3129 = vmatprep.mubr.bf16.mxu0 0
    %3130 = vmatmul.mubr.bf16.gmra.mxu0 %v3059
    %v3131 = vpop.f32.mrf.mxu0
    %v3132 = vadd.f32 %v749, %v3131
    %v3133 = vpop.f32.mrf.mxu0
    %v3134 = vpop.f32.mrf.mxu0
    %v3135 = vadd.f32 %v750, %v3134
    %v3136 = vpop.f32.mrf.mxu0
    %3137 = vdwg.mxu0
    %v3138 = vsel %vm1477, %v3108, -inf
    %3139 = vmax.xlane.f32.xlu0 %v3138
    %v3140 = vpop.xlane.xlu0 %3139
    %v3141 = vsel %vm1477, %v3111, -inf
    %3142 = vmax.xlane.f32.xlu0 %v3141
    %v3143 = vpop.xlane.xlu0 %3142
    %v3144 = vsel %vm1477, %v3116, -inf
    %3145 = vmax.xlane.f32.xlu0 %v3144
    %v3146 = vpop.xlane.xlu0 %3145
    %v3147 = vsel %vm1477, %v3119, -inf
    %3148 = vmax.xlane.f32.xlu0 %v3147
    %v3149 = vpop.xlane.xlu0 %3148
    %v3150 = vsel %vm1477, %v3124, -inf
    %3151 = vmax.xlane.f32.xlu0 %v3150
    %v3152 = vpop.xlane.xlu0 %3151
    %v3153 = vsel %vm1477, %v3127, -inf
    %3154 = vmax.xlane.f32.xlu0 %v3153
    %v3155 = vpop.xlane.xlu0 %3154
    %v3156 = vsel %vm1477, %v3132, -inf
    %3157 = vmax.xlane.f32.xlu0 %v3156
    %v3158 = vpop.xlane.xlu0 %3157
    %v3159 = vsel %vm1477, %v3135, -inf
    %3160 = vmax.xlane.f32.xlu0 %v3159
    %v3161 = vpop.xlane.xlu0 %3160
    %v3162 = vsub.f32 %v3108, %v3140
    %v3163 = vsub.f32 %v3111, %v3143
    %v3164 = vsub.f32 %v3116, %v3146
    %v3165 = vsub.f32 %v3119, %v3149
    %v3166 = vsub.f32 %v3124, %v3152
    %v3167 = vsub.f32 %v3127, %v3155
    %v3168 = vsub.f32 %v3132, %v3158
    %v3169 = vsub.f32 %v3135, %v3161
    %v3170 = vmul.f32 %v3162, 1.442695
    %v3171 = vpow.pop %v3170
    %v3172 = vmul.f32 %v3163, 1.442695
    %v3173 = vpow.pop %v3172
    %v3174 = vmul.f32 %v3164, 1.442695
    %v3175 = vpow.pop %v3174
    %v3176 = vmul.f32 %v3165, 1.442695
    %v3177 = vpow.pop %v3176
    %v3178 = vmul.f32 %v3166, 1.442695
    %v3179 = vpow.pop %v3178
    %v3180 = vmul.f32 %v3167, 1.442695
    %v3181 = vpow.pop %v3180
    %v3182 = vmul.f32 %v3168, 1.442695
    %v3183 = vpow.pop %v3182
    %v3184 = vmul.f32 %v3169, 1.442695
    %v3185 = vpow.pop %v3184
    %v3186 = vsel %vm1477, %v3171, 0.0
    %3187 = vadd.xlane.f32.xlu0 %v3186
    %v3188 = vpop.xlane.xlu0 %3187
    %v3189 = vsel %vm1477, %v3173, 0.0
    %3190 = vadd.xlane.f32.xlu0 %v3189
    %v3191 = vpop.xlane.xlu0 %3190
    %v3192 = vsel %vm1477, %v3175, 0.0
    %3193 = vadd.xlane.f32.xlu0 %v3192
    %v3194 = vpop.xlane.xlu0 %3193
    %v3195 = vsel %vm1477, %v3177, 0.0
    %3196 = vadd.xlane.f32.xlu0 %v3195
    %v3197 = vpop.xlane.xlu0 %3196
    %v3198 = vsel %vm1477, %v3179, 0.0
    %3199 = vadd.xlane.f32.xlu0 %v3198
    %v3200 = vpop.xlane.xlu0 %3199
    %v3201 = vsel %vm1477, %v3181, 0.0
    %3202 = vadd.xlane.f32.xlu0 %v3201
    %v3203 = vpop.xlane.xlu0 %3202
    %v3204 = vsel %vm1477, %v3183, 0.0
    %3205 = vadd.xlane.f32.xlu0 %v3204
    %v3206 = vpop.xlane.xlu0 %3205
    %v3207 = vsel %vm1477, %v3185, 0.0
    %3208 = vadd.xlane.f32.xlu0 %v3207
    %v3209 = vpop.xlane.xlu0 %3208
    %v3210 = vrcp.pop %v3188
    %v3211 = vrcp.pop %v3191
    %v3212 = vrcp.pop %v3194
    %v3213 = vrcp.pop %v3197
    %v3214 = vrcp.pop %v3200
    %v3215 = vrcp.pop %v3203
    %v3216 = vrcp.pop %v3206
    %v3217 = vrcp.pop %v3209
    %v3218 = vmul.f32 %v3171, %v3210
    %v3219 = vmul.f32 %v3173, %v3211
    %v3220 = vmul.f32 %v3175, %v3212
    %v3221 = vmul.f32 %v3177, %v3213
    %v3222 = vmul.f32 %v3179, %v3214
    %v3223 = vmul.f32 %v3181, %v3215
    %v3224 = vmul.f32 %v3183, %v3216
    %v3225 = vmul.f32 %v3185, %v3217
    %v3226 = vpack.c.bf16 %v3219, %v3218
    %v3227 = vpack.c.bf16 %v3221, %v3220
    %v3228 = vpack.c.bf16 %v3223, %v3222
    %v3229 = vpack.c.bf16 %v3225, %v3224
    %v3231 = vsel %vm1477, %v3226, 0
    %v3234 = vsel %vm1477, %v3227, 0
    %v3237 = vsel %vm1477, %v3228, 0
    %v3240 = vsel %vm1477, %v3229, 0
    %3242 = vmatprep.subr.bf16.mxu0 0
    %3243 = vmatpush1.bf16.msra.mxu0 0
    %3244 = vmatprep.subr.bf16.mxu0 0
    %3245 = vmatpush1.bf16.msra.mxu0 0
    %3246 = vmatprep.subr.bf16.mxu0 0
    %3247 = vmatpush1.bf16.msra.mxu0 0
    %3248 = vmatprep.subr.bf16.mxu0 0
    %3249 = vmatpush1.bf16.msra.mxu0 0
    %3250 = vmatprep.subr.bf16.mxu0 0
    %3251 = vmatpush1.bf16.msra.mxu0 %v1230
    %3252 = vmatprep.subr.bf16.mxu0 0
    %3253 = vmatpush1.bf16.msra.mxu0 %v1229
    %3254 = vmatprep.subr.bf16.mxu0 0
    %3255 = vmatpush1.bf16.msra.mxu0 %v1228
    %3256 = vmatprep.subr.bf16.mxu0 0
    %3257 = vmatpush1.bf16.msra.mxu0 %v1227
    %3258 = vmatprep.subr.bf16.mxu0 0
    %3259 = vmatpush2.bf16.msra.mxu0 0
    %3260 = vmatprep.subr.bf16.mxu0 0
    %3261 = vmatpush2.bf16.msra.mxu0 0
    %3262 = vmatprep.subr.bf16.mxu0 0
    %3263 = vmatpush2.bf16.msra.mxu0 0
    %3264 = vmatprep.subr.bf16.mxu0 0
    %3265 = vmatpush2.bf16.msra.mxu0 0
    %3266 = vmatprep.subr.bf16.mxu0 0
    %3267 = vmatpush2.bf16.msra.mxu0 0
    %3268 = vmatprep.subr.bf16.mxu0 0
    %3269 = vmatpush2.bf16.msra.mxu0 0
    %3270 = vmatprep.subr.bf16.mxu0 0
    %3271 = vmatpush2.bf16.msra.mxu0 0
    %3272 = vmatprep.subr.bf16.mxu0 0
    %3273 = vmatpush2.bf16.msra.mxu0 0
    %3274 = vmatprep.mubr.bf16.mxu0 0
    %3275 = vmatmul.mubr.bf16.gmra.mxu0 %v3231
    %v3276 = vpop.f32.mrf.mxu0
    %v3277 = vadd.f32 0.0, %v3276
    %v3278 = vpop.f32.mrf.mxu0
    %v3279 = vpop.f32.mrf.mxu0
    %v3280 = vadd.f32 0.0, %v3279
    %v3281 = vpop.f32.mrf.mxu0
    %3282 = vmatprep.mubr.bf16.mxu0 0
    %3283 = vmatmul.mubr.bf16.gmra.mxu0 %v3234
    %v3284 = vpop.f32.mrf.mxu0
    %v3285 = vadd.f32 0.0, %v3284
    %v3286 = vpop.f32.mrf.mxu0
    %v3287 = vpop.f32.mrf.mxu0
    %v3288 = vadd.f32 0.0, %v3287
    %v3289 = vpop.f32.mrf.mxu0
    %3290 = vmatprep.mubr.bf16.mxu0 0
    %3291 = vmatmul.mubr.bf16.gmra.mxu0 %v3237
    %v3292 = vpop.f32.mrf.mxu0
    %v3293 = vadd.f32 0.0, %v3292
    %v3294 = vpop.f32.mrf.mxu0
    %v3295 = vpop.f32.mrf.mxu0
    %v3296 = vadd.f32 0.0, %v3295
    %v3297 = vpop.f32.mrf.mxu0
    %3298 = vmatprep.mubr.bf16.mxu0 0
    %3299 = vmatmul.mubr.bf16.gmra.mxu0 %v3240
    %v3300 = vpop.f32.mrf.mxu0
    %v3301 = vadd.f32 0.0, %v3300
    %v3302 = vpop.f32.mrf.mxu0
    %v3303 = vpop.f32.mrf.mxu0
    %v3304 = vadd.f32 0.0, %v3303
    %v3305 = vpop.f32.mrf.mxu0
    %3306 = vdwg.mxu0
    %v3307 = vadd.f32 %v3003, %v3277
    %v3308 = vadd.f32 %v3006, %v3280
    %v3309 = vadd.f32 %v3011, %v3285
    %v3310 = vadd.f32 %v3014, %v3288
    %v3311 = vadd.f32 %v3019, %v3293
    %v3312 = vadd.f32 %v3022, %v3296
    %v3313 = vadd.f32 %v3027, %v3301
    %v3314 = vadd.f32 %v3030, %v3304
    %3315 = vrot.lane.b32.xlu0 %v723, 32
    %v3316 = vpop.permute.xlu0 %3315
    %3317 = vrot.lane.b32.xlu0 %v724, 32
    %v3318 = vpop.permute.xlu0 %3317
    %3319 = vrot.lane.b32.xlu0 %v725, 32
    %v3320 = vpop.permute.xlu0 %3319
    %3321 = vrot.lane.b32.xlu0 %v726, 32
    %v3322 = vpop.permute.xlu0 %3321
    %3323 = vrot.lane.b32.xlu0 %v731, 32
    %v3324 = vpop.permute.xlu0 %3323
    %3325 = vrot.lane.b32.xlu0 %v732, 32
    %v3326 = vpop.permute.xlu0 %3325
    %3327 = vrot.lane.b32.xlu0 %v733, 32
    %v3328 = vpop.permute.xlu0 %3327
    %3329 = vrot.lane.b32.xlu0 %v734, 32
    %v3330 = vpop.permute.xlu0 %3329
    %v3332 = vsel %vm779, %v3316, 0
    %v3335 = vsel %vm779, %v3318, 0
    %v3338 = vsel %vm779, %v3320, 0
    %v3341 = vsel %vm779, %v3322, 0
    %v3344 = vsel %vm779, %v3324, 0
    %v3347 = vsel %vm779, %v3326, 0
    %v3350 = vsel %vm779, %v3328, 0
    %v3353 = vsel %vm779, %v3330, 0
    %3355 = vmatprep.subr.bf16.mxu0 0
    %3356 = vmatpush1.bf16.xpose.msra.mxu0 0
    %3357 = vmatprep.subr.bf16.mxu0 0
    %3358 = vmatpush1.bf16.xpose.msra.mxu0 0
    %3359 = vmatprep.subr.bf16.mxu0 0
    %3360 = vmatpush1.bf16.xpose.msra.mxu0 0
    %3361 = vmatprep.subr.bf16.mxu0 0
    %3362 = vmatpush1.bf16.xpose.msra.mxu0 0
    %3363 = vmatprep.subr.bf16.mxu0 0
    %3364 = vmatpush1.bf16.xpose.msra.mxu0 %v3353
    %3365 = vmatprep.subr.bf16.mxu0 0
    %3366 = vmatpush1.bf16.xpose.msra.mxu0 %v3350
    %3367 = vmatprep.subr.bf16.mxu0 0
    %3368 = vmatpush1.bf16.xpose.msra.mxu0 %v3347
    %3369 = vmatprep.subr.bf16.mxu0 0
    %3370 = vmatpush1.bf16.xpose.msra.mxu0 %v3344
    %3371 = vmatprep.subr.bf16.mxu0 0
    %3372 = vmatpush2.bf16.xpose.msra.mxu0 0
    %3373 = vmatprep.subr.bf16.mxu0 0
    %3374 = vmatpush2.bf16.xpose.msra.mxu0 0
    %3375 = vmatprep.subr.bf16.mxu0 0
    %3376 = vmatpush2.bf16.xpose.msra.mxu0 0
    %3377 = vmatprep.subr.bf16.mxu0 0
    %3378 = vmatpush2.bf16.xpose.msra.mxu0 0
    %3379 = vmatprep.subr.bf16.mxu0 0
    %3380 = vmatpush2.bf16.xpose.msra.mxu0 0
    %3381 = vmatprep.subr.bf16.mxu0 0
    %3382 = vmatpush2.bf16.xpose.msra.mxu0 0
    %3383 = vmatprep.subr.bf16.mxu0 0
    %3384 = vmatpush2.bf16.xpose.msra.mxu0 0
    %3385 = vmatprep.subr.bf16.mxu0 0
    %3386 = vmatpush2.bf16.xpose.msra.mxu0 0
    %3387 = vmatprep.mubr.bf16.mxu0 0
    %3388 = vmatmul.mubr.bf16.gmra.mxu0 %v3332
    %v3389 = vpop.f32.mrf.mxu0
    %v3390 = vadd.f32 %v743, %v3389
    %v3391 = vpop.f32.mrf.mxu0
    %v3392 = vpop.f32.mrf.mxu0
    %v3393 = vadd.f32 %v744, %v3392
    %v3394 = vpop.f32.mrf.mxu0
    %3395 = vmatprep.mubr.bf16.mxu0 0
    %3396 = vmatmul.mubr.bf16.gmra.mxu0 %v3335
    %v3397 = vpop.f32.mrf.mxu0
    %v3398 = vadd.f32 %v745, %v3397
    %v3399 = vpop.f32.mrf.mxu0
    %v3400 = vpop.f32.mrf.mxu0
    %v3401 = vadd.f32 %v746, %v3400
    %v3402 = vpop.f32.mrf.mxu0
    %3403 = vmatprep.mubr.bf16.mxu0 0
    %3404 = vmatmul.mubr.bf16.gmra.mxu0 %v3338
    %v3405 = vpop.f32.mrf.mxu0
    %v3406 = vadd.f32 %v747, %v3405
    %v3407 = vpop.f32.mrf.mxu0
    %v3408 = vpop.f32.mrf.mxu0
    %v3409 = vadd.f32 %v748, %v3408
    %v3410 = vpop.f32.mrf.mxu0
    %3411 = vmatprep.mubr.bf16.mxu0 0
    %3412 = vmatmul.mubr.bf16.gmra.mxu0 %v3341
    %v3413 = vpop.f32.mrf.mxu0
    %v3414 = vadd.f32 %v749, %v3413
    %v3415 = vpop.f32.mrf.mxu0
    %v3416 = vpop.f32.mrf.mxu0
    %v3417 = vadd.f32 %v750, %v3416
    %v3418 = vpop.f32.mrf.mxu0
    %3419 = vdwg.mxu0
    %v3420 = vsel %vm1477, %v3390, -inf
    %3421 = vmax.xlane.f32.xlu0 %v3420
    %v3422 = vpop.xlane.xlu0 %3421
    %v3423 = vsel %vm1477, %v3393, -inf
    %3424 = vmax.xlane.f32.xlu0 %v3423
    %v3425 = vpop.xlane.xlu0 %3424
    %v3426 = vsel %vm1477, %v3398, -inf
    %3427 = vmax.xlane.f32.xlu0 %v3426
    %v3428 = vpop.xlane.xlu0 %3427
    %v3429 = vsel %vm1477, %v3401, -inf
    %3430 = vmax.xlane.f32.xlu0 %v3429
    %v3431 = vpop.xlane.xlu0 %3430
    %v3432 = vsel %vm1477, %v3406, -inf
    %3433 = vmax.xlane.f32.xlu0 %v3432
    %v3434 = vpop.xlane.xlu0 %3433
    %v3435 = vsel %vm1477, %v3409, -inf
    %3436 = vmax.xlane.f32.xlu0 %v3435
    %v3437 = vpop.xlane.xlu0 %3436
    %v3438 = vsel %vm1477, %v3414, -inf
    %3439 = vmax.xlane.f32.xlu0 %v3438
    %v3440 = vpop.xlane.xlu0 %3439
    %v3441 = vsel %vm1477, %v3417, -inf
    %3442 = vmax.xlane.f32.xlu0 %v3441
    %v3443 = vpop.xlane.xlu0 %3442
    %v3444 = vsub.f32 %v3390, %v3422
    %v3445 = vsub.f32 %v3393, %v3425
    %v3446 = vsub.f32 %v3398, %v3428
    %v3447 = vsub.f32 %v3401, %v3431
    %v3448 = vsub.f32 %v3406, %v3434
    %v3449 = vsub.f32 %v3409, %v3437
    %v3450 = vsub.f32 %v3414, %v3440
    %v3451 = vsub.f32 %v3417, %v3443
    %v3452 = vmul.f32 %v3444, 1.442695
    %v3453 = vpow.pop %v3452
    %v3454 = vmul.f32 %v3445, 1.442695
    %v3455 = vpow.pop %v3454
    %v3456 = vmul.f32 %v3446, 1.442695
    %v3457 = vpow.pop %v3456
    %v3458 = vmul.f32 %v3447, 1.442695
    %v3459 = vpow.pop %v3458
    %v3460 = vmul.f32 %v3448, 1.442695
    %v3461 = vpow.pop %v3460
    %v3462 = vmul.f32 %v3449, 1.442695
    %v3463 = vpow.pop %v3462
    %v3464 = vmul.f32 %v3450, 1.442695
    %v3465 = vpow.pop %v3464
    %v3466 = vmul.f32 %v3451, 1.442695
    %v3467 = vpow.pop %v3466
    %v3468 = vsel %vm1477, %v3453, 0.0
    %3469 = vadd.xlane.f32.xlu0 %v3468
    %v3470 = vpop.xlane.xlu0 %3469
    %v3471 = vsel %vm1477, %v3455, 0.0
    %3472 = vadd.xlane.f32.xlu0 %v3471
    %v3473 = vpop.xlane.xlu0 %3472
    %v3474 = vsel %vm1477, %v3457, 0.0
    %3475 = vadd.xlane.f32.xlu0 %v3474
    %v3476 = vpop.xlane.xlu0 %3475
    %v3477 = vsel %vm1477, %v3459, 0.0
    %3478 = vadd.xlane.f32.xlu0 %v3477
    %v3479 = vpop.xlane.xlu0 %3478
    %v3480 = vsel %vm1477, %v3461, 0.0
    %3481 = vadd.xlane.f32.xlu0 %v3480
    %v3482 = vpop.xlane.xlu0 %3481
    %v3483 = vsel %vm1477, %v3463, 0.0
    %3484 = vadd.xlane.f32.xlu0 %v3483
    %v3485 = vpop.xlane.xlu0 %3484
    %v3486 = vsel %vm1477, %v3465, 0.0
    %3487 = vadd.xlane.f32.xlu0 %v3486
    %v3488 = vpop.xlane.xlu0 %3487
    %v3489 = vsel %vm1477, %v3467, 0.0
    %3490 = vadd.xlane.f32.xlu0 %v3489
    %v3491 = vpop.xlane.xlu0 %3490
    %v3492 = vrcp.pop %v3470
    %v3493 = vrcp.pop %v3473
    %v3494 = vrcp.pop %v3476
    %v3495 = vrcp.pop %v3479
    %v3496 = vrcp.pop %v3482
    %v3497 = vrcp.pop %v3485
    %v3498 = vrcp.pop %v3488
    %v3499 = vrcp.pop %v3491
    %v3500 = vmul.f32 %v3453, %v3492
    %v3501 = vmul.f32 %v3455, %v3493
    %v3502 = vmul.f32 %v3457, %v3494
    %v3503 = vmul.f32 %v3459, %v3495
    %v3504 = vmul.f32 %v3461, %v3496
    %v3505 = vmul.f32 %v3463, %v3497
    %v3506 = vmul.f32 %v3465, %v3498
    %v3507 = vmul.f32 %v3467, %v3499
    %v3508 = vpack.c.bf16 %v3501, %v3500
    %v3509 = vpack.c.bf16 %v3503, %v3502
    %v3510 = vpack.c.bf16 %v3505, %v3504
    %v3511 = vpack.c.bf16 %v3507, %v3506
    %v3513 = vsel %vm1477, %v3508, 0
    %v3516 = vsel %vm1477, %v3509, 0
    %v3519 = vsel %vm1477, %v3510, 0
    %v3522 = vsel %vm1477, %v3511, 0
    %3524 = vmatprep.subr.bf16.mxu0 0
    %3525 = vmatpush1.bf16.msra.mxu0 0
    %3526 = vmatprep.subr.bf16.mxu0 0
    %3527 = vmatpush1.bf16.msra.mxu0 0
    %3528 = vmatprep.subr.bf16.mxu0 0
    %3529 = vmatpush1.bf16.msra.mxu0 0
    %3530 = vmatprep.subr.bf16.mxu0 0
    %3531 = vmatpush1.bf16.msra.mxu0 0
    %3532 = vmatprep.subr.bf16.mxu0 0
    %3533 = vmatpush1.bf16.msra.mxu0 %v1387
    %3534 = vmatprep.subr.bf16.mxu0 0
    %3535 = vmatpush1.bf16.msra.mxu0 %v1386
    %3536 = vmatprep.subr.bf16.mxu0 0
    %3537 = vmatpush1.bf16.msra.mxu0 %v1385
    %3538 = vmatprep.subr.bf16.mxu0 0
    %3539 = vmatpush1.bf16.msra.mxu0 %v1384
    %3540 = vmatprep.subr.bf16.mxu0 0
    %3541 = vmatpush2.bf16.msra.mxu0 0
    %3542 = vmatprep.subr.bf16.mxu0 0
    %3543 = vmatpush2.bf16.msra.mxu0 0
    %3544 = vmatprep.subr.bf16.mxu0 0
    %3545 = vmatpush2.bf16.msra.mxu0 0
    %3546 = vmatprep.subr.bf16.mxu0 0
    %3547 = vmatpush2.bf16.msra.mxu0 0
    %3548 = vmatprep.subr.bf16.mxu0 0
    %3549 = vmatpush2.bf16.msra.mxu0 0
    %3550 = vmatprep.subr.bf16.mxu0 0
    %3551 = vmatpush2.bf16.msra.mxu0 0
    %3552 = vmatprep.subr.bf16.mxu0 0
    %3553 = vmatpush2.bf16.msra.mxu0 0
    %3554 = vmatprep.subr.bf16.mxu0 0
    %3555 = vmatpush2.bf16.msra.mxu0 0
    %3556 = vmatprep.mubr.bf16.mxu0 0
    %3557 = vmatmul.mubr.bf16.gmra.mxu0 %v3513
    %v3558 = vpop.f32.mrf.mxu0
    %v3559 = vadd.f32 0.0, %v3558
    %v3560 = vpop.f32.mrf.mxu0
    %v3561 = vpop.f32.mrf.mxu0
    %v3562 = vadd.f32 0.0, %v3561
    %v3563 = vpop.f32.mrf.mxu0
    %3564 = vmatprep.mubr.bf16.mxu0 0
    %3565 = vmatmul.mubr.bf16.gmra.mxu0 %v3516
    %v3566 = vpop.f32.mrf.mxu0
    %v3567 = vadd.f32 0.0, %v3566
    %v3568 = vpop.f32.mrf.mxu0
    %v3569 = vpop.f32.mrf.mxu0
    %v3570 = vadd.f32 0.0, %v3569
    %v3571 = vpop.f32.mrf.mxu0
    %3572 = vmatprep.mubr.bf16.mxu0 0
    %3573 = vmatmul.mubr.bf16.gmra.mxu0 %v3519
    %v3574 = vpop.f32.mrf.mxu0
    %v3575 = vadd.f32 0.0, %v3574
    %v3576 = vpop.f32.mrf.mxu0
    %v3577 = vpop.f32.mrf.mxu0
    %v3578 = vadd.f32 0.0, %v3577
    %v3579 = vpop.f32.mrf.mxu0
    %3580 = vmatprep.mubr.bf16.mxu0 0
    %3581 = vmatmul.mubr.bf16.gmra.mxu0 %v3522
    %v3582 = vpop.f32.mrf.mxu0
    %v3583 = vadd.f32 0.0, %v3582
    %v3584 = vpop.f32.mrf.mxu0
    %v3585 = vpop.f32.mrf.mxu0
    %v3586 = vadd.f32 0.0, %v3585
    %v3587 = vpop.f32.mrf.mxu0
    %3588 = vdwg.mxu0
    %v3589 = vadd.f32 %v3307, %v3559
    %v3590 = vadd.f32 %v3308, %v3562
    %v3591 = vadd.f32 %v3309, %v3567
    %v3592 = vadd.f32 %v3310, %v3570
    %v3593 = vadd.f32 %v3311, %v3575
    %v3594 = vadd.f32 %v3312, %v3578
    %v3595 = vadd.f32 %v3313, %v3583
    %v3596 = vadd.f32 %v3314, %v3586
    %v3597 = vadd.f32 %v86, %v2485
    %v3598 = vadd.f32 %v87, %v2486
    %v3599 = vadd.f32 %v88, %v2487
    %v3600 = vadd.f32 %v89, %v2488
    %v3601 = vadd.f32 %v90, %v2489
    %v3602 = vadd.f32 %v91, %v2490
    %v3603 = vadd.f32 %v92, %v2491
    %v3604 = vadd.f32 %v93, %v2492
    %v3605 = vadd.f32 %v94, %v3589
    %v3606 = vadd.f32 %v95, %v3590
    %v3607 = vadd.f32 %v96, %v3591
    %v3608 = vadd.f32 %v97, %v3592
    %v3609 = vadd.f32 %v98, %v3593
    %v3610 = vadd.f32 %v99, %v3594
    %v3611 = vadd.f32 %v100, %v3595
    %v3612 = vadd.f32 %v101, %v3596
    %v3613 = vld [vmem:[%s6] sm:$0x1]
    %v3615 = vlaneseq
    %v3616 = vshrl.u32 %v3615, 7
    %v3617 = vsub.s32 0, %v3616
    %v3618 = vrot.slane %v3613, %v3617
    %v3620 = vadd.f32 %v3597, %v3618
    %v3621 = vadd.f32 %v3598, %v3618
    %v3622 = vadd.f32 %v3599, %v3618
    %v3623 = vadd.f32 %v3600, %v3618
    %v3624 = vadd.f32 %v3601, %v3618
    %v3625 = vadd.f32 %v3602, %v3618
    %v3626 = vadd.f32 %v3603, %v3618
    %v3627 = vadd.f32 %v3604, %v3618
    %v3628 = vadd.f32 %v3605, %v3618
    %v3629 = vadd.f32 %v3606, %v3618
    %v3630 = vadd.f32 %v3607, %v3618
    %v3631 = vadd.f32 %v3608, %v3618
    %v3632 = vadd.f32 %v3609, %v3618
    %v3633 = vadd.f32 %v3610, %v3618
    %v3634 = vadd.f32 %v3611, %v3618
    %v3635 = vadd.f32 %v3612, %v3618
    %3636 = vadd.xlane.f32.xlu0 %v3620
    %v3637 = vpop.xlane.xlu0 %3636
    %3638 = vadd.xlane.f32.xlu0 %v3621
    %v3639 = vpop.xlane.xlu0 %3638
    %3640 = vadd.xlane.f32.xlu0 %v3622
    %v3641 = vpop.xlane.xlu0 %3640
    %3642 = vadd.xlane.f32.xlu0 %v3623
    %v3643 = vpop.xlane.xlu0 %3642
    %3644 = vadd.xlane.f32.xlu0 %v3624
    %v3645 = vpop.xlane.xlu0 %3644
    %3646 = vadd.xlane.f32.xlu0 %v3625
    %v3647 = vpop.xlane.xlu0 %3646
    %3648 = vadd.xlane.f32.xlu0 %v3626
    %v3649 = vpop.xlane.xlu0 %3648
    %3650 = vadd.xlane.f32.xlu0 %v3627
    %v3651 = vpop.xlane.xlu0 %3650
    %3652 = vadd.xlane.f32.xlu0 %v3628
    %v3653 = vpop.xlane.xlu0 %3652
    %3654 = vadd.xlane.f32.xlu0 %v3629
    %v3655 = vpop.xlane.xlu0 %3654
    %3656 = vadd.xlane.f32.xlu0 %v3630
    %v3657 = vpop.xlane.xlu0 %3656
    %3658 = vadd.xlane.f32.xlu0 %v3631
    %v3659 = vpop.xlane.xlu0 %3658
    %3660 = vadd.xlane.f32.xlu0 %v3632
    %v3661 = vpop.xlane.xlu0 %3660
    %3662 = vadd.xlane.f32.xlu0 %v3633
    %v3663 = vpop.xlane.xlu0 %3662
    %3664 = vadd.xlane.f32.xlu0 %v3634
    %v3665 = vpop.xlane.xlu0 %3664
    %3666 = vadd.xlane.f32.xlu0 %v3635
    %v3667 = vpop.xlane.xlu0 %3666
    %v3668 = vmul.f32 %v3637, %v134
    %v3669 = vmul.f32 %v3639, %v134
    %v3670 = vmul.f32 %v3641, %v134
    %v3671 = vmul.f32 %v3643, %v134
    %v3672 = vmul.f32 %v3645, %v134
    %v3673 = vmul.f32 %v3647, %v134
    %v3674 = vmul.f32 %v3649, %v134
    %v3675 = vmul.f32 %v3651, %v134
    %v3676 = vmul.f32 %v3653, %v134
    %v3677 = vmul.f32 %v3655, %v134
    %v3678 = vmul.f32 %v3657, %v134
    %v3679 = vmul.f32 %v3659, %v134
    %v3680 = vmul.f32 %v3661, %v134
    %v3681 = vmul.f32 %v3663, %v134
    %v3682 = vmul.f32 %v3665, %v134
    %v3683 = vmul.f32 %v3667, %v134
    %v3684 = vsub.f32 %v3620, %v3668
    %v3685 = vsub.f32 %v3621, %v3669
    %v3686 = vsub.f32 %v3622, %v3670
    %v3687 = vsub.f32 %v3623, %v3671
    %v3688 = vsub.f32 %v3624, %v3672
    %v3689 = vsub.f32 %v3625, %v3673
    %v3690 = vsub.f32 %v3626, %v3674
    %v3691 = vsub.f32 %v3627, %v3675
    %v3692 = vsub.f32 %v3628, %v3676
    %v3693 = vsub.f32 %v3629, %v3677
    %v3694 = vsub.f32 %v3630, %v3678
    %v3695 = vsub.f32 %v3631, %v3679
    %v3696 = vsub.f32 %v3632, %v3680
    %v3697 = vsub.f32 %v3633, %v3681
    %v3698 = vsub.f32 %v3634, %v3682
    %v3699 = vsub.f32 %v3635, %v3683
    %v3700 = vmul.f32 %v3684, %v3684
    %v3701 = vmul.f32 %v3685, %v3685
    %v3702 = vmul.f32 %v3686, %v3686
    %v3703 = vmul.f32 %v3687, %v3687
    %v3704 = vmul.f32 %v3688, %v3688
    %v3705 = vmul.f32 %v3689, %v3689
    %v3706 = vmul.f32 %v3690, %v3690
    %v3707 = vmul.f32 %v3691, %v3691
    %v3708 = vmul.f32 %v3692, %v3692
    %v3709 = vmul.f32 %v3693, %v3693
    %v3710 = vmul.f32 %v3694, %v3694
    %v3711 = vmul.f32 %v3695, %v3695
    %v3712 = vmul.f32 %v3696, %v3696
    %v3713 = vmul.f32 %v3697, %v3697
    %v3714 = vmul.f32 %v3698, %v3698
    %v3715 = vmul.f32 %v3699, %v3699
    %3716 = vadd.xlane.f32.xlu0 %v3700
    %v3717 = vpop.xlane.xlu0 %3716
    %3718 = vadd.xlane.f32.xlu0 %v3701
    %v3719 = vpop.xlane.xlu0 %3718
    %3720 = vadd.xlane.f32.xlu0 %v3702
    %v3721 = vpop.xlane.xlu0 %3720
    %3722 = vadd.xlane.f32.xlu0 %v3703
    %v3723 = vpop.xlane.xlu0 %3722
    %3724 = vadd.xlane.f32.xlu0 %v3704
    %v3725 = vpop.xlane.xlu0 %3724
    %3726 = vadd.xlane.f32.xlu0 %v3705
    %v3727 = vpop.xlane.xlu0 %3726
    %3728 = vadd.xlane.f32.xlu0 %v3706
    %v3729 = vpop.xlane.xlu0 %3728
    %3730 = vadd.xlane.f32.xlu0 %v3707
    %v3731 = vpop.xlane.xlu0 %3730
    %3732 = vadd.xlane.f32.xlu0 %v3708
    %v3733 = vpop.xlane.xlu0 %3732
    %3734 = vadd.xlane.f32.xlu0 %v3709
    %v3735 = vpop.xlane.xlu0 %3734
    %3736 = vadd.xlane.f32.xlu0 %v3710
    %v3737 = vpop.xlane.xlu0 %3736
    %3738 = vadd.xlane.f32.xlu0 %v3711
    %v3739 = vpop.xlane.xlu0 %3738
    %3740 = vadd.xlane.f32.xlu0 %v3712
    %v3741 = vpop.xlane.xlu0 %3740
    %3742 = vadd.xlane.f32.xlu0 %v3713
    %v3743 = vpop.xlane.xlu0 %3742
    %3744 = vadd.xlane.f32.xlu0 %v3714
    %v3745 = vpop.xlane.xlu0 %3744
    %3746 = vadd.xlane.f32.xlu0 %v3715
    %v3747 = vpop.xlane.xlu0 %3746
    %v3748 = vmul.f32 %v3717, %v134
    %v3749 = vmul.f32 %v3719, %v134
    %v3750 = vmul.f32 %v3721, %v134
    %v3751 = vmul.f32 %v3723, %v134
    %v3752 = vmul.f32 %v3725, %v134
    %v3753 = vmul.f32 %v3727, %v134
    %v3754 = vmul.f32 %v3729, %v134
    %v3755 = vmul.f32 %v3731, %v134
    %v3756 = vmul.f32 %v3733, %v134
    %v3757 = vmul.f32 %v3735, %v134
    %v3758 = vmul.f32 %v3737, %v134
    %v3759 = vmul.f32 %v3739, %v134
    %v3760 = vmul.f32 %v3741, %v134
    %v3761 = vmul.f32 %v3743, %v134
    %v3762 = vmul.f32 %v3745, %v134
    %v3763 = vmul.f32 %v3747, %v134
    %v3764 = vadd.f32 %v3748, 1e-05
    %v3765 = vadd.f32 %v3749, 1e-05
    %v3766 = vadd.f32 %v3750, 1e-05
    %v3767 = vadd.f32 %v3751, 1e-05
    %v3768 = vadd.f32 %v3752, 1e-05
    %v3769 = vadd.f32 %v3753, 1e-05
    %v3770 = vadd.f32 %v3754, 1e-05
    %v3771 = vadd.f32 %v3755, 1e-05
    %v3772 = vadd.f32 %v3756, 1e-05
    %v3773 = vadd.f32 %v3757, 1e-05
    %v3774 = vadd.f32 %v3758, 1e-05
    %v3775 = vadd.f32 %v3759, 1e-05
    %v3776 = vadd.f32 %v3760, 1e-05
    %v3777 = vadd.f32 %v3761, 1e-05
    %v3778 = vadd.f32 %v3762, 1e-05
    %v3779 = vadd.f32 %v3763, 1e-05
    %v3780 = vrsqrt.pop %v3764
    %v3781 = vrsqrt.pop %v3765
    %v3782 = vrsqrt.pop %v3766
    %v3783 = vrsqrt.pop %v3767
    %v3784 = vrsqrt.pop %v3768
    %v3785 = vrsqrt.pop %v3769
    %v3786 = vrsqrt.pop %v3770
    %v3787 = vrsqrt.pop %v3771
    %v3788 = vrsqrt.pop %v3772
    %v3789 = vrsqrt.pop %v3773
    %v3790 = vrsqrt.pop %v3774
    %v3791 = vrsqrt.pop %v3775
    %v3792 = vrsqrt.pop %v3776
    %v3793 = vrsqrt.pop %v3777
    %v3794 = vrsqrt.pop %v3778
    %v3795 = vrsqrt.pop %v3779
    %v3796 = vmul.f32 %v3684, %v3780
    %v3797 = vmul.f32 %v3685, %v3781
    %v3798 = vmul.f32 %v3686, %v3782
    %v3799 = vmul.f32 %v3687, %v3783
    %v3800 = vmul.f32 %v3688, %v3784
    %v3801 = vmul.f32 %v3689, %v3785
    %v3802 = vmul.f32 %v3690, %v3786
    %v3803 = vmul.f32 %v3691, %v3787
    %v3804 = vmul.f32 %v3692, %v3788
    %v3805 = vmul.f32 %v3693, %v3789
    %v3806 = vmul.f32 %v3694, %v3790
    %v3807 = vmul.f32 %v3695, %v3791
    %v3808 = vmul.f32 %v3696, %v3792
    %v3809 = vmul.f32 %v3697, %v3793
    %v3810 = vmul.f32 %v3698, %v3794
    %v3811 = vmul.f32 %v3699, %v3795
    %v3812 = vld [vmem:[%s7] sm:$0x1]
    %v3814 = vlaneseq
    %v3815 = vshrl.u32 %v3814, 7
    %v3816 = vsub.s32 0, %v3815
    %v3817 = vrot.slane %v3812, %v3816
    %v3819 = vmul.f32 %v3796, %v3817
    %v3820 = vmul.f32 %v3797, %v3817
    %v3821 = vmul.f32 %v3798, %v3817
    %v3822 = vmul.f32 %v3799, %v3817
    %v3823 = vmul.f32 %v3800, %v3817
    %v3824 = vmul.f32 %v3801, %v3817
    %v3825 = vmul.f32 %v3802, %v3817
    %v3826 = vmul.f32 %v3803, %v3817
    %v3827 = vmul.f32 %v3804, %v3817
    %v3828 = vmul.f32 %v3805, %v3817
    %v3829 = vmul.f32 %v3806, %v3817
    %v3830 = vmul.f32 %v3807, %v3817
    %v3831 = vmul.f32 %v3808, %v3817
    %v3832 = vmul.f32 %v3809, %v3817
    %v3833 = vmul.f32 %v3810, %v3817
    %v3834 = vmul.f32 %v3811, %v3817
    %v3835 = vld [vmem:[%s8] sm:$0x1]
    %v3837 = vlaneseq
    %v3838 = vshrl.u32 %v3837, 7
    %v3839 = vsub.s32 0, %v3838
    %v3840 = vrot.slane %v3835, %v3839
    %v3842 = vadd.f32 %v3819, %v3840
    %v3843 = vadd.f32 %v3820, %v3840
    %v3844 = vadd.f32 %v3821, %v3840
    %v3845 = vadd.f32 %v3822, %v3840
    %v3846 = vadd.f32 %v3823, %v3840
    %v3847 = vadd.f32 %v3824, %v3840
    %v3848 = vadd.f32 %v3825, %v3840
    %v3849 = vadd.f32 %v3826, %v3840
    %v3850 = vadd.f32 %v3827, %v3840
    %v3851 = vadd.f32 %v3828, %v3840
    %v3852 = vadd.f32 %v3829, %v3840
    %v3853 = vadd.f32 %v3830, %v3840
    %v3854 = vadd.f32 %v3831, %v3840
    %v3855 = vadd.f32 %v3832, %v3840
    %v3856 = vadd.f32 %v3833, %v3840
    %v3857 = vadd.f32 %v3834, %v3840
    %v3858 = vpack.c.bf16 %v3843, %v3842
    %v3859 = vpack.c.bf16 %v3845, %v3844
    %v3860 = vpack.c.bf16 %v3847, %v3846
    %v3861 = vpack.c.bf16 %v3849, %v3848
    %v3862 = vpack.c.bf16 %v3851, %v3850
    %v3863 = vpack.c.bf16 %v3853, %v3852
    %v3864 = vpack.c.bf16 %v3855, %v3854
    %v3865 = vpack.c.bf16 %v3857, %v3856
    %v3866 = vld [vmem:[#allocation4] sm:$0xff]
    %v3867 = vld [vmem:[#allocation4 + $0x8] sm:$0xff]
    %v3868 = vld [vmem:[#allocation4 + $0x10] sm:$0xff]
    %v3869 = vld [vmem:[#allocation4 + $0x18] sm:$0xff]
    %v3870 = vld [vmem:[#allocation4 + $0x20] sm:$0xff]
    %v3871 = vld [vmem:[#allocation4 + $0x28] sm:$0xff]
    %v3872 = vld [vmem:[#allocation4 + $0x30] sm:$0xff]
    %v3873 = vld [vmem:[#allocation4 + $0x38] sm:$0xff]
    %v3874 = vld [vmem:[#allocation4 + $0x40] sm:$0xff]
    %v3875 = vld [vmem:[#allocation4 + $0x48] sm:$0xff]
    %v3876 = vld [vmem:[#allocation4 + $0x50] sm:$0xff]
    %v3877 = vld [vmem:[#allocation4 + $0x58] sm:$0xff]
    %v3878 = vld [vmem:[#allocation4 + $0x60] sm:$0xff]
    %v3879 = vld [vmem:[#allocation4 + $0x68] sm:$0xff]
    %v3880 = vld [vmem:[#allocation4 + $0x70] sm:$0xff]
    %v3881 = vld [vmem:[#allocation4 + $0x78] sm:$0xff]
    %v3882 = vld [vmem:[#allocation4 + $0x80] sm:$0xff]
    %v3883 = vld [vmem:[#allocation4 + $0x88] sm:$0xff]
    %v3884 = vld [vmem:[#allocation4 + $0x90] sm:$0xff]
    %v3885 = vld [vmem:[#allocation4 + $0x98] sm:$0xff]
    %v3886 = vld [vmem:[#allocation4 + $0xa0] sm:$0xff]
    %v3887 = vld [vmem:[#allocation4 + $0xa8] sm:$0xff]
    %v3888 = vld [vmem:[#allocation4 + $0xb0] sm:$0xff]
    %v3889 = vld [vmem:[#allocation4 + $0xb8] sm:$0xff]
    %v3890 = vld [vmem:[#allocation4 + $0xc0] sm:$0xff]
    %v3891 = vld [vmem:[#allocation4 + $0xc8] sm:$0xff]
    %v3892 = vld [vmem:[#allocation4 + $0xd0] sm:$0xff]
    %v3893 = vld [vmem:[#allocation4 + $0xd8] sm:$0xff]
    %v3894 = vld [vmem:[#allocation4 + $0xe0] sm:$0xff]
    %v3895 = vld [vmem:[#allocation4 + $0xe8] sm:$0xff]
    %v3896 = vld [vmem:[#allocation4 + $0xf0] sm:$0xff]
    %v3897 = vld [vmem:[#allocation4 + $0xf8] sm:$0xff]
    %v3898 = vld [vmem:[%s10] sm:$0xf]
    %v3900 = vlaneseq
    %v3901 = vshrl.u32 %v3900, 7
    %v3902 = vsub.s32 0, %v3901
    %v3903 = vrot.slane %v3898, %v3902
    %v3904 = vlaneseq
    %v3905 = vshrl.u32 %v3904, 7
    %v3906 = vsub.s32 1, %v3905
    %v3907 = vrot.slane %v3898, %v3906
    %v3908 = vlaneseq
    %v3909 = vshrl.u32 %v3908, 7
    %v3910 = vsub.s32 2, %v3909
    %v3911 = vrot.slane %v3898, %v3910
    %v3912 = vlaneseq
    %v3913 = vshrl.u32 %v3912, 7
    %v3914 = vsub.s32 3, %v3913
    %v3915 = vrot.slane %v3898, %v3914
    %v3952 = vunpack.c.l.b16 %v3866
    %v3953 = vunpack.c.h.b16 %v3866
    %v3954 = vunpack.c.l.b16 %v3867
    %v3955 = vunpack.c.h.b16 %v3867
    %v3956 = vunpack.c.l.b16 %v3868
    %v3957 = vunpack.c.h.b16 %v3868
    %v3958 = vunpack.c.l.b16 %v3869
    %v3959 = vunpack.c.h.b16 %v3869
    %v3960 = vunpack.c.l.b16 %v3870
    %v3961 = vunpack.c.h.b16 %v3870
    %v3962 = vunpack.c.l.b16 %v3871
    %v3963 = vunpack.c.h.b16 %v3871
    %v3964 = vunpack.c.l.b16 %v3872
    %v3965 = vunpack.c.h.b16 %v3872
    %v3966 = vunpack.c.l.b16 %v3873
    %v3967 = vunpack.c.h.b16 %v3873
    %v3968 = vunpack.c.l.b16 %v3874
    %v3969 = vunpack.c.h.b16 %v3874
    %v3970 = vunpack.c.l.b16 %v3875
    %v3971 = vunpack.c.h.b16 %v3875
    %v3972 = vunpack.c.l.b16 %v3876
    %v3973 = vunpack.c.h.b16 %v3876
    %v3974 = vunpack.c.l.b16 %v3877
    %v3975 = vunpack.c.h.b16 %v3877
    %v3976 = vunpack.c.l.b16 %v3878
    %v3977 = vunpack.c.h.b16 %v3878
    %v3978 = vunpack.c.l.b16 %v3879
    %v3979 = vunpack.c.h.b16 %v3879
    %v3980 = vunpack.c.l.b16 %v3880
    %v3981 = vunpack.c.h.b16 %v3880
    %v3982 = vunpack.c.l.b16 %v3881
    %v3983 = vunpack.c.h.b16 %v3881
    %v3984 = vunpack.c.l.b16 %v3882
    %v3985 = vunpack.c.h.b16 %v3882
    %v3986 = vunpack.c.l.b16 %v3883
    %v3987 = vunpack.c.h.b16 %v3883
    %v3988 = vunpack.c.l.b16 %v3884
    %v3989 = vunpack.c.h.b16 %v3884
    %v3990 = vunpack.c.l.b16 %v3885
    %v3991 = vunpack.c.h.b16 %v3885
    %v3992 = vunpack.c.l.b16 %v3886
    %v3993 = vunpack.c.h.b16 %v3886
    %v3994 = vunpack.c.l.b16 %v3887
    %v3995 = vunpack.c.h.b16 %v3887
    %v3996 = vunpack.c.l.b16 %v3888
    %v3997 = vunpack.c.h.b16 %v3888
    %v3998 = vunpack.c.l.b16 %v3889
    %v3999 = vunpack.c.h.b16 %v3889
    %v4000 = vunpack.c.l.b16 %v3890
    %v4001 = vunpack.c.h.b16 %v3890
    %v4002 = vunpack.c.l.b16 %v3891
    %v4003 = vunpack.c.h.b16 %v3891
    %v4004 = vunpack.c.l.b16 %v3892
    %v4005 = vunpack.c.h.b16 %v3892
    %v4006 = vunpack.c.l.b16 %v3893
    %v4007 = vunpack.c.h.b16 %v3893
    %v4008 = vunpack.c.l.b16 %v3894
    %v4009 = vunpack.c.h.b16 %v3894
    %v4010 = vunpack.c.l.b16 %v3895
    %v4011 = vunpack.c.h.b16 %v3895
    %v4012 = vunpack.c.l.b16 %v3896
    %v4013 = vunpack.c.h.b16 %v3896
    %v4014 = vunpack.c.l.b16 %v3897
    %v4015 = vunpack.c.h.b16 %v3897
    %v4016 = vpack.c.b16 %v3956, %v3952
    %v4017 = vpack.c.b16 %v3957, %v3953
    %v4018 = vpack.c.b16 %v3958, %v3954
    %v4019 = vpack.c.b16 %v3959, %v3955
    %v4020 = vpack.c.b16 %v3964, %v3960
    %v4021 = vpack.c.b16 %v3965, %v3961
    %v4022 = vpack.c.b16 %v3966, %v3962
    %v4023 = vpack.c.b16 %v3967, %v3963
    %v4024 = vpack.c.b16 %v3972, %v3968
    %v4025 = vpack.c.b16 %v3973, %v3969
    %v4026 = vpack.c.b16 %v3974, %v3970
    %v4027 = vpack.c.b16 %v3975, %v3971
    %v4028 = vpack.c.b16 %v3980, %v3976
    %v4029 = vpack.c.b16 %v3981, %v3977
    %v4030 = vpack.c.b16 %v3982, %v3978
    %v4031 = vpack.c.b16 %v3983, %v3979
    %v4032 = vpack.c.b16 %v3988, %v3984
    %v4033 = vpack.c.b16 %v3989, %v3985
    %v4034 = vpack.c.b16 %v3990, %v3986
    %v4035 = vpack.c.b16 %v3991, %v3987
    %v4036 = vpack.c.b16 %v3996, %v3992
    %v4037 = vpack.c.b16 %v3997, %v3993
    %v4038 = vpack.c.b16 %v3998, %v3994
    %v4039 = vpack.c.b16 %v3999, %v3995
    %v4040 = vpack.c.b16 %v4004, %v4000
    %v4041 = vpack.c.b16 %v4005, %v4001
    %v4042 = vpack.c.b16 %v4006, %v4002
    %v4043 = vpack.c.b16 %v4007, %v4003
    %v4044 = vpack.c.b16 %v4012, %v4008
    %v4045 = vpack.c.b16 %v4013, %v4009
    %v4046 = vpack.c.b16 %v4014, %v4010
    %v4047 = vpack.c.b16 %v4015, %v4011
    %4080 = vmatprep.subr.bf16.mxu0 %v4045
    %4081 = vmatpush1.bf16.msra.mxu0 %v4044
    %4082 = vmatprep.subr.bf16.mxu0 %v4041
    %4083 = vmatpush1.bf16.msra.mxu0 %v4040
    %4084 = vmatprep.subr.bf16.mxu0 %v4037
    %4085 = vmatpush1.bf16.msra.mxu0 %v4036
    %4086 = vmatprep.subr.bf16.mxu0 %v4033
    %4087 = vmatpush1.bf16.msra.mxu0 %v4032
    %4088 = vmatprep.subr.bf16.mxu0 %v4029
    %4089 = vmatpush1.bf16.msra.mxu0 %v4028
    %4090 = vmatprep.subr.bf16.mxu0 %v4025
    %4091 = vmatpush1.bf16.msra.mxu0 %v4024
    %4092 = vmatprep.subr.bf16.mxu0 %v4021
    %4093 = vmatpush1.bf16.msra.mxu0 %v4020
    %4094 = vmatprep.subr.bf16.mxu0 %v4017
    %4095 = vmatpush1.bf16.msra.mxu0 %v4016
    %4096 = vmatprep.subr.bf16.mxu0 0
    %4097 = vmatpush2.bf16.msra.mxu0 0
    %4098 = vmatprep.subr.bf16.mxu0 0
    %4099 = vmatpush2.bf16.msra.mxu0 0
    %4100 = vmatprep.subr.bf16.mxu0 0
    %4101 = vmatpush2.bf16.msra.mxu0 0
    %4102 = vmatprep.subr.bf16.mxu0 0
    %4103 = vmatpush2.bf16.msra.mxu0 0
    %4104 = vmatprep.subr.bf16.mxu0 0
    %4105 = vmatpush2.bf16.msra.mxu0 0
    %4106 = vmatprep.subr.bf16.mxu0 0
    %4107 = vmatpush2.bf16.msra.mxu0 0
    %4108 = vmatprep.subr.bf16.mxu0 0
    %4109 = vmatpush2.bf16.msra.mxu0 0
    %4110 = vmatprep.subr.bf16.mxu0 0
    %4111 = vmatpush2.bf16.msra.mxu0 0
    %4112 = vmatprep.mubr.bf16.mxu0 0
    %4113 = vmatmul.mubr.bf16.gmra.mxu0 %v3858
    %v4114 = vpop.f32.mrf.mxu0
    %v4115 = vadd.f32 %v3903, %v4114
    %v4116 = vpop.f32.mrf.mxu0
    %v4117 = vadd.f32 %v3907, %v4116
    %v4118 = vpop.f32.mrf.mxu0
    %v4119 = vadd.f32 %v3903, %v4118
    %v4120 = vpop.f32.mrf.mxu0
    %v4121 = vadd.f32 %v3907, %v4120
    %4122 = vmatprep.mubr.bf16.mxu0 0
    %4123 = vmatmul.mubr.bf16.gmra.mxu0 %v3859
    %v4124 = vpop.f32.mrf.mxu0
    %v4125 = vadd.f32 %v3903, %v4124
    %v4126 = vpop.f32.mrf.mxu0
    %v4127 = vadd.f32 %v3907, %v4126
    %v4128 = vpop.f32.mrf.mxu0
    %v4129 = vadd.f32 %v3903, %v4128
    %v4130 = vpop.f32.mrf.mxu0
    %v4131 = vadd.f32 %v3907, %v4130
    %4132 = vmatprep.mubr.bf16.mxu0 0
    %4133 = vmatmul.mubr.bf16.gmra.mxu0 %v3860
    %v4134 = vpop.f32.mrf.mxu0
    %v4135 = vadd.f32 %v3903, %v4134
    %v4136 = vpop.f32.mrf.mxu0
    %v4137 = vadd.f32 %v3907, %v4136
    %v4138 = vpop.f32.mrf.mxu0
    %v4139 = vadd.f32 %v3903, %v4138
    %v4140 = vpop.f32.mrf.mxu0
    %v4141 = vadd.f32 %v3907, %v4140
    %4142 = vmatprep.mubr.bf16.mxu0 0
    %4143 = vmatmul.mubr.bf16.gmra.mxu0 %v3861
    %v4144 = vpop.f32.mrf.mxu0
    %v4145 = vadd.f32 %v3903, %v4144
    %v4146 = vpop.f32.mrf.mxu0
    %v4147 = vadd.f32 %v3907, %v4146
    %v4148 = vpop.f32.mrf.mxu0
    %v4149 = vadd.f32 %v3903, %v4148
    %v4150 = vpop.f32.mrf.mxu0
    %v4151 = vadd.f32 %v3907, %v4150
    %4152 = vmatprep.mubr.bf16.mxu0 0
    %4153 = vmatmul.mubr.bf16.gmra.mxu0 %v3862
    %v4154 = vpop.f32.mrf.mxu0
    %v4155 = vadd.f32 %v3903, %v4154
    %v4156 = vpop.f32.mrf.mxu0
    %v4157 = vadd.f32 %v3907, %v4156
    %v4158 = vpop.f32.mrf.mxu0
    %v4159 = vadd.f32 %v3903, %v4158
    %v4160 = vpop.f32.mrf.mxu0
    %v4161 = vadd.f32 %v3907, %v4160
    %4162 = vmatprep.mubr.bf16.mxu0 0
    %4163 = vmatmul.mubr.bf16.gmra.mxu0 %v3863
    %v4164 = vpop.f32.mrf.mxu0
    %v4165 = vadd.f32 %v3903, %v4164
    %v4166 = vpop.f32.mrf.mxu0
    %v4167 = vadd.f32 %v3907, %v4166
    %v4168 = vpop.f32.mrf.mxu0
    %v4169 = vadd.f32 %v3903, %v4168
    %v4170 = vpop.f32.mrf.mxu0
    %v4171 = vadd.f32 %v3907, %v4170
    %4172 = vmatprep.mubr.bf16.mxu0 0
    %4173 = vmatmul.mubr.bf16.gmra.mxu0 %v3864
    %v4174 = vpop.f32.mrf.mxu0
    %v4175 = vadd.f32 %v3903, %v4174
    %v4176 = vpop.f32.mrf.mxu0
    %v4177 = vadd.f32 %v3907, %v4176
    %v4178 = vpop.f32.mrf.mxu0
    %v4179 = vadd.f32 %v3903, %v4178
    %v4180 = vpop.f32.mrf.mxu0
    %v4181 = vadd.f32 %v3907, %v4180
    %4182 = vmatprep.mubr.bf16.mxu0 0
    %4183 = vmatmul.mubr.bf16.gmra.mxu0 %v3865
    %v4184 = vpop.f32.mrf.mxu0
    %v4185 = vadd.f32 %v3903, %v4184
    %v4186 = vpop.f32.mrf.mxu0
    %v4187 = vadd.f32 %v3907, %v4186
    %v4188 = vpop.f32.mrf.mxu0
    %v4189 = vadd.f32 %v3903, %v4188
    %v4190 = vpop.f32.mrf.mxu0
    %v4191 = vadd.f32 %v3907, %v4190
    %4192 = vdwg.mxu0
    %4193 = vmatprep.subr.bf16.mxu0 %v4047
    %4194 = vmatpush1.bf16.msra.mxu0 %v4046
    %4195 = vmatprep.subr.bf16.mxu0 %v4043
    %4196 = vmatpush1.bf16.msra.mxu0 %v4042
    %4197 = vmatprep.subr.bf16.mxu0 %v4039
    %4198 = vmatpush1.bf16.msra.mxu0 %v4038
    %4199 = vmatprep.subr.bf16.mxu0 %v4035
    %4200 = vmatpush1.bf16.msra.mxu0 %v4034
    %4201 = vmatprep.subr.bf16.mxu0 %v4031
    %4202 = vmatpush1.bf16.msra.mxu0 %v4030
    %4203 = vmatprep.subr.bf16.mxu0 %v4027
    %4204 = vmatpush1.bf16.msra.mxu0 %v4026
    %4205 = vmatprep.subr.bf16.mxu0 %v4023
    %4206 = vmatpush1.bf16.msra.mxu0 %v4022
    %4207 = vmatprep.subr.bf16.mxu0 %v4019
    %4208 = vmatpush1.bf16.msra.mxu0 %v4018
    %4209 = vmatprep.subr.bf16.mxu0 0
    %4210 = vmatpush2.bf16.msra.mxu0 0
    %4211 = vmatprep.subr.bf16.mxu0 0
    %4212 = vmatpush2.bf16.msra.mxu0 0
    %4213 = vmatprep.subr.bf16.mxu0 0
    %4214 = vmatpush2.bf16.msra.mxu0 0
    %4215 = vmatprep.subr.bf16.mxu0 0
    %4216 = vmatpush2.bf16.msra.mxu0 0
    %4217 = vmatprep.subr.bf16.mxu0 0
    %4218 = vmatpush2.bf16.msra.mxu0 0
    %4219 = vmatprep.subr.bf16.mxu0 0
    %4220 = vmatpush2.bf16.msra.mxu0 0
    %4221 = vmatprep.subr.bf16.mxu0 0
    %4222 = vmatpush2.bf16.msra.mxu0 0
    %4223 = vmatprep.subr.bf16.mxu0 0
    %4224 = vmatpush2.bf16.msra.mxu0 0
    %4225 = vmatprep.mubr.bf16.mxu0 0
    %4226 = vmatmul.mubr.bf16.gmra.mxu0 %v3858
    %v4227 = vpop.f32.mrf.mxu0
    %v4228 = vadd.f32 %v3911, %v4227
    %v4229 = vpop.f32.mrf.mxu0
    %v4230 = vadd.f32 %v3915, %v4229
    %v4231 = vpop.f32.mrf.mxu0
    %v4232 = vadd.f32 %v3911, %v4231
    %v4233 = vpop.f32.mrf.mxu0
    %v4234 = vadd.f32 %v3915, %v4233
    %4235 = vmatprep.mubr.bf16.mxu0 0
    %4236 = vmatmul.mubr.bf16.gmra.mxu0 %v3859
    %v4237 = vpop.f32.mrf.mxu0
    %v4238 = vadd.f32 %v3911, %v4237
    %v4239 = vpop.f32.mrf.mxu0
    %v4240 = vadd.f32 %v3915, %v4239
    %v4241 = vpop.f32.mrf.mxu0
    %v4242 = vadd.f32 %v3911, %v4241
    %v4243 = vpop.f32.mrf.mxu0
    %v4244 = vadd.f32 %v3915, %v4243
    %4245 = vmatprep.mubr.bf16.mxu0 0
    %4246 = vmatmul.mubr.bf16.gmra.mxu0 %v3860
    %v4247 = vpop.f32.mrf.mxu0
    %v4248 = vadd.f32 %v3911, %v4247
    %v4249 = vpop.f32.mrf.mxu0
    %v4250 = vadd.f32 %v3915, %v4249
    %v4251 = vpop.f32.mrf.mxu0
    %v4252 = vadd.f32 %v3911, %v4251
    %v4253 = vpop.f32.mrf.mxu0
    %v4254 = vadd.f32 %v3915, %v4253
    %4255 = vmatprep.mubr.bf16.mxu0 0
    %4256 = vmatmul.mubr.bf16.gmra.mxu0 %v3861
    %v4257 = vpop.f32.mrf.mxu0
    %v4258 = vadd.f32 %v3911, %v4257
    %v4259 = vpop.f32.mrf.mxu0
    %v4260 = vadd.f32 %v3915, %v4259
    %v4261 = vpop.f32.mrf.mxu0
    %v4262 = vadd.f32 %v3911, %v4261
    %v4263 = vpop.f32.mrf.mxu0
    %v4264 = vadd.f32 %v3915, %v4263
    %4265 = vmatprep.mubr.bf16.mxu0 0
    %4266 = vmatmul.mubr.bf16.gmra.mxu0 %v3862
    %v4267 = vpop.f32.mrf.mxu0
    %v4268 = vadd.f32 %v3911, %v4267
    %v4269 = vpop.f32.mrf.mxu0
    %v4270 = vadd.f32 %v3915, %v4269
    %v4271 = vpop.f32.mrf.mxu0
    %v4272 = vadd.f32 %v3911, %v4271
    %v4273 = vpop.f32.mrf.mxu0
    %v4274 = vadd.f32 %v3915, %v4273
    %4275 = vmatprep.mubr.bf16.mxu0 0
    %4276 = vmatmul.mubr.bf16.gmra.mxu0 %v3863
    %v4277 = vpop.f32.mrf.mxu0
    %v4278 = vadd.f32 %v3911, %v4277
    %v4279 = vpop.f32.mrf.mxu0
    %v4280 = vadd.f32 %v3915, %v4279
    %v4281 = vpop.f32.mrf.mxu0
    %v4282 = vadd.f32 %v3911, %v4281
    %v4283 = vpop.f32.mrf.mxu0
    %v4284 = vadd.f32 %v3915, %v4283
    %4285 = vmatprep.mubr.bf16.mxu0 0
    %4286 = vmatmul.mubr.bf16.gmra.mxu0 %v3864
    %v4287 = vpop.f32.mrf.mxu0
    %v4288 = vadd.f32 %v3911, %v4287
    %v4289 = vpop.f32.mrf.mxu0
    %v4290 = vadd.f32 %v3915, %v4289
    %v4291 = vpop.f32.mrf.mxu0
    %v4292 = vadd.f32 %v3911, %v4291
    %v4293 = vpop.f32.mrf.mxu0
    %v4294 = vadd.f32 %v3915, %v4293
    %4295 = vmatprep.mubr.bf16.mxu0 0
    %4296 = vmatmul.mubr.bf16.gmra.mxu0 %v3865
    %v4297 = vpop.f32.mrf.mxu0
    %v4298 = vadd.f32 %v3911, %v4297
    %v4299 = vpop.f32.mrf.mxu0
    %v4300 = vadd.f32 %v3915, %v4299
    %v4301 = vpop.f32.mrf.mxu0
    %v4302 = vadd.f32 %v3911, %v4301
    %v4303 = vpop.f32.mrf.mxu0
    %v4304 = vadd.f32 %v3915, %v4303
    %4305 = vdwg.mxu0
    %v4306 = vmul.f32 %v4115, 0.5
    %v4307 = vmul.f32 %v4117, 0.5
    %v4308 = vmul.f32 %v4228, 0.5
    %v4309 = vmul.f32 %v4230, 0.5
    %v4310 = vmul.f32 %v4119, 0.5
    %v4311 = vmul.f32 %v4121, 0.5
    %v4312 = vmul.f32 %v4232, 0.5
    %v4313 = vmul.f32 %v4234, 0.5
    %v4314 = vmul.f32 %v4125, 0.5
    %v4315 = vmul.f32 %v4127, 0.5
    %v4316 = vmul.f32 %v4238, 0.5
    %v4317 = vmul.f32 %v4240, 0.5
    %v4318 = vmul.f32 %v4129, 0.5
    %v4319 = vmul.f32 %v4131, 0.5
    %v4320 = vmul.f32 %v4242, 0.5
    %v4321 = vmul.f32 %v4244, 0.5
    %v4322 = vmul.f32 %v4135, 0.5
    %v4323 = vmul.f32 %v4137, 0.5
    %v4324 = vmul.f32 %v4248, 0.5
    %v4325 = vmul.f32 %v4250, 0.5
    %v4326 = vmul.f32 %v4139, 0.5
    %v4327 = vmul.f32 %v4141, 0.5
    %v4328 = vmul.f32 %v4252, 0.5
    %v4329 = vmul.f32 %v4254, 0.5
    %v4330 = vmul.f32 %v4145, 0.5
    %v4331 = vmul.f32 %v4147, 0.5
    %v4332 = vmul.f32 %v4258, 0.5
    %v4333 = vmul.f32 %v4260, 0.5
    %v4334 = vmul.f32 %v4149, 0.5
    %v4335 = vmul.f32 %v4151, 0.5
    %v4336 = vmul.f32 %v4262, 0.5
    %v4337 = vmul.f32 %v4264, 0.5
    %v4338 = vmul.f32 %v4155, 0.5
    %v4339 = vmul.f32 %v4157, 0.5
    %v4340 = vmul.f32 %v4268, 0.5
    %v4341 = vmul.f32 %v4270, 0.5
    %v4342 = vmul.f32 %v4159, 0.5
    %v4343 = vmul.f32 %v4161, 0.5
    %v4344 = vmul.f32 %v4272, 0.5
    %v4345 = vmul.f32 %v4274, 0.5
    %v4346 = vmul.f32 %v4165, 0.5
    %v4347 = vmul.f32 %v4167, 0.5
    %v4348 = vmul.f32 %v4278, 0.5
    %v4349 = vmul.f32 %v4280, 0.5
    %v4350 = vmul.f32 %v4169, 0.5
    %v4351 = vmul.f32 %v4171, 0.5
    %v4352 = vmul.f32 %v4282, 0.5
    %v4353 = vmul.f32 %v4284, 0.5
    %v4354 = vmul.f32 %v4175, 0.5
    %v4355 = vmul.f32 %v4177, 0.5
    %v4356 = vmul.f32 %v4288, 0.5
    %v4357 = vmul.f32 %v4290, 0.5
    %v4358 = vmul.f32 %v4179, 0.5
    %v4359 = vmul.f32 %v4181, 0.5
    %v4360 = vmul.f32 %v4292, 0.5
    %v4361 = vmul.f32 %v4294, 0.5
    %v4362 = vmul.f32 %v4185, 0.5
    %v4363 = vmul.f32 %v4187, 0.5
    %v4364 = vmul.f32 %v4298, 0.5
    %v4365 = vmul.f32 %v4300, 0.5
    %v4366 = vmul.f32 %v4189, 0.5
    %v4367 = vmul.f32 %v4191, 0.5
    %v4368 = vmul.f32 %v4302, 0.5
    %v4369 = vmul.f32 %v4304, 0.5
    %v4370 = vmul.f32 %v4115, 0.70710677
    %v4371 = vmul.f32 %v4117, 0.70710677
    %v4372 = vmul.f32 %v4228, 0.70710677
    %v4373 = vmul.f32 %v4230, 0.70710677
    %v4374 = vmul.f32 %v4119, 0.70710677
    %v4375 = vmul.f32 %v4121, 0.70710677
    %v4376 = vmul.f32 %v4232, 0.70710677
    %v4377 = vmul.f32 %v4234, 0.70710677
    %v4378 = vmul.f32 %v4125, 0.70710677
    %v4379 = vmul.f32 %v4127, 0.70710677
    %v4380 = vmul.f32 %v4238, 0.70710677
    %v4381 = vmul.f32 %v4240, 0.70710677
    %v4382 = vmul.f32 %v4129, 0.70710677
    %v4383 = vmul.f32 %v4131, 0.70710677
    %v4384 = vmul.f32 %v4242, 0.70710677
    %v4385 = vmul.f32 %v4244, 0.70710677
    %v4386 = vmul.f32 %v4135, 0.70710677
    %v4387 = vmul.f32 %v4137, 0.70710677
    %v4388 = vmul.f32 %v4248, 0.70710677
    %v4389 = vmul.f32 %v4250, 0.70710677
    %v4390 = vmul.f32 %v4139, 0.70710677
    %v4391 = vmul.f32 %v4141, 0.70710677
    %v4392 = vmul.f32 %v4252, 0.70710677
    %v4393 = vmul.f32 %v4254, 0.70710677
    %v4394 = vmul.f32 %v4145, 0.70710677
    %v4395 = vmul.f32 %v4147, 0.70710677
    %v4396 = vmul.f32 %v4258, 0.70710677
    %v4397 = vmul.f32 %v4260, 0.70710677
    %v4398 = vmul.f32 %v4149, 0.70710677
    %v4399 = vmul.f32 %v4151, 0.70710677
    %v4400 = vmul.f32 %v4262, 0.70710677
    %v4401 = vmul.f32 %v4264, 0.70710677
    %v4402 = vmul.f32 %v4155, 0.70710677
    %v4403 = vmul.f32 %v4157, 0.70710677
    %v4404 = vmul.f32 %v4268, 0.70710677
    %v4405 = vmul.f32 %v4270, 0.70710677
    %v4406 = vmul.f32 %v4159, 0.70710677
    %v4407 = vmul.f32 %v4161, 0.70710677
    %v4408 = vmul.f32 %v4272, 0.70710677
    %v4409 = vmul.f32 %v4274, 0.70710677
    %v4410 = vmul.f32 %v4165, 0.70710677
    %v4411 = vmul.f32 %v4167, 0.70710677
    %v4412 = vmul.f32 %v4278, 0.70710677
    %v4413 = vmul.f32 %v4280, 0.70710677
    %v4414 = vmul.f32 %v4169, 0.70710677
    %v4415 = vmul.f32 %v4171, 0.70710677
    %v4416 = vmul.f32 %v4282, 0.70710677
    %v4417 = vmul.f32 %v4284, 0.70710677
    %v4418 = vmul.f32 %v4175, 0.70710677
    %v4419 = vmul.f32 %v4177, 0.70710677
    %v4420 = vmul.f32 %v4288, 0.70710677
    %v4421 = vmul.f32 %v4290, 0.70710677
    %v4422 = vmul.f32 %v4179, 0.70710677
    %v4423 = vmul.f32 %v4181, 0.70710677
    %v4424 = vmul.f32 %v4292, 0.70710677
    %v4425 = vmul.f32 %v4294, 0.70710677
    %v4426 = vmul.f32 %v4185, 0.70710677
    %v4427 = vmul.f32 %v4187, 0.70710677
    %v4428 = vmul.f32 %v4298, 0.70710677
    %v4429 = vmul.f32 %v4300, 0.70710677
    %v4430 = vmul.f32 %v4189, 0.70710677
    %v4431 = vmul.f32 %v4191, 0.70710677
    %v4432 = vmul.f32 %v4302, 0.70710677
    %v4433 = vmul.f32 %v4304, 0.70710677
    %v4434 = verf.f32.pop %v4370
    %v4435 = verf.f32.pop %v4371
    %v4436 = verf.f32.pop %v4372
    %v4437 = verf.f32.pop %v4373
    %v4438 = verf.f32.pop %v4374
    %v4439 = verf.f32.pop %v4375
    %v4440 = verf.f32.pop %v4376
    %v4441 = verf.f32.pop %v4377
    %v4442 = verf.f32.pop %v4378
    %v4443 = verf.f32.pop %v4379
    %v4444 = verf.f32.pop %v4380
    %v4445 = verf.f32.pop %v4381
    %v4446 = verf.f32.pop %v4382
    %v4447 = verf.f32.pop %v4383
    %v4448 = verf.f32.pop %v4384
    %v4449 = verf.f32.pop %v4385
    %v4450 = verf.f32.pop %v4386
    %v4451 = verf.f32.pop %v4387
    %v4452 = verf.f32.pop %v4388
    %v4453 = verf.f32.pop %v4389
    %v4454 = verf.f32.pop %v4390
    %v4455 = verf.f32.pop %v4391
    %v4456 = verf.f32.pop %v4392
    %v4457 = verf.f32.pop %v4393
    %v4458 = verf.f32.pop %v4394
    %v4459 = verf.f32.pop %v4395
    %v4460 = verf.f32.pop %v4396
    %v4461 = verf.f32.pop %v4397
    %v4462 = verf.f32.pop %v4398
    %v4463 = verf.f32.pop %v4399
    %v4464 = verf.f32.pop %v4400
    %v4465 = verf.f32.pop %v4401
    %v4466 = verf.f32.pop %v4402
    %v4467 = verf.f32.pop %v4403
    %v4468 = verf.f32.pop %v4404
    %v4469 = verf.f32.pop %v4405
    %v4470 = verf.f32.pop %v4406
    %v4471 = verf.f32.pop %v4407
    %v4472 = verf.f32.pop %v4408
    %v4473 = verf.f32.pop %v4409
    %v4474 = verf.f32.pop %v4410
    %v4475 = verf.f32.pop %v4411
    %v4476 = verf.f32.pop %v4412
    %v4477 = verf.f32.pop %v4413
    %v4478 = verf.f32.pop %v4414
    %v4479 = verf.f32.pop %v4415
    %v4480 = verf.f32.pop %v4416
    %v4481 = verf.f32.pop %v4417
    %v4482 = verf.f32.pop %v4418
    %v4483 = verf.f32.pop %v4419
    %v4484 = verf.f32.pop %v4420
    %v4485 = verf.f32.pop %v4421
    %v4486 = verf.f32.pop %v4422
    %v4487 = verf.f32.pop %v4423
    %v4488 = verf.f32.pop %v4424
    %v4489 = verf.f32.pop %v4425
    %v4490 = verf.f32.pop %v4426
    %v4491 = verf.f32.pop %v4427
    %v4492 = verf.f32.pop %v4428
    %v4493 = verf.f32.pop %v4429
    %v4494 = verf.f32.pop %v4430
    %v4495 = verf.f32.pop %v4431
    %v4496 = verf.f32.pop %v4432
    %v4497 = verf.f32.pop %v4433
    %v4498 = vadd.f32 %v4434, 1.0
    %v4499 = vadd.f32 %v4435, 1.0
    %v4500 = vadd.f32 %v4436, 1.0
    %v4501 = vadd.f32 %v4437, 1.0
    %v4502 = vadd.f32 %v4438, 1.0
    %v4503 = vadd.f32 %v4439, 1.0
    %v4504 = vadd.f32 %v4440, 1.0
    %v4505 = vadd.f32 %v4441, 1.0
    %v4506 = vadd.f32 %v4442, 1.0
    %v4507 = vadd.f32 %v4443, 1.0
    %v4508 = vadd.f32 %v4444, 1.0
    %v4509 = vadd.f32 %v4445, 1.0
    %v4510 = vadd.f32 %v4446, 1.0
    %v4511 = vadd.f32 %v4447, 1.0
    %v4512 = vadd.f32 %v4448, 1.0
    %v4513 = vadd.f32 %v4449, 1.0
    %v4514 = vadd.f32 %v4450, 1.0
    %v4515 = vadd.f32 %v4451, 1.0
    %v4516 = vadd.f32 %v4452, 1.0
    %v4517 = vadd.f32 %v4453, 1.0
    %v4518 = vadd.f32 %v4454, 1.0
    %v4519 = vadd.f32 %v4455, 1.0
    %v4520 = vadd.f32 %v4456, 1.0
    %v4521 = vadd.f32 %v4457, 1.0
    %v4522 = vadd.f32 %v4458, 1.0
    %v4523 = vadd.f32 %v4459, 1.0
    %v4524 = vadd.f32 %v4460, 1.0
    %v4525 = vadd.f32 %v4461, 1.0
    %v4526 = vadd.f32 %v4462, 1.0
    %v4527 = vadd.f32 %v4463, 1.0
    %v4528 = vadd.f32 %v4464, 1.0
    %v4529 = vadd.f32 %v4465, 1.0
    %v4530 = vadd.f32 %v4466, 1.0
    %v4531 = vadd.f32 %v4467, 1.0
    %v4532 = vadd.f32 %v4468, 1.0
    %v4533 = vadd.f32 %v4469, 1.0
    %v4534 = vadd.f32 %v4470, 1.0
    %v4535 = vadd.f32 %v4471, 1.0
    %v4536 = vadd.f32 %v4472, 1.0
    %v4537 = vadd.f32 %v4473, 1.0
    %v4538 = vadd.f32 %v4474, 1.0
    %v4539 = vadd.f32 %v4475, 1.0
    %v4540 = vadd.f32 %v4476, 1.0
    %v4541 = vadd.f32 %v4477, 1.0
    %v4542 = vadd.f32 %v4478, 1.0
    %v4543 = vadd.f32 %v4479, 1.0
    %v4544 = vadd.f32 %v4480, 1.0
    %v4545 = vadd.f32 %v4481, 1.0
    %v4546 = vadd.f32 %v4482, 1.0
    %v4547 = vadd.f32 %v4483, 1.0
    %v4548 = vadd.f32 %v4484, 1.0
    %v4549 = vadd.f32 %v4485, 1.0
    %v4550 = vadd.f32 %v4486, 1.0
    %v4551 = vadd.f32 %v4487, 1.0
    %v4552 = vadd.f32 %v4488, 1.0
    %v4553 = vadd.f32 %v4489, 1.0
    %v4554 = vadd.f32 %v4490, 1.0
    %v4555 = vadd.f32 %v4491, 1.0
    %v4556 = vadd.f32 %v4492, 1.0
    %v4557 = vadd.f32 %v4493, 1.0
    %v4558 = vadd.f32 %v4494, 1.0
    %v4559 = vadd.f32 %v4495, 1.0
    %v4560 = vadd.f32 %v4496, 1.0
    %v4561 = vadd.f32 %v4497, 1.0
    %v4562 = vmul.f32 %v4306, %v4498
    %v4563 = vmul.f32 %v4307, %v4499
    %v4564 = vmul.f32 %v4308, %v4500
    %v4565 = vmul.f32 %v4309, %v4501
    %v4566 = vmul.f32 %v4310, %v4502
    %v4567 = vmul.f32 %v4311, %v4503
    %v4568 = vmul.f32 %v4312, %v4504
    %v4569 = vmul.f32 %v4313, %v4505
    %v4570 = vmul.f32 %v4314, %v4506
    %v4571 = vmul.f32 %v4315, %v4507
    %v4572 = vmul.f32 %v4316, %v4508
    %v4573 = vmul.f32 %v4317, %v4509
    %v4574 = vmul.f32 %v4318, %v4510
    %v4575 = vmul.f32 %v4319, %v4511
    %v4576 = vmul.f32 %v4320, %v4512
    %v4577 = vmul.f32 %v4321, %v4513
    %v4578 = vmul.f32 %v4322, %v4514
    %v4579 = vmul.f32 %v4323, %v4515
    %v4580 = vmul.f32 %v4324, %v4516
    %v4581 = vmul.f32 %v4325, %v4517
    %v4582 = vmul.f32 %v4326, %v4518
    %v4583 = vmul.f32 %v4327, %v4519
    %v4584 = vmul.f32 %v4328, %v4520
    %v4585 = vmul.f32 %v4329, %v4521
    %v4586 = vmul.f32 %v4330, %v4522
    %v4587 = vmul.f32 %v4331, %v4523
    %v4588 = vmul.f32 %v4332, %v4524
    %v4589 = vmul.f32 %v4333, %v4525
    %v4590 = vmul.f32 %v4334, %v4526
    %v4591 = vmul.f32 %v4335, %v4527
    %v4592 = vmul.f32 %v4336, %v4528
    %v4593 = vmul.f32 %v4337, %v4529
    %v4594 = vmul.f32 %v4338, %v4530
    %v4595 = vmul.f32 %v4339, %v4531
    %v4596 = vmul.f32 %v4340, %v4532
    %v4597 = vmul.f32 %v4341, %v4533
    %v4598 = vmul.f32 %v4342, %v4534
    %v4599 = vmul.f32 %v4343, %v4535
    %v4600 = vmul.f32 %v4344, %v4536
    %v4601 = vmul.f32 %v4345, %v4537
    %v4602 = vmul.f32 %v4346, %v4538
    %v4603 = vmul.f32 %v4347, %v4539
    %v4604 = vmul.f32 %v4348, %v4540
    %v4605 = vmul.f32 %v4349, %v4541
    %v4606 = vmul.f32 %v4350, %v4542
    %v4607 = vmul.f32 %v4351, %v4543
    %v4608 = vmul.f32 %v4352, %v4544
    %v4609 = vmul.f32 %v4353, %v4545
    %v4610 = vmul.f32 %v4354, %v4546
    %v4611 = vmul.f32 %v4355, %v4547
    %v4612 = vmul.f32 %v4356, %v4548
    %v4613 = vmul.f32 %v4357, %v4549
    %v4614 = vmul.f32 %v4358, %v4550
    %v4615 = vmul.f32 %v4359, %v4551
    %v4616 = vmul.f32 %v4360, %v4552
    %v4617 = vmul.f32 %v4361, %v4553
    %v4618 = vmul.f32 %v4362, %v4554
    %v4619 = vmul.f32 %v4363, %v4555
    %v4620 = vmul.f32 %v4364, %v4556
    %v4621 = vmul.f32 %v4365, %v4557
    %v4622 = vmul.f32 %v4366, %v4558
    %v4623 = vmul.f32 %v4367, %v4559
    %v4624 = vmul.f32 %v4368, %v4560
    %v4625 = vmul.f32 %v4369, %v4561
    %v4626 = vpack.c.bf16 %v4566, %v4562
    %v4627 = vpack.c.bf16 %v4567, %v4563
    %v4628 = vpack.c.bf16 %v4568, %v4564
    %v4629 = vpack.c.bf16 %v4569, %v4565
    %v4630 = vpack.c.bf16 %v4574, %v4570
    %v4631 = vpack.c.bf16 %v4575, %v4571
    %v4632 = vpack.c.bf16 %v4576, %v4572
    %v4633 = vpack.c.bf16 %v4577, %v4573
    %v4634 = vpack.c.bf16 %v4582, %v4578
    %v4635 = vpack.c.bf16 %v4583, %v4579
    %v4636 = vpack.c.bf16 %v4584, %v4580
    %v4637 = vpack.c.bf16 %v4585, %v4581
    %v4638 = vpack.c.bf16 %v4590, %v4586
    %v4639 = vpack.c.bf16 %v4591, %v4587
    %v4640 = vpack.c.bf16 %v4592, %v4588
    %v4641 = vpack.c.bf16 %v4593, %v4589
    %v4642 = vpack.c.bf16 %v4598, %v4594
    %v4643 = vpack.c.bf16 %v4599, %v4595
    %v4644 = vpack.c.bf16 %v4600, %v4596
    %v4645 = vpack.c.bf16 %v4601, %v4597
    %v4646 = vpack.c.bf16 %v4606, %v4602
    %v4647 = vpack.c.bf16 %v4607, %v4603
    %v4648 = vpack.c.bf16 %v4608, %v4604
    %v4649 = vpack.c.bf16 %v4609, %v4605
    %v4650 = vpack.c.bf16 %v4614, %v4610
    %v4651 = vpack.c.bf16 %v4615, %v4611
    %v4652 = vpack.c.bf16 %v4616, %v4612
    %v4653 = vpack.c.bf16 %v4617, %v4613
    %v4654 = vpack.c.bf16 %v4622, %v4618
    %v4655 = vpack.c.bf16 %v4623, %v4619
    %v4656 = vpack.c.bf16 %v4624, %v4620
    %v4657 = vpack.c.bf16 %v4625, %v4621
    %v4658 = vld [vmem:[#allocation6] sm:$0xf]
    %v4659 = vld [vmem:[#allocation6 + $0x4] sm:$0xf]
    %v4660 = vld [vmem:[#allocation6 + $0x8] sm:$0xf]
    %v4661 = vld [vmem:[#allocation6 + $0xc] sm:$0xf]
    %v4662 = vld [vmem:[#allocation6 + $0x10] sm:$0xf]
    %v4663 = vld [vmem:[#allocation6 + $0x14] sm:$0xf]
    %v4664 = vld [vmem:[#allocation6 + $0x18] sm:$0xf]
    %v4665 = vld [vmem:[#allocation6 + $0x1c] sm:$0xf]
    %v4666 = vld [vmem:[#allocation6 + $0x20] sm:$0xf]
    %v4667 = vld [vmem:[#allocation6 + $0x24] sm:$0xf]
    %v4668 = vld [vmem:[#allocation6 + $0x28] sm:$0xf]
    %v4669 = vld [vmem:[#allocation6 + $0x2c] sm:$0xf]
    %v4670 = vld [vmem:[#allocation6 + $0x30] sm:$0xf]
    %v4671 = vld [vmem:[#allocation6 + $0x34] sm:$0xf]
    %v4672 = vld [vmem:[#allocation6 + $0x38] sm:$0xf]
    %v4673 = vld [vmem:[#allocation6 + $0x3c] sm:$0xf]
    %v4674 = vld [vmem:[#allocation6 + $0x40] sm:$0xf]
    %v4675 = vld [vmem:[#allocation6 + $0x44] sm:$0xf]
    %v4676 = vld [vmem:[#allocation6 + $0x48] sm:$0xf]
    %v4677 = vld [vmem:[#allocation6 + $0x4c] sm:$0xf]
    %v4678 = vld [vmem:[#allocation6 + $0x50] sm:$0xf]
    %v4679 = vld [vmem:[#allocation6 + $0x54] sm:$0xf]
    %v4680 = vld [vmem:[#allocation6 + $0x58] sm:$0xf]
    %v4681 = vld [vmem:[#allocation6 + $0x5c] sm:$0xf]
    %v4682 = vld [vmem:[#allocation6 + $0x60] sm:$0xf]
    %v4683 = vld [vmem:[#allocation6 + $0x64] sm:$0xf]
    %v4684 = vld [vmem:[#allocation6 + $0x68] sm:$0xf]
    %v4685 = vld [vmem:[#allocation6 + $0x6c] sm:$0xf]
    %v4686 = vld [vmem:[#allocation6 + $0x70] sm:$0xf]
    %v4687 = vld [vmem:[#allocation6 + $0x74] sm:$0xf]
    %v4688 = vld [vmem:[#allocation6 + $0x78] sm:$0xf]
    %v4689 = vld [vmem:[#allocation6 + $0x7c] sm:$0xf]
    %v4690 = vld [vmem:[#allocation6 + $0x80] sm:$0xf]
    %v4691 = vld [vmem:[#allocation6 + $0x84] sm:$0xf]
    %v4692 = vld [vmem:[#allocation6 + $0x88] sm:$0xf]
    %v4693 = vld [vmem:[#allocation6 + $0x8c] sm:$0xf]
    %v4694 = vld [vmem:[#allocation6 + $0x90] sm:$0xf]
    %v4695 = vld [vmem:[#allocation6 + $0x94] sm:$0xf]
    %v4696 = vld [vmem:[#allocation6 + $0x98] sm:$0xf]
    %v4697 = vld [vmem:[#allocation6 + $0x9c] sm:$0xf]
    %v4698 = vld [vmem:[#allocation6 + $0xa0] sm:$0xf]
    %v4699 = vld [vmem:[#allocation6 + $0xa4] sm:$0xf]
    %v4700 = vld [vmem:[#allocation6 + $0xa8] sm:$0xf]
    %v4701 = vld [vmem:[#allocation6 + $0xac] sm:$0xf]
    %v4702 = vld [vmem:[#allocation6 + $0xb0] sm:$0xf]
    %v4703 = vld [vmem:[#allocation6 + $0xb4] sm:$0xf]
    %v4704 = vld [vmem:[#allocation6 + $0xb8] sm:$0xf]
    %v4705 = vld [vmem:[#allocation6 + $0xbc] sm:$0xf]
    %v4706 = vld [vmem:[#allocation6 + $0xc0] sm:$0xf]
    %v4707 = vld [vmem:[#allocation6 + $0xc4] sm:$0xf]
    %v4708 = vld [vmem:[#allocation6 + $0xc8] sm:$0xf]
    %v4709 = vld [vmem:[#allocation6 + $0xcc] sm:$0xf]
    %v4710 = vld [vmem:[#allocation6 + $0xd0] sm:$0xf]
    %v4711 = vld [vmem:[#allocation6 + $0xd4] sm:$0xf]
    %v4712 = vld [vmem:[#allocation6 + $0xd8] sm:$0xf]
    %v4713 = vld [vmem:[#allocation6 + $0xdc] sm:$0xf]
    %v4714 = vld [vmem:[#allocation6 + $0xe0] sm:$0xf]
    %v4715 = vld [vmem:[#allocation6 + $0xe4] sm:$0xf]
    %v4716 = vld [vmem:[#allocation6 + $0xe8] sm:$0xf]
    %v4717 = vld [vmem:[#allocation6 + $0xec] sm:$0xf]
    %v4718 = vld [vmem:[#allocation6 + $0xf0] sm:$0xf]
    %v4719 = vld [vmem:[#allocation6 + $0xf4] sm:$0xf]
    %v4720 = vld [vmem:[#allocation6 + $0xf8] sm:$0xf]
    %v4721 = vld [vmem:[#allocation6 + $0xfc] sm:$0xf]
    %v4786 = vunpack.c.l.b16 %v4658
    %v4787 = vunpack.c.l.b16 %v4659
    %v4788 = vunpack.c.l.b16 %v4660
    %v4789 = vunpack.c.l.b16 %v4661
    %v4790 = vunpack.c.l.b16 %v4662
    %v4791 = vunpack.c.l.b16 %v4663
    %v4792 = vunpack.c.l.b16 %v4664
    %v4793 = vunpack.c.l.b16 %v4665
    %v4794 = vunpack.c.l.b16 %v4666
    %v4795 = vunpack.c.l.b16 %v4667
    %v4796 = vunpack.c.l.b16 %v4668
    %v4797 = vunpack.c.l.b16 %v4669
    %v4798 = vunpack.c.l.b16 %v4670
    %v4799 = vunpack.c.l.b16 %v4671
    %v4800 = vunpack.c.l.b16 %v4672
    %v4801 = vunpack.c.l.b16 %v4673
    %v4802 = vunpack.c.l.b16 %v4674
    %v4803 = vunpack.c.l.b16 %v4675
    %v4804 = vunpack.c.l.b16 %v4676
    %v4805 = vunpack.c.l.b16 %v4677
    %v4806 = vunpack.c.l.b16 %v4678
    %v4807 = vunpack.c.l.b16 %v4679
    %v4808 = vunpack.c.l.b16 %v4680
    %v4809 = vunpack.c.l.b16 %v4681
    %v4810 = vunpack.c.l.b16 %v4682
    %v4811 = vunpack.c.l.b16 %v4683
    %v4812 = vunpack.c.l.b16 %v4684
    %v4813 = vunpack.c.l.b16 %v4685
    %v4814 = vunpack.c.l.b16 %v4686
    %v4815 = vunpack.c.l.b16 %v4687
    %v4816 = vunpack.c.l.b16 %v4688
    %v4817 = vunpack.c.l.b16 %v4689
    %v4818 = vunpack.c.l.b16 %v4690
    %v4819 = vunpack.c.l.b16 %v4691
    %v4820 = vunpack.c.l.b16 %v4692
    %v4821 = vunpack.c.l.b16 %v4693
    %v4822 = vunpack.c.l.b16 %v4694
    %v4823 = vunpack.c.l.b16 %v4695
    %v4824 = vunpack.c.l.b16 %v4696
    %v4825 = vunpack.c.l.b16 %v4697
    %v4826 = vunpack.c.l.b16 %v4698
    %v4827 = vunpack.c.l.b16 %v4699
    %v4828 = vunpack.c.l.b16 %v4700
    %v4829 = vunpack.c.l.b16 %v4701
    %v4830 = vunpack.c.l.b16 %v4702
    %v4831 = vunpack.c.l.b16 %v4703
    %v4832 = vunpack.c.l.b16 %v4704
    %v4833 = vunpack.c.l.b16 %v4705
    %v4834 = vunpack.c.l.b16 %v4706
    %v4835 = vunpack.c.l.b16 %v4707
    %v4836 = vunpack.c.l.b16 %v4708
    %v4837 = vunpack.c.l.b16 %v4709
    %v4838 = vunpack.c.l.b16 %v4710
    %v4839 = vunpack.c.l.b16 %v4711
    %v4840 = vunpack.c.l.b16 %v4712
    %v4841 = vunpack.c.l.b16 %v4713
    %v4842 = vunpack.c.l.b16 %v4714
    %v4843 = vunpack.c.l.b16 %v4715
    %v4844 = vunpack.c.l.b16 %v4716
    %v4845 = vunpack.c.l.b16 %v4717
    %v4846 = vunpack.c.l.b16 %v4718
    %v4847 = vunpack.c.l.b16 %v4719
    %v4848 = vunpack.c.l.b16 %v4720
    %v4849 = vunpack.c.l.b16 %v4721
    %v4850 = vpack.c.b16 %v4787, %v4786
    %v4851 = vpack.c.b16 %v4789, %v4788
    %v4852 = vpack.c.b16 %v4791, %v4790
    %v4853 = vpack.c.b16 %v4793, %v4792
    %v4854 = vpack.c.b16 %v4795, %v4794
    %v4855 = vpack.c.b16 %v4797, %v4796
    %v4856 = vpack.c.b16 %v4799, %v4798
    %v4857 = vpack.c.b16 %v4801, %v4800
    %v4858 = vpack.c.b16 %v4803, %v4802
    %v4859 = vpack.c.b16 %v4805, %v4804
    %v4860 = vpack.c.b16 %v4807, %v4806
    %v4861 = vpack.c.b16 %v4809, %v4808
    %v4862 = vpack.c.b16 %v4811, %v4810
    %v4863 = vpack.c.b16 %v4813, %v4812
    %v4864 = vpack.c.b16 %v4815, %v4814
    %v4865 = vpack.c.b16 %v4817, %v4816
    %v4866 = vpack.c.b16 %v4819, %v4818
    %v4867 = vpack.c.b16 %v4821, %v4820
    %v4868 = vpack.c.b16 %v4823, %v4822
    %v4869 = vpack.c.b16 %v4825, %v4824
    %v4870 = vpack.c.b16 %v4827, %v4826
    %v4871 = vpack.c.b16 %v4829, %v4828
    %v4872 = vpack.c.b16 %v4831, %v4830
    %v4873 = vpack.c.b16 %v4833, %v4832
    %v4874 = vpack.c.b16 %v4835, %v4834
    %v4875 = vpack.c.b16 %v4837, %v4836
    %v4876 = vpack.c.b16 %v4839, %v4838
    %v4877 = vpack.c.b16 %v4841, %v4840
    %v4878 = vpack.c.b16 %v4843, %v4842
    %v4879 = vpack.c.b16 %v4845, %v4844
    %v4880 = vpack.c.b16 %v4847, %v4846
    %v4881 = vpack.c.b16 %v4849, %v4848
    %4914 = vmatprep.subr.bf16.mxu0 0
    %4915 = vmatpush1.bf16.msra.mxu0 %v4857
    %4916 = vmatprep.subr.bf16.mxu0 0
    %4917 = vmatpush1.bf16.msra.mxu0 %v4856
    %4918 = vmatprep.subr.bf16.mxu0 0
    %4919 = vmatpush1.bf16.msra.mxu0 %v4855
    %4920 = vmatprep.subr.bf16.mxu0 0
    %4921 = vmatpush1.bf16.msra.mxu0 %v4854
    %4922 = vmatprep.subr.bf16.mxu0 0
    %4923 = vmatpush1.bf16.msra.mxu0 %v4853
    %4924 = vmatprep.subr.bf16.mxu0 0
    %4925 = vmatpush1.bf16.msra.mxu0 %v4852
    %4926 = vmatprep.subr.bf16.mxu0 0
    %4927 = vmatpush1.bf16.msra.mxu0 %v4851
    %4928 = vmatprep.subr.bf16.mxu0 0
    %4929 = vmatpush1.bf16.msra.mxu0 %v4850
    %4930 = vmatprep.subr.bf16.mxu0 0
    %4931 = vmatpush2.bf16.msra.mxu0 %v4865
    %4932 = vmatprep.subr.bf16.mxu0 0
    %4933 = vmatpush2.bf16.msra.mxu0 %v4864
    %4934 = vmatprep.subr.bf16.mxu0 0
    %4935 = vmatpush2.bf16.msra.mxu0 %v4863
    %4936 = vmatprep.subr.bf16.mxu0 0
    %4937 = vmatpush2.bf16.msra.mxu0 %v4862
    %4938 = vmatprep.subr.bf16.mxu0 0
    %4939 = vmatpush2.bf16.msra.mxu0 %v4861
    %4940 = vmatprep.subr.bf16.mxu0 0
    %4941 = vmatpush2.bf16.msra.mxu0 %v4860
    %4942 = vmatprep.subr.bf16.mxu0 0
    %4943 = vmatpush2.bf16.msra.mxu0 %v4859
    %4944 = vmatprep.subr.bf16.mxu0 0
    %4945 = vmatpush2.bf16.msra.mxu0 %v4858
    %4946 = vmatprep.mubr.bf16.mxu0 %v4627
    %4947 = vmatmul.mubr.bf16.gmra.mxu0 %v4626
    %v4948 = vpop.f32.mrf.mxu0
    %v4949 = vadd.f32 0.0, %v4948
    %v4950 = vpop.f32.mrf.mxu0
    %v4951 = vpop.f32.mrf.mxu0
    %v4952 = vadd.f32 0.0, %v4951
    %v4953 = vpop.f32.mrf.mxu0
    %4954 = vmatprep.mubr.bf16.mxu0 %v4631
    %4955 = vmatmul.mubr.bf16.gmra.mxu0 %v4630
    %v4956 = vpop.f32.mrf.mxu0
    %v4957 = vadd.f32 0.0, %v4956
    %v4958 = vpop.f32.mrf.mxu0
    %v4959 = vpop.f32.mrf.mxu0
    %v4960 = vadd.f32 0.0, %v4959
    %v4961 = vpop.f32.mrf.mxu0
    %4962 = vmatprep.mubr.bf16.mxu0 %v4635
    %4963 = vmatmul.mubr.bf16.gmra.mxu0 %v4634
    %v4964 = vpop.f32.mrf.mxu0
    %v4965 = vadd.f32 0.0, %v4964
    %v4966 = vpop.f32.mrf.mxu0
    %v4967 = vpop.f32.mrf.mxu0
    %v4968 = vadd.f32 0.0, %v4967
    %v4969 = vpop.f32.mrf.mxu0
    %4970 = vmatprep.mubr.bf16.mxu0 %v4639
    %4971 = vmatmul.mubr.bf16.gmra.mxu0 %v4638
    %v4972 = vpop.f32.mrf.mxu0
    %v4973 = vadd.f32 0.0, %v4972
    %v4974 = vpop.f32.mrf.mxu0
    %v4975 = vpop.f32.mrf.mxu0
    %v4976 = vadd.f32 0.0, %v4975
    %v4977 = vpop.f32.mrf.mxu0
    %4978 = vmatprep.mubr.bf16.mxu0 %v4643
    %4979 = vmatmul.mubr.bf16.gmra.mxu0 %v4642
    %v4980 = vpop.f32.mrf.mxu0
    %v4981 = vadd.f32 0.0, %v4980
    %v4982 = vpop.f32.mrf.mxu0
    %v4983 = vpop.f32.mrf.mxu0
    %v4984 = vadd.f32 0.0, %v4983
    %v4985 = vpop.f32.mrf.mxu0
    %4986 = vmatprep.mubr.bf16.mxu0 %v4647
    %4987 = vmatmul.mubr.bf16.gmra.mxu0 %v4646
    %v4988 = vpop.f32.mrf.mxu0
    %v4989 = vadd.f32 0.0, %v4988
    %v4990 = vpop.f32.mrf.mxu0
    %v4991 = vpop.f32.mrf.mxu0
    %v4992 = vadd.f32 0.0, %v4991
    %v4993 = vpop.f32.mrf.mxu0
    %4994 = vmatprep.mubr.bf16.mxu0 %v4651
    %4995 = vmatmul.mubr.bf16.gmra.mxu0 %v4650
    %v4996 = vpop.f32.mrf.mxu0
    %v4997 = vadd.f32 0.0, %v4996
    %v4998 = vpop.f32.mrf.mxu0
    %v4999 = vpop.f32.mrf.mxu0
    %v5000 = vadd.f32 0.0, %v4999
    %v5001 = vpop.f32.mrf.mxu0
    %5002 = vmatprep.mubr.bf16.mxu0 %v4655
    %5003 = vmatmul.mubr.bf16.gmra.mxu0 %v4654
    %v5004 = vpop.f32.mrf.mxu0
    %v5005 = vadd.f32 0.0, %v5004
    %v5006 = vpop.f32.mrf.mxu0
    %v5007 = vpop.f32.mrf.mxu0
    %v5008 = vadd.f32 0.0, %v5007
    %v5009 = vpop.f32.mrf.mxu0
    %5010 = vdwg.mxu0
    %5011 = vmatprep.subr.bf16.mxu0 0
    %5012 = vmatpush1.bf16.msra.mxu0 %v4873
    %5013 = vmatprep.subr.bf16.mxu0 0
    %5014 = vmatpush1.bf16.msra.mxu0 %v4872
    %5015 = vmatprep.subr.bf16.mxu0 0
    %5016 = vmatpush1.bf16.msra.mxu0 %v4871
    %5017 = vmatprep.subr.bf16.mxu0 0
    %5018 = vmatpush1.bf16.msra.mxu0 %v4870
    %5019 = vmatprep.subr.bf16.mxu0 0
    %5020 = vmatpush1.bf16.msra.mxu0 %v4869
    %5021 = vmatprep.subr.bf16.mxu0 0
    %5022 = vmatpush1.bf16.msra.mxu0 %v4868
    %5023 = vmatprep.subr.bf16.mxu0 0
    %5024 = vmatpush1.bf16.msra.mxu0 %v4867
    %5025 = vmatprep.subr.bf16.mxu0 0
    %5026 = vmatpush1.bf16.msra.mxu0 %v4866
    %5027 = vmatprep.subr.bf16.mxu0 0
    %5028 = vmatpush2.bf16.msra.mxu0 %v4881
    %5029 = vmatprep.subr.bf16.mxu0 0
    %5030 = vmatpush2.bf16.msra.mxu0 %v4880
    %5031 = vmatprep.subr.bf16.mxu0 0
    %5032 = vmatpush2.bf16.msra.mxu0 %v4879
    %5033 = vmatprep.subr.bf16.mxu0 0
    %5034 = vmatpush2.bf16.msra.mxu0 %v4878
    %5035 = vmatprep.subr.bf16.mxu0 0
    %5036 = vmatpush2.bf16.msra.mxu0 %v4877
    %5037 = vmatprep.subr.bf16.mxu0 0
    %5038 = vmatpush2.bf16.msra.mxu0 %v4876
    %5039 = vmatprep.subr.bf16.mxu0 0
    %5040 = vmatpush2.bf16.msra.mxu0 %v4875
    %5041 = vmatprep.subr.bf16.mxu0 0
    %5042 = vmatpush2.bf16.msra.mxu0 %v4874
    %5043 = vmatprep.mubr.bf16.mxu0 %v4629
    %5044 = vmatmul.mubr.bf16.gmra.mxu0 %v4628
    %v5045 = vpop.f32.mrf.mxu0
    %v5046 = vadd.f32 %v4949, %v5045
    %v5047 = vpop.f32.mrf.mxu0
    %v5048 = vpop.f32.mrf.mxu0
    %v5049 = vadd.f32 %v4952, %v5048
    %v5050 = vpop.f32.mrf.mxu0
    %5051 = vmatprep.mubr.bf16.mxu0 %v4633
    %5052 = vmatmul.mubr.bf16.gmra.mxu0 %v4632
    %v5053 = vpop.f32.mrf.mxu0
    %v5054 = vadd.f32 %v4957, %v5053
    %v5055 = vpop.f32.mrf.mxu0
    %v5056 = vpop.f32.mrf.mxu0
    %v5057 = vadd.f32 %v4960, %v5056
    %v5058 = vpop.f32.mrf.mxu0
    %5059 = vmatprep.mubr.bf16.mxu0 %v4637
    %5060 = vmatmul.mubr.bf16.gmra.mxu0 %v4636
    %v5061 = vpop.f32.mrf.mxu0
    %v5062 = vadd.f32 %v4965, %v5061
    %v5063 = vpop.f32.mrf.mxu0
    %v5064 = vpop.f32.mrf.mxu0
    %v5065 = vadd.f32 %v4968, %v5064
    %v5066 = vpop.f32.mrf.mxu0
    %5067 = vmatprep.mubr.bf16.mxu0 %v4641
    %5068 = vmatmul.mubr.bf16.gmra.mxu0 %v4640
    %v5069 = vpop.f32.mrf.mxu0
    %v5070 = vadd.f32 %v4973, %v5069
    %v5071 = vpop.f32.mrf.mxu0
    %v5072 = vpop.f32.mrf.mxu0
    %v5073 = vadd.f32 %v4976, %v5072
    %v5074 = vpop.f32.mrf.mxu0
    %5075 = vmatprep.mubr.bf16.mxu0 %v4645
    %5076 = vmatmul.mubr.bf16.gmra.mxu0 %v4644
    %v5077 = vpop.f32.mrf.mxu0
    %v5078 = vadd.f32 %v4981, %v5077
    %v5079 = vpop.f32.mrf.mxu0
    %v5080 = vpop.f32.mrf.mxu0
    %v5081 = vadd.f32 %v4984, %v5080
    %v5082 = vpop.f32.mrf.mxu0
    %5083 = vmatprep.mubr.bf16.mxu0 %v4649
    %5084 = vmatmul.mubr.bf16.gmra.mxu0 %v4648
    %v5085 = vpop.f32.mrf.mxu0
    %v5086 = vadd.f32 %v4989, %v5085
    %v5087 = vpop.f32.mrf.mxu0
    %v5088 = vpop.f32.mrf.mxu0
    %v5089 = vadd.f32 %v4992, %v5088
    %v5090 = vpop.f32.mrf.mxu0
    %5091 = vmatprep.mubr.bf16.mxu0 %v4653
    %5092 = vmatmul.mubr.bf16.gmra.mxu0 %v4652
    %v5093 = vpop.f32.mrf.mxu0
    %v5094 = vadd.f32 %v4997, %v5093
    %v5095 = vpop.f32.mrf.mxu0
    %v5096 = vpop.f32.mrf.mxu0
    %v5097 = vadd.f32 %v5000, %v5096
    %v5098 = vpop.f32.mrf.mxu0
    %5099 = vmatprep.mubr.bf16.mxu0 %v4657
    %5100 = vmatmul.mubr.bf16.gmra.mxu0 %v4656
    %v5101 = vpop.f32.mrf.mxu0
    %v5102 = vadd.f32 %v5005, %v5101
    %v5103 = vpop.f32.mrf.mxu0
    %v5104 = vpop.f32.mrf.mxu0
    %v5105 = vadd.f32 %v5008, %v5104
    %v5106 = vpop.f32.mrf.mxu0
    %5107 = vdwg.mxu0
    %v5108 = vadd.f32 %v3620, %v5046
    %v5109 = vadd.f32 %v3621, %v5049
    %v5110 = vadd.f32 %v3622, %v5054
    %v5111 = vadd.f32 %v3623, %v5057
    %v5112 = vadd.f32 %v3624, %v5062
    %v5113 = vadd.f32 %v3625, %v5065
    %v5114 = vadd.f32 %v3626, %v5070
    %v5115 = vadd.f32 %v3627, %v5073
    %v5116 = vadd.f32 %v3628, %v5078
    %v5117 = vadd.f32 %v3629, %v5081
    %v5118 = vadd.f32 %v3630, %v5086
    %v5119 = vadd.f32 %v3631, %v5089
    %v5120 = vadd.f32 %v3632, %v5094
    %v5121 = vadd.f32 %v3633, %v5097
    %v5122 = vadd.f32 %v3634, %v5102
    %v5123 = vadd.f32 %v3635, %v5105
    %v5124 = vld [vmem:[%s12] sm:$0x1]
    %v5126 = vlaneseq
    %v5127 = vshrl.u32 %v5126, 7
    %v5128 = vsub.s32 0, %v5127
    %v5129 = vrot.slane %v5124, %v5128
    %v5131 = vadd.f32 %v5108, %v5129
    %v5132 = vadd.f32 %v5109, %v5129
    %v5133 = vadd.f32 %v5110, %v5129
    %v5134 = vadd.f32 %v5111, %v5129
    %v5135 = vadd.f32 %v5112, %v5129
    %v5136 = vadd.f32 %v5113, %v5129
    %v5137 = vadd.f32 %v5114, %v5129
    %v5138 = vadd.f32 %v5115, %v5129
    %v5139 = vadd.f32 %v5116, %v5129
    %v5140 = vadd.f32 %v5117, %v5129
    %v5141 = vadd.f32 %v5118, %v5129
    %v5142 = vadd.f32 %v5119, %v5129
    %v5143 = vadd.f32 %v5120, %v5129
    %v5144 = vadd.f32 %v5121, %v5129
    %v5145 = vadd.f32 %v5122, %v5129
    %v5146 = vadd.f32 %v5123, %v5129
    %5147 = vst [vmem:[%s13] sm:$0xff] %v5131
    %5148 = vst [vmem:[%s13 + $0x8] sm:$0xff] %v5132
    %5149 = vst [vmem:[%s13 + $0x10] sm:$0xff] %v5133
    %5150 = vst [vmem:[%s13 + $0x18] sm:$0xff] %v5134
    %5151 = vst [vmem:[%s13 + $0x20] sm:$0xff] %v5135
    %5152 = vst [vmem:[%s13 + $0x28] sm:$0xff] %v5136
    %5153 = vst [vmem:[%s13 + $0x30] sm:$0xff] %v5137
    %5154 = vst [vmem:[%s13 + $0x38] sm:$0xff] %v5138
    %5155 = vst [vmem:[%s13 + $0x40] sm:$0xff] %v5139
    %5156 = vst [vmem:[%s13 + $0x48] sm:$0xff] %v5140
    %5157 = vst [vmem:[%s13 + $0x50] sm:$0xff] %v5141
    %5158 = vst [vmem:[%s13 + $0x58] sm:$0xff] %v5142
    %5159 = vst [vmem:[%s13 + $0x60] sm:$0xff] %v5143
    %5160 = vst [vmem:[%s13 + $0x68] sm:$0xff] %v5144
    %5161 = vst [vmem:[%s13 + $0x70] sm:$0xff] %v5145
    %5162 = vst [vmem:[%s13 + $0x78] sm:$0xff] %v5146
    // Predicated region
    $region66: #{block_forward.1} parent=1 // pred_check
      _
    $region67: #{block_forward.1} parent=1 // pred_check_branch
      %5164 = sbr.rel (0) target = $region69
    $region68: #{block_forward.1} parent=1 // pred_region
      _
    $region69: #{block_forward.1} parent=1 // pred_fallthru
      _
    // Predicated region
    $region70: #{block_forward.1} parent=1 // pred_check
      _
    $region71: #{block_forward.1} parent=1 // pred_check_branch
      %5166 = sbr.rel (0) target = $region73
    $region72: #{block_forward.1} parent=1 // pred_region
      _
    $region73: #{block_forward.1} parent=1 // pred_fallthru
      _
    %5167 = vsyncpa [#allocation3], 1
    %5168 = vsyncpa [#allocation5], 1

</llo_original>
